<compile_context>
chip_gen: v6e
topology: v6e:2x2x1
jax: 0.10.0
libtpu: 0.0.40
codegen_flags: <defaults>
</compile_context>

<pallas_src>
import math

import jax
import jax.numpy as jnp
from jax.experimental import pallas as pl
from jax.experimental.pallas import tpu as pltpu

# ---- module hyper-parameters (KANLinear defaults) ---------------------------
IN_FEATURES = 32
OUT_FEATURES = 64
GRID_SIZE = 5
SPLINE_ORDER = 3
NUM_COEFF = GRID_SIZE + SPLINE_ORDER            # 8
GRID_LEN = GRID_SIZE + 2 * SPLINE_ORDER + 1     # 12
GRID_RANGE = (-1.0, 1.0)

TILE_N = 512   # rows per grid step (multiple of 128; ~3-4 MiB live per tile)


def _round_up(v, m):
    return ((v + m - 1) // m) * m


def _kan_linear_kernel(xT_ref, grid_ref, base_w_ref, spline_w_ref, out_ref):
    """Per-tile refs (all VMEM):

    xT_ref:       (in, T)            -- x transposed, rows on lanes
    grid_ref:     (in, GRID_LEN)
    base_w_ref:   (out, in)
    spline_w_ref: (out, in*NUM_COEFF)-- scaled spline weight, flattened (i*C+c)
    out_ref:      (out, T)           -- output transposed, rows on lanes
    """
    x = xT_ref[...].astype(jnp.float32)                      # (in, T)
    g = grid_ref[...].astype(jnp.float32)                    # (in, GRID_LEN)

    # ---- base branch: SiLU on EUP (exact tanh identity), then MXU matmul ----
    silu = 0.5 * x * (1.0 + jnp.tanh(0.5 * x))               # (in, T)
    acc = jnp.dot(base_w_ref[...].astype(jnp.float32), silu,
                  preferred_element_type=jnp.float32)        # (out, T)

    # ---- B-spline bases (Cox-de Boor), rows on lanes -------------------------
    xe = x[:, None, :]                                       # (in, 1, T)
    ge = g[:, :, None]                                       # (in, GRID_LEN, 1)

    # order-0 bases: indicator of the containing grid interval
    bases = jnp.logical_and(xe >= ge[:, :-1, :],
                            xe < ge[:, 1:, :]).astype(jnp.float32)  # (in, 11, T)

    for k in range(1, SPLINE_ORDER + 1):
        # grid-only reciprocals, hoisted: computed once per tile (tiny), so the
        # per-element recursion is multiply/add only.
        inv_l = (1.0 / (g[:, k:-1] - g[:, :-(k + 1)]))[:, :, None]   # (in, 11-k, 1)
        inv_r = (1.0 / (g[:, k + 1:] - g[:, 1:-k]))[:, :, None]      # (in, 11-k, 1)
        left = (xe - ge[:, :-(k + 1), :]) * inv_l
        right = (ge[:, k + 1:, :] - xe) * inv_r
        bases = left * bases[:, :-1, :] + right * bases[:, 1:, :]
    # bases: (in, NUM_COEFF, T)

    # ---- spline branch: one K = in*NUM_COEFF (=256) MXU matmul ---------------
    bases_flat = bases.reshape(IN_FEATURES * NUM_COEFF, bases.shape[-1])  # (256, T)
    acc = acc + jnp.dot(spline_w_ref[...].astype(jnp.float32), bases_flat,
                        preferred_element_type=jnp.float32)              # (out, T)

    out_ref[...] = acc.astype(out_ref.dtype)


def kan_linear_forward(x, grid, base_weight, spline_weight, spline_scaler):
    """x: (..., in_features) -> (..., out_features)."""
    orig_shape = x.shape
    orig_dtype = x.dtype
    x2 = x.reshape(-1, IN_FEATURES).astype(jnp.float32)
    n = x2.shape[0]

    # row tiling: rows live on the lane axis inside the kernel, so the tile
    # must be a multiple of 128; pad N up to a whole number of tiles.
    tile_n = min(TILE_N, _round_up(max(n, 1), 128))
    n_pad = _round_up(n, tile_n)
    x_pad = jnp.pad(x2, ((0, n_pad - n), (0, 0)))
    x_t = jnp.transpose(x_pad)                                        # (in, n_pad)

    # parameter prep (plain JAX, done once)
    base_w = base_weight.astype(jnp.float32)                          # (out, in)
    spline_w_flat = (spline_weight * spline_scaler[:, :, None]) \
        .reshape(OUT_FEATURES, IN_FEATURES * NUM_COEFF).astype(jnp.float32)
    grid_f = grid.astype(jnp.float32)                                 # (in, GRID_LEN)

    grid_spec = pl.GridSpec(
        grid=(n_pad // tile_n,),
        in_specs=[
            pl.BlockSpec((IN_FEATURES, tile_n), lambda i: (0, i)),
            pl.BlockSpec((IN_FEATURES, GRID_LEN), lambda i: (0, 0)),
            pl.BlockSpec((OUT_FEATURES, IN_FEATURES), lambda i: (0, 0)),
            pl.BlockSpec((OUT_FEATURES, IN_FEATURES * NUM_COEFF), lambda i: (0, 0)),
        ],
        out_specs=pl.BlockSpec((OUT_FEATURES, tile_n), lambda i: (0, i)),
    )

    out_t = pl.pallas_call(
        _kan_linear_kernel,
        out_shape=jax.ShapeDtypeStruct((OUT_FEATURES, n_pad), jnp.float32),
        grid_spec=grid_spec,
        compiler_params=pltpu.CompilerParams(
            dimension_semantics=("parallel",)),
    )(x_t, grid_f, base_w, spline_w_flat)

    out = jnp.transpose(out_t[:, :n])                                 # (n, out)
    return out.reshape(*orig_shape[:-1], OUT_FEATURES).astype(orig_dtype)


# ---- pure-JAX reference (row-major, same math as the PyTorch module) --------
def _reference_forward(x, grid, base_weight, spline_weight, spline_scaler):
    orig_shape = x.shape
    x2 = x.reshape(-1, IN_FEATURES).astype(jnp.float32)
    silu = x2 * jax.nn.sigmoid(x2)
    base_out = silu @ base_weight.T
    xe = x2[:, :, None]
    g = grid[None, :, :]
    bases = jnp.logical_and(xe >= g[:, :, :-1], xe < g[:, :, 1:]).astype(jnp.float32)
    for k in range(1, SPLINE_ORDER + 1):
        left = (xe - g[:, :, : -(k + 1)]) / (g[:, :, k:-1] - g[:, :, : -(k + 1)])
        right = (g[:, :, k + 1:] - xe) / (g[:, :, k + 1:] - g[:, :, 1:-k])
        bases = left * bases[:, :, :-1] + right * bases[:, :, 1:]
    scaled = spline_weight * spline_scaler[:, :, None]
    spline_out = bases.reshape(x2.shape[0], -1) @ scaled.reshape(OUT_FEATURES, -1).T
    out = base_out + spline_out
    return out.reshape(*orig_shape[:-1], OUT_FEATURES)


if __name__ == "__main__":
    key = jax.random.PRNGKey(0)
    k_x, k_bw, k_sw, k_ss, k_x2 = jax.random.split(key, 5)

    # deterministic "synthetic" parameters (shapes from KANLinear.__init__)
    # TODO(synk): reset_parameters() uses torch.linalg.lstsq (curve2coeff) for the
    # spline_weight init; replaced with a deterministic random init here.
    bound = 1.0 / math.sqrt(IN_FEATURES)
    base_weight = jax.random.uniform(
        k_bw, (OUT_FEATURES, IN_FEATURES), jnp.float32, -bound, bound)
    spline_weight = 0.05 * jax.random.normal(
        k_sw, (OUT_FEATURES, IN_FEATURES, NUM_COEFF), jnp.float32)
    spline_scaler = jax.random.uniform(
        k_ss, (OUT_FEATURES, IN_FEATURES), jnp.float32, -bound, bound)

    # grid buffer, exactly as in __init__
    h = (GRID_RANGE[1] - GRID_RANGE[0]) / GRID_SIZE
    grid_row = (jnp.arange(-SPLINE_ORDER, GRID_SIZE + SPLINE_ORDER + 1,
                           dtype=jnp.float32) * h + GRID_RANGE[0])
    grid = jnp.broadcast_to(grid_row, (IN_FEATURES, GRID_LEN)).copy()

    # small example: (batch=2, seq=4, in_features=32) in the grid range
    x = jax.random.uniform(k_x, (2, 4, IN_FEATURES), jnp.float32, -1.0, 1.0)
    out = jax.block_until_ready(
        kan_linear_forward(x, grid, base_weight, spline_weight, spline_scaler))
    ref = _reference_forward(x, grid, base_weight, spline_weight, spline_scaler)
    assert out.shape == (2, 4, OUT_FEATURES)
    assert jnp.allclose(out, ref, atol=1e-4, rtol=1e-4), "mismatch vs reference (small)"

    # second check: exercises multi-tile grid + row padding (N=600 -> 2 tiles of 512)
    x_big = jax.random.uniform(k_x2, (3, 200, IN_FEATURES), jnp.float32, -1.0, 1.0)
    out_big = jax.block_until_ready(
        kan_linear_forward(x_big, grid, base_weight, spline_weight, spline_scaler))
    ref_big = _reference_forward(x_big, grid, base_weight, spline_weight, spline_scaler)
    assert jnp.allclose(out_big, ref_big, atol=1e-4, rtol=1e-4), "mismatch vs reference (big)"

    print("KERNEL_OK")
</pallas_src>

<mosaic_0001>
module attributes {stable_mosaic.version = 11 : i64} {
  func.func @_kan_linear_kernel(%arg0: i32, %arg1: memref<32x128xf32, #tpu.memory_space<vmem>>, %arg2: memref<32x12xf32, #tpu.memory_space<vmem>>, %arg3: memref<64x32xf32, #tpu.memory_space<vmem>>, %arg4: memref<64x256xf32, #tpu.memory_space<vmem>>, %arg5: memref<64x128xf32, #tpu.memory_space<vmem>>) attributes {dimension_semantics = [#tpu.dimension_semantics<parallel>], iteration_bounds = array<i64: 1>, scalar_prefetch = 0 : i64, scratch_operands = 0 : i64, tpu.core_type = #tpu.core_type<tc>, window_params = [{transform_indices = @transform_0, window_bounds = array<i64: 32, 128>}, {pipeline_mode = #tpu.pipeline_mode<synchronous>, transform_indices = @transform_1, window_bounds = array<i64: 32, 12>}, {pipeline_mode = #tpu.pipeline_mode<synchronous>, transform_indices = @transform_2, window_bounds = array<i64: 64, 32>}, {pipeline_mode = #tpu.pipeline_mode<synchronous>, transform_indices = @transform_3, window_bounds = array<i64: 64, 256>}, {transform_indices = @transform_4, window_bounds = array<i64: 64, 128>}]} {
    %c0 = arith.constant 0 : index
    %c0_0 = arith.constant 0 : index
    %0 = vector.load %arg1[%c0, %c0_0] : memref<32x128xf32, #tpu.memory_space<vmem>>, vector<32x128xf32>
    %c0_1 = arith.constant 0 : index
    %c0_2 = arith.constant 0 : index
    %1 = vector.load %arg2[%c0_1, %c0_2] : memref<32x12xf32, #tpu.memory_space<vmem>>, vector<32x12xf32>
    %cst = arith.constant 5.000000e-01 : f32
    %2 = vector.broadcast %cst : f32 to vector<32x128xf32>
    %3 = arith.mulf %2, %0 : vector<32x128xf32>
    %cst_3 = arith.constant 5.000000e-01 : f32
    %4 = vector.broadcast %cst_3 : f32 to vector<32x128xf32>
    %5 = arith.mulf %4, %0 : vector<32x128xf32>
    %6 = math.tanh %5 : vector<32x128xf32>
    %cst_4 = arith.constant 1.000000e+00 : f32
    %7 = vector.broadcast %cst_4 : f32 to vector<32x128xf32>
    %8 = arith.addf %7, %6 : vector<32x128xf32>
    %9 = arith.mulf %3, %8 : vector<32x128xf32>
    %c0_5 = arith.constant 0 : index
    %c0_6 = arith.constant 0 : index
    %10 = vector.load %arg3[%c0_5, %c0_6] : memref<64x32xf32, #tpu.memory_space<vmem>>, vector<64x32xf32>
    %cst_7 = arith.constant dense<0.000000e+00> : vector<64x128xf32>
    %11 = tpu.matmul %10, %9, %cst_7 {dimension_numbers = #tpu.dot_dimension_numbers<[1], [0], [0], [1], [0, 0, 1, 1], [], []>} : vector<64x32xf32>, vector<32x128xf32>, vector<64x128xf32> -> vector<64x128xf32>
    %12 = vector.shape_cast %0 : vector<32x128xf32> to vector<32x1x128xf32>
    %13 = vector.shape_cast %1 : vector<32x12xf32> to vector<32x12x1xf32>
    %14 = vector.extract_strided_slice %13 {offsets = [0, 0, 0], sizes = [32, 11, 1], strides = [1, 1, 1]} : vector<32x12x1xf32> to vector<32x11x1xf32>
    %15 = vector.broadcast %12 : vector<32x1x128xf32> to vector<32x11x128xf32>
    %16 = vector.broadcast %14 : vector<32x11x1xf32> to vector<32x11x128xf32>
    %17 = arith.cmpf oge, %15, %16 : vector<32x11x128xf32>
    %18 = vector.extract_strided_slice %13 {offsets = [0, 1, 0], sizes = [32, 11, 1], strides = [1, 1, 1]} : vector<32x12x1xf32> to vector<32x11x1xf32>
    %19 = vector.broadcast %12 : vector<32x1x128xf32> to vector<32x11x128xf32>
    %20 = vector.broadcast %18 : vector<32x11x1xf32> to vector<32x11x128xf32>
    %21 = arith.cmpf olt, %19, %20 : vector<32x11x128xf32>
    %22 = arith.andi %17, %21 : vector<32x11x128xi1>
    %23 = arith.extui %22 : vector<32x11x128xi1> to vector<32x11x128xi32>
    %24 = arith.sitofp %23 : vector<32x11x128xi32> to vector<32x11x128xf32>
    %25 = vector.extract_strided_slice %1 {offsets = [0, 1], sizes = [32, 10], strides = [1, 1]} : vector<32x12xf32> to vector<32x10xf32>
    %26 = vector.extract_strided_slice %1 {offsets = [0, 0], sizes = [32, 10], strides = [1, 1]} : vector<32x12xf32> to vector<32x10xf32>
    %27 = arith.subf %25, %26 : vector<32x10xf32>
    %cst_8 = arith.constant 1.000000e+00 : f32
    %28 = vector.broadcast %cst_8 : f32 to vector<32x10xf32>
    %29 = arith.divf %28, %27 : vector<32x10xf32>
    %30 = vector.shape_cast %29 : vector<32x10xf32> to vector<32x10x1xf32>
    %31 = vector.extract_strided_slice %1 {offsets = [0, 2], sizes = [32, 10], strides = [1, 1]} : vector<32x12xf32> to vector<32x10xf32>
    %32 = vector.extract_strided_slice %1 {offsets = [0, 1], sizes = [32, 10], strides = [1, 1]} : vector<32x12xf32> to vector<32x10xf32>
    %33 = arith.subf %31, %32 : vector<32x10xf32>
    %cst_9 = arith.constant 1.000000e+00 : f32
    %34 = vector.broadcast %cst_9 : f32 to vector<32x10xf32>
    %35 = arith.divf %34, %33 : vector<32x10xf32>
    %36 = vector.shape_cast %35 : vector<32x10xf32> to vector<32x10x1xf32>
    %37 = vector.extract_strided_slice %13 {offsets = [0, 0, 0], sizes = [32, 10, 1], strides = [1, 1, 1]} : vector<32x12x1xf32> to vector<32x10x1xf32>
    %38 = vector.broadcast %12 : vector<32x1x128xf32> to vector<32x10x128xf32>
    %39 = vector.broadcast %37 : vector<32x10x1xf32> to vector<32x10x128xf32>
    %40 = arith.subf %38, %39 : vector<32x10x128xf32>
    %41 = vector.broadcast %30 : vector<32x10x1xf32> to vector<32x10x128xf32>
    %42 = arith.mulf %40, %41 : vector<32x10x128xf32>
    %43 = vector.extract_strided_slice %13 {offsets = [0, 2, 0], sizes = [32, 10, 1], strides = [1, 1, 1]} : vector<32x12x1xf32> to vector<32x10x1xf32>
    %44 = vector.broadcast %43 : vector<32x10x1xf32> to vector<32x10x128xf32>
    %45 = vector.broadcast %12 : vector<32x1x128xf32> to vector<32x10x128xf32>
    %46 = arith.subf %44, %45 : vector<32x10x128xf32>
    %47 = vector.broadcast %36 : vector<32x10x1xf32> to vector<32x10x128xf32>
    %48 = arith.mulf %46, %47 : vector<32x10x128xf32>
    %49 = vector.extract_strided_slice %24 {offsets = [0, 0, 0], sizes = [32, 10, 128], strides = [1, 1, 1]} : vector<32x11x128xf32> to vector<32x10x128xf32>
    %50 = arith.mulf %42, %49 : vector<32x10x128xf32>
    %51 = vector.extract_strided_slice %24 {offsets = [0, 1, 0], sizes = [32, 10, 128], strides = [1, 1, 1]} : vector<32x11x128xf32> to vector<32x10x128xf32>
    %52 = arith.mulf %48, %51 : vector<32x10x128xf32>
    %53 = arith.addf %50, %52 : vector<32x10x128xf32>
    %54 = vector.extract_strided_slice %1 {offsets = [0, 2], sizes = [32, 9], strides = [1, 1]} : vector<32x12xf32> to vector<32x9xf32>
    %55 = vector.extract_strided_slice %1 {offsets = [0, 0], sizes = [32, 9], strides = [1, 1]} : vector<32x12xf32> to vector<32x9xf32>
    %56 = arith.subf %54, %55 : vector<32x9xf32>
    %cst_10 = arith.constant 1.000000e+00 : f32
    %57 = vector.broadcast %cst_10 : f32 to vector<32x9xf32>
    %58 = arith.divf %57, %56 : vector<32x9xf32>
    %59 = vector.shape_cast %58 : vector<32x9xf32> to vector<32x9x1xf32>
    %60 = vector.extract_strided_slice %1 {offsets = [0, 3], sizes = [32, 9], strides = [1, 1]} : vector<32x12xf32> to vector<32x9xf32>
    %61 = vector.extract_strided_slice %1 {offsets = [0, 1], sizes = [32, 9], strides = [1, 1]} : vector<32x12xf32> to vector<32x9xf32>
    %62 = arith.subf %60, %61 : vector<32x9xf32>
    %cst_11 = arith.constant 1.000000e+00 : f32
    %63 = vector.broadcast %cst_11 : f32 to vector<32x9xf32>
    %64 = arith.divf %63, %62 : vector<32x9xf32>
    %65 = vector.shape_cast %64 : vector<32x9xf32> to vector<32x9x1xf32>
    %66 = vector.extract_strided_slice %13 {offsets = [0, 0, 0], sizes = [32, 9, 1], strides = [1, 1, 1]} : vector<32x12x1xf32> to vector<32x9x1xf32>
    %67 = vector.broadcast %12 : vector<32x1x128xf32> to vector<32x9x128xf32>
    %68 = vector.broadcast %66 : vector<32x9x1xf32> to vector<32x9x128xf32>
    %69 = arith.subf %67, %68 : vector<32x9x128xf32>
    %70 = vector.broadcast %59 : vector<32x9x1xf32> to vector<32x9x128xf32>
    %71 = arith.mulf %69, %70 : vector<32x9x128xf32>
    %72 = vector.extract_strided_slice %13 {offsets = [0, 3, 0], sizes = [32, 9, 1], strides = [1, 1, 1]} : vector<32x12x1xf32> to vector<32x9x1xf32>
    %73 = vector.broadcast %72 : vector<32x9x1xf32> to vector<32x9x128xf32>
    %74 = vector.broadcast %12 : vector<32x1x128xf32> to vector<32x9x128xf32>
    %75 = arith.subf %73, %74 : vector<32x9x128xf32>
    %76 = vector.broadcast %65 : vector<32x9x1xf32> to vector<32x9x128xf32>
    %77 = arith.mulf %75, %76 : vector<32x9x128xf32>
    %78 = vector.extract_strided_slice %53 {offsets = [0, 0, 0], sizes = [32, 9, 128], strides = [1, 1, 1]} : vector<32x10x128xf32> to vector<32x9x128xf32>
    %79 = arith.mulf %71, %78 : vector<32x9x128xf32>
    %80 = vector.extract_strided_slice %53 {offsets = [0, 1, 0], sizes = [32, 9, 128], strides = [1, 1, 1]} : vector<32x10x128xf32> to vector<32x9x128xf32>
    %81 = arith.mulf %77, %80 : vector<32x9x128xf32>
    %82 = arith.addf %79, %81 : vector<32x9x128xf32>
    %83 = vector.extract_strided_slice %1 {offsets = [0, 3], sizes = [32, 8], strides = [1, 1]} : vector<32x12xf32> to vector<32x8xf32>
    %84 = vector.extract_strided_slice %1 {offsets = [0, 0], sizes = [32, 8], strides = [1, 1]} : vector<32x12xf32> to vector<32x8xf32>
    %85 = arith.subf %83, %84 : vector<32x8xf32>
    %cst_12 = arith.constant 1.000000e+00 : f32
    %86 = vector.broadcast %cst_12 : f32 to vector<32x8xf32>
    %87 = arith.divf %86, %85 : vector<32x8xf32>
    %88 = vector.shape_cast %87 : vector<32x8xf32> to vector<32x8x1xf32>
    %89 = vector.extract_strided_slice %1 {offsets = [0, 4], sizes = [32, 8], strides = [1, 1]} : vector<32x12xf32> to vector<32x8xf32>
    %90 = vector.extract_strided_slice %1 {offsets = [0, 1], sizes = [32, 8], strides = [1, 1]} : vector<32x12xf32> to vector<32x8xf32>
    %91 = arith.subf %89, %90 : vector<32x8xf32>
    %cst_13 = arith.constant 1.000000e+00 : f32
    %92 = vector.broadcast %cst_13 : f32 to vector<32x8xf32>
    %93 = arith.divf %92, %91 : vector<32x8xf32>
    %94 = vector.shape_cast %93 : vector<32x8xf32> to vector<32x8x1xf32>
    %95 = vector.extract_strided_slice %13 {offsets = [0, 0, 0], sizes = [32, 8, 1], strides = [1, 1, 1]} : vector<32x12x1xf32> to vector<32x8x1xf32>
    %96 = vector.broadcast %12 : vector<32x1x128xf32> to vector<32x8x128xf32>
    %97 = vector.broadcast %95 : vector<32x8x1xf32> to vector<32x8x128xf32>
    %98 = arith.subf %96, %97 : vector<32x8x128xf32>
    %99 = vector.broadcast %88 : vector<32x8x1xf32> to vector<32x8x128xf32>
    %100 = arith.mulf %98, %99 : vector<32x8x128xf32>
    %101 = vector.extract_strided_slice %13 {offsets = [0, 4, 0], sizes = [32, 8, 1], strides = [1, 1, 1]} : vector<32x12x1xf32> to vector<32x8x1xf32>
    %102 = vector.broadcast %101 : vector<32x8x1xf32> to vector<32x8x128xf32>
    %103 = vector.broadcast %12 : vector<32x1x128xf32> to vector<32x8x128xf32>
    %104 = arith.subf %102, %103 : vector<32x8x128xf32>
    %105 = vector.broadcast %94 : vector<32x8x1xf32> to vector<32x8x128xf32>
    %106 = arith.mulf %104, %105 : vector<32x8x128xf32>
    %107 = vector.extract_strided_slice %82 {offsets = [0, 0, 0], sizes = [32, 8, 128], strides = [1, 1, 1]} : vector<32x9x128xf32> to vector<32x8x128xf32>
    %108 = arith.mulf %100, %107 : vector<32x8x128xf32>
    %109 = vector.extract_strided_slice %82 {offsets = [0, 1, 0], sizes = [32, 8, 128], strides = [1, 1, 1]} : vector<32x9x128xf32> to vector<32x8x128xf32>
    %110 = arith.mulf %106, %109 : vector<32x8x128xf32>
    %111 = arith.addf %108, %110 : vector<32x8x128xf32>
    %112 = vector.shape_cast %111 : vector<32x8x128xf32> to vector<256x128xf32>
    %c0_14 = arith.constant 0 : index
    %c0_15 = arith.constant 0 : index
    %113 = vector.load %arg4[%c0_14, %c0_15] : memref<64x256xf32, #tpu.memory_space<vmem>>, vector<64x256xf32>
    %cst_16 = arith.constant dense<0.000000e+00> : vector<64x128xf32>
    %114 = tpu.matmul %113, %112, %cst_16 {dimension_numbers = #tpu.dot_dimension_numbers<[1], [0], [0], [1], [0, 0, 1, 1], [], []>} : vector<64x256xf32>, vector<256x128xf32>, vector<64x128xf32> -> vector<64x128xf32>
    %115 = arith.addf %11, %114 : vector<64x128xf32>
    %c0_17 = arith.constant 0 : index
    %c0_18 = arith.constant 0 : index
    %116 = vector.load %arg5[%c0_17, %c0_18] : memref<64x128xf32, #tpu.memory_space<vmem>>, vector<64x128xf32>
    tpu.vector_store %arg5[%c0_17, %c0_18], %115 {strides = array<i32>} : memref<64x128xf32, #tpu.memory_space<vmem>>, vector<64x128xf32>,
    return
  }
  func.func @transform_0(%arg0: i32) -> (i32, i32) {
    %c0_i32 = arith.constant 0 : i32
    %c0_i32_0 = arith.constant 0 : i32
    return %c0_i32, %arg0 : i32, i32
  }
  func.func @transform_1(%arg0: i32) -> (i32, i32) {
    %c0_i32 = arith.constant 0 : i32
    %c0_i32_0 = arith.constant 0 : i32
    %c0_i32_1 = arith.constant 0 : i32
    return %c0_i32, %c0_i32_0 : i32, i32
  }
  func.func @transform_2(%arg0: i32) -> (i32, i32) {
    %c0_i32 = arith.constant 0 : i32
    %c0_i32_0 = arith.constant 0 : i32
    %c0_i32_1 = arith.constant 0 : i32
    return %c0_i32, %c0_i32_0 : i32, i32
  }
  func.func @transform_3(%arg0: i32) -> (i32, i32) {
    %c0_i32 = arith.constant 0 : i32
    %c0_i32_0 = arith.constant 0 : i32
    %c0_i32_1 = arith.constant 0 : i32
    return %c0_i32, %c0_i32_0 : i32, i32
  }
  func.func @transform_4(%arg0: i32) -> (i32, i32) {
    %c0_i32 = arith.constant 0 : i32
    %c0_i32_0 = arith.constant 0 : i32
    return %c0_i32, %arg0 : i32, i32
  }
}

</mosaic_0001>

<llo_original>
// kernel: tpu_custom_call.1
$region0: #{tpu_custom_call.1}
  #allocation0 [shape = 'u32[]', space=smem, size = 0x4, offset = 0x4, fixed_abs, tag = 'smem constant byte address 0x4 - core index']
  #allocation1 [shape = 'u32[144,128]{1,0:T(1,128)}', space=vmem, size = 0x12000, scoped, tag = 'internal scratch']
  %s0 = inlined_call_operand.hbm [shape: f32[32,128], index: 0, kind: input, shape index: {}]
  %s1 = inlined_call_operand.vmem [shape: f32[32,12], index: 1, kind: input, shape index: {}]
  %s2 = inlined_call_operand.vmem [shape: f32[64,32], index: 2, kind: input, shape index: {}]
  %s3 = inlined_call_operand.vmem [shape: f32[64,256], index: 3, kind: input, shape index: {}]
  %s4 = inlined_call_operand.hbm [shape: f32[64,128], index: 4, kind: output, shape index: {}]
  %s5 = sld [smem:[#allocation0]]
  $region30: #{tpu_custom_call.1} parent=0
    _
  %s7 = ssub.s32 1, %s5
  %s8 = scalar_select 0, %s7, %s5
  $region1: #{tpu_custom_call.1} parent=0
    #allocation2 [shape = 'u8[16384]{0}', space=vmem, size = 0x4000, scoped, tag = 'input window, operand 0, single buffered']
    #allocation3 [shape = 's32[1]{0}', space=sflag, size = 0x4, scoped, tag = 'scoped memory for tpu_custom_call.1']
    #allocation4 [shape = 's32[1]{0}', space=sflag, size = 0x4, scoped, tag = 'scoped memory for tpu_custom_call.1']
    #allocation5 [shape = 'u8[32768]{0}', space=vmem, size = 0x8000, scoped, tag = 'output window, operand 0, single buffered']
    %9 = vsyncpa [#allocation3], 0
    %10 = vsyncpa [#allocation4], 0
    // Predicated region
    $region2: #{tpu_custom_call.1} parent=1 // pred_check
      _
    $region3: #{tpu_custom_call.1} parent=1 // pred_check_branch
      %12 = sbr.rel (0) target = $region5
    $region4: #{tpu_custom_call.1} parent=1 // pred_region
      %s14 = ssub.s32 512, 512
      %15 = vsyncadd [#allocation3], %s14
      %s16 = sshll.u32 [#allocation2], 4
      %s17 = int_to_ptr.vmem [resolvable:$true] %s16
      %22 = dma.hbm_to_vmem [thread:$0]  %s0, 512, %s17, [#allocation3], 128, 128, 8
    $region5: #{tpu_custom_call.1} parent=1 // pred_fallthru
      _
    // Predicated region
    $region6: #{tpu_custom_call.1} parent=1 // pred_check
      _
    $region7: #{tpu_custom_call.1} parent=1 // pred_check_branch
      %24 = sbr.rel (0) target = $region9
    $region8: #{tpu_custom_call.1} parent=1 // pred_region
      _
    $region9: #{tpu_custom_call.1} parent=1 // pred_fallthru
      _
    // Predicated region
    $region10: #{tpu_custom_call.1} parent=1 // pred_check
      _
    $region11: #{tpu_custom_call.1} parent=1 // pred_check_branch
      %26 = sbr.rel (0) target = $region13
    $region12: #{tpu_custom_call.1} parent=1 // pred_region
      _
    $region13: #{tpu_custom_call.1} parent=1 // pred_fallthru
      _
    // Predicated region
    $region14: #{tpu_custom_call.1} parent=1 // pred_check
      _
    $region15: #{tpu_custom_call.1} parent=1 // pred_check_branch
      %28 = sbr.rel (0) target = $region17
    $region16: #{tpu_custom_call.1} parent=1 // pred_region
      _
    $region17: #{tpu_custom_call.1} parent=1 // pred_fallthru
      _
    // Predicated region
    $region18: #{tpu_custom_call.1} parent=1 // pred_check
      _
    $region19: #{tpu_custom_call.1} parent=1 // pred_check_branch
      %30 = sbr.rel (0) target = $region21
    $region20: #{tpu_custom_call.1} parent=1 // pred_region
      %31 = dma.done [#allocation3], 512
    $region21: #{tpu_custom_call.1} parent=1 // pred_fallthru
      _
    %v32 = vld [vmem:[#allocation2] sm:$0xff]
    %v33 = vld [vmem:[#allocation2 + $0x8] sm:$0xff]
    %v34 = vld [vmem:[#allocation2 + $0x10] sm:$0xff]
    %v35 = vld [vmem:[#allocation2 + $0x18] sm:$0xff]
    %v36 = vld [vmem:[%s1] sm:$0xff]
    %v37 = vld [vmem:[%s1 + $0x8] sm:$0xff]
    %v38 = vld [vmem:[%s1 + $0x10] sm:$0xff]
    %v39 = vld [vmem:[%s1 + $0x18] sm:$0xff]
    %v40 = vmul.f32 %v32, 0.5
    %v41 = vmul.f32 %v33, 0.5
    %v42 = vmul.f32 %v34, 0.5
    %v43 = vmul.f32 %v35, 0.5
    %v44 = vtanh.pop %v40
    %v45 = vtanh.pop %v41
    %v46 = vtanh.pop %v42
    %v47 = vtanh.pop %v43
    %v48 = vadd.f32 %v44, 1.0
    %v49 = vadd.f32 %v45, 1.0
    %v50 = vadd.f32 %v46, 1.0
    %v51 = vadd.f32 %v47, 1.0
    %v52 = vmul.f32 %v40, %v48
    %v53 = vmul.f32 %v41, %v49
    %v54 = vmul.f32 %v42, %v50
    %v55 = vmul.f32 %v43, %v51
    %v56 = vld [vmem:[%s2] sm:$0xff]
    %v57 = vld [vmem:[%s2 + $0x8] sm:$0xff]
    %v58 = vld [vmem:[%s2 + $0x10] sm:$0xff]
    %v59 = vld [vmem:[%s2 + $0x18] sm:$0xff]
    %v60 = vld [vmem:[%s2 + $0x20] sm:$0xff]
    %v61 = vld [vmem:[%s2 + $0x28] sm:$0xff]
    %v62 = vld [vmem:[%s2 + $0x30] sm:$0xff]
    %v63 = vld [vmem:[%s2 + $0x38] sm:$0xff]
    %v68 = vcombine.high %v32, %v32
    %v70 = vunpack.c.l.s4 1966171168
    %v71 = vunpack.c.0.s8 %v70
    %v72 = vlaneseq
    %v73 = vshrl.u32 %v72, 7
    %v74 = vsub.s32 %v71, %v73
    %v75 = vrot.slane %v32, %v74
    %v77 = vunpack.c.l.s4 1966171168
    %v78 = vunpack.c.0.s8 %v77
    %v79 = vlaneseq
    %v80 = vshrl.u32 %v79, 7
    %v81 = vsub.s32 %v78, %v80
    %v82 = vrot.slane %v68, %v81
    %v83 = vcombine.high %v75, %v75
    %v84 = vcombine.high %v82, %v82
    %v86 = vunpack.c.l.s4 1966171168
    %v87 = vunpack.c.0.s8 %v86
    %v88 = vlaneseq
    %v89 = vshrl.u32 %v88, 7
    %v90 = vsub.s32 %v87, %v89
    %v91 = vrot.slane %v75, %v90
    %v93 = vunpack.c.l.s4 1966171168
    %v94 = vunpack.c.0.s8 %v93
    %v95 = vlaneseq
    %v96 = vshrl.u32 %v95, 7
    %v97 = vsub.s32 %v94, %v96
    %v98 = vrot.slane %v82, %v97
    %v100 = vunpack.c.l.s4 1966171168
    %v101 = vunpack.c.0.s8 %v100
    %v102 = vlaneseq
    %v103 = vshrl.u32 %v102, 7
    %v104 = vsub.s32 %v101, %v103
    %v105 = vrot.slane %v83, %v104
    %v107 = vunpack.c.l.s4 1966171168
    %v108 = vunpack.c.0.s8 %v107
    %v109 = vlaneseq
    %v110 = vshrl.u32 %v109, 7
    %v111 = vsub.s32 %v108, %v110
    %v112 = vrot.slane %v84, %v111
    %v113 = vcombine.high %v91, %v91
    %v114 = vcombine.high %v98, %v98
    %v115 = vcombine.high %v105, %v105
    %v116 = vcombine.high %v112, %v112
    %v117 = vcombine.high %v33, %v33
    %v119 = vunpack.c.l.s4 1966171168
    %v120 = vunpack.c.0.s8 %v119
    %v121 = vlaneseq
    %v122 = vshrl.u32 %v121, 7
    %v123 = vsub.s32 %v120, %v122
    %v124 = vrot.slane %v33, %v123
    %v126 = vunpack.c.l.s4 1966171168
    %v127 = vunpack.c.0.s8 %v126
    %v128 = vlaneseq
    %v129 = vshrl.u32 %v128, 7
    %v130 = vsub.s32 %v127, %v129
    %v131 = vrot.slane %v117, %v130
    %v132 = vcombine.high %v124, %v124
    %v133 = vcombine.high %v131, %v131
    %v135 = vunpack.c.l.s4 1966171168
    %v136 = vunpack.c.0.s8 %v135
    %v137 = vlaneseq
    %v138 = vshrl.u32 %v137, 7
    %v139 = vsub.s32 %v136, %v138
    %v140 = vrot.slane %v124, %v139
    %v142 = vunpack.c.l.s4 1966171168
    %v143 = vunpack.c.0.s8 %v142
    %v144 = vlaneseq
    %v145 = vshrl.u32 %v144, 7
    %v146 = vsub.s32 %v143, %v145
    %v147 = vrot.slane %v131, %v146
    %v149 = vunpack.c.l.s4 1966171168
    %v150 = vunpack.c.0.s8 %v149
    %v151 = vlaneseq
    %v152 = vshrl.u32 %v151, 7
    %v153 = vsub.s32 %v150, %v152
    %v154 = vrot.slane %v132, %v153
    %v156 = vunpack.c.l.s4 1966171168
    %v157 = vunpack.c.0.s8 %v156
    %v158 = vlaneseq
    %v159 = vshrl.u32 %v158, 7
    %v160 = vsub.s32 %v157, %v159
    %v161 = vrot.slane %v133, %v160
    %v162 = vcombine.high %v140, %v140
    %v163 = vcombine.high %v147, %v147
    %v164 = vcombine.high %v154, %v154
    %v165 = vcombine.high %v161, %v161
    %v166 = vcombine.high %v34, %v34
    %v168 = vunpack.c.l.s4 1966171168
    %v169 = vunpack.c.0.s8 %v168
    %v170 = vlaneseq
    %v171 = vshrl.u32 %v170, 7
    %v172 = vsub.s32 %v169, %v171
    %v173 = vrot.slane %v34, %v172
    %v175 = vunpack.c.l.s4 1966171168
    %v176 = vunpack.c.0.s8 %v175
    %v177 = vlaneseq
    %v178 = vshrl.u32 %v177, 7
    %v179 = vsub.s32 %v176, %v178
    %v180 = vrot.slane %v166, %v179
    %v181 = vcombine.high %v173, %v173
    %v182 = vcombine.high %v180, %v180
    %v184 = vunpack.c.l.s4 1966171168
    %v185 = vunpack.c.0.s8 %v184
    %v186 = vlaneseq
    %v187 = vshrl.u32 %v186, 7
    %v188 = vsub.s32 %v185, %v187
    %v189 = vrot.slane %v173, %v188
    %v191 = vunpack.c.l.s4 1966171168
    %v192 = vunpack.c.0.s8 %v191
    %v193 = vlaneseq
    %v194 = vshrl.u32 %v193, 7
    %v195 = vsub.s32 %v192, %v194
    %v196 = vrot.slane %v180, %v195
    %v198 = vunpack.c.l.s4 1966171168
    %v199 = vunpack.c.0.s8 %v198
    %v200 = vlaneseq
    %v201 = vshrl.u32 %v200, 7
    %v202 = vsub.s32 %v199, %v201
    %v203 = vrot.slane %v181, %v202
    %v205 = vunpack.c.l.s4 1966171168
    %v206 = vunpack.c.0.s8 %v205
    %v207 = vlaneseq
    %v208 = vshrl.u32 %v207, 7
    %v209 = vsub.s32 %v206, %v208
    %v210 = vrot.slane %v182, %v209
    %v211 = vcombine.high %v189, %v189
    %v212 = vcombine.high %v196, %v196
    %v213 = vcombine.high %v203, %v203
    %v214 = vcombine.high %v210, %v210
    %v215 = vcombine.high %v35, %v35
    %v217 = vunpack.c.l.s4 1966171168
    %v218 = vunpack.c.0.s8 %v217
    %v219 = vlaneseq
    %v220 = vshrl.u32 %v219, 7
    %v221 = vsub.s32 %v218, %v220
    %v222 = vrot.slane %v35, %v221
    %v224 = vunpack.c.l.s4 1966171168
    %v225 = vunpack.c.0.s8 %v224
    %v226 = vlaneseq
    %v227 = vshrl.u32 %v226, 7
    %v228 = vsub.s32 %v225, %v227
    %v229 = vrot.slane %v215, %v228
    %v230 = vcombine.high %v222, %v222
    %v231 = vcombine.high %v229, %v229
    %v233 = vunpack.c.l.s4 1966171168
    %v234 = vunpack.c.0.s8 %v233
    %v235 = vlaneseq
    %v236 = vshrl.u32 %v235, 7
    %v237 = vsub.s32 %v234, %v236
    %v238 = vrot.slane %v222, %v237
    %v240 = vunpack.c.l.s4 1966171168
    %v241 = vunpack.c.0.s8 %v240
    %v242 = vlaneseq
    %v243 = vshrl.u32 %v242, 7
    %v244 = vsub.s32 %v241, %v243
    %v245 = vrot.slane %v229, %v244
    %v247 = vunpack.c.l.s4 1966171168
    %v248 = vunpack.c.0.s8 %v247
    %v249 = vlaneseq
    %v250 = vshrl.u32 %v249, 7
    %v251 = vsub.s32 %v248, %v250
    %v252 = vrot.slane %v230, %v251
    %v254 = vunpack.c.l.s4 1966171168
    %v255 = vunpack.c.0.s8 %v254
    %v256 = vlaneseq
    %v257 = vshrl.u32 %v256, 7
    %v258 = vsub.s32 %v255, %v257
    %v259 = vrot.slane %v231, %v258
    %v260 = vcombine.high %v238, %v238
    %v261 = vcombine.high %v245, %v245
    %v262 = vcombine.high %v252, %v252
    %v263 = vcombine.high %v259, %v259
    %v264 = vlaneseq
    %v265 = vshrl.u32 %v264, 7
    %v266 = vsub.s32 0, %v265
    %v267 = vrot.slane %v36, %v266
    %269 = vbcast.lane.b32.xlu0 %v267, 256
    %v270 = vpop.permute.xlu0 %269
    %s272 = sor.u32 256, 8
    %273 = vbcast.lane.b32.xlu0 %v267, %s272
    %v274 = vpop.permute.xlu0 %273
    %v275 = vlaneseq
    %v276 = vshrl.u32 %v275, 7
    %v277 = vsub.s32 1, %v276
    %v278 = vrot.slane %v36, %v277
    %280 = vbcast.lane.b32.xlu0 %v278, 256
    %v281 = vpop.permute.xlu0 %280
    %s283 = sor.u32 256, 8
    %284 = vbcast.lane.b32.xlu0 %v278, %s283
    %v285 = vpop.permute.xlu0 %284
    %v286 = vlaneseq
    %v287 = vshrl.u32 %v286, 7
    %v288 = vsub.s32 2, %v287
    %v289 = vrot.slane %v36, %v288
    %291 = vbcast.lane.b32.xlu0 %v289, 256
    %v292 = vpop.permute.xlu0 %291
    %s294 = sor.u32 256, 8
    %295 = vbcast.lane.b32.xlu0 %v289, %s294
    %v296 = vpop.permute.xlu0 %295
    %v297 = vlaneseq
    %v298 = vshrl.u32 %v297, 7
    %v299 = vsub.s32 3, %v298
    %v300 = vrot.slane %v36, %v299
    %302 = vbcast.lane.b32.xlu0 %v300, 256
    %v303 = vpop.permute.xlu0 %302
    %s305 = sor.u32 256, 8
    %306 = vbcast.lane.b32.xlu0 %v300, %s305
    %v307 = vpop.permute.xlu0 %306
    %v308 = vlaneseq
    %v309 = vshrl.u32 %v308, 7
    %v310 = vsub.s32 4, %v309
    %v311 = vrot.slane %v36, %v310
    %313 = vbcast.lane.b32.xlu0 %v311, 256
    %v314 = vpop.permute.xlu0 %313
    %s316 = sor.u32 256, 8
    %317 = vbcast.lane.b32.xlu0 %v311, %s316
    %v318 = vpop.permute.xlu0 %317
    %v319 = vlaneseq
    %v320 = vshrl.u32 %v319, 7
    %v321 = vsub.s32 5, %v320
    %v322 = vrot.slane %v36, %v321
    %324 = vbcast.lane.b32.xlu0 %v322, 256
    %v325 = vpop.permute.xlu0 %324
    %s327 = sor.u32 256, 8
    %328 = vbcast.lane.b32.xlu0 %v322, %s327
    %v329 = vpop.permute.xlu0 %328
    %v330 = vlaneseq
    %v331 = vshrl.u32 %v330, 7
    %v332 = vsub.s32 6, %v331
    %v333 = vrot.slane %v36, %v332
    %335 = vbcast.lane.b32.xlu0 %v333, 256
    %v336 = vpop.permute.xlu0 %335
    %s338 = sor.u32 256, 8
    %339 = vbcast.lane.b32.xlu0 %v333, %s338
    %v340 = vpop.permute.xlu0 %339
    %v341 = vlaneseq
    %v342 = vshrl.u32 %v341, 7
    %v343 = vsub.s32 7, %v342
    %v344 = vrot.slane %v36, %v343
    %346 = vbcast.lane.b32.xlu0 %v344, 256
    %v347 = vpop.permute.xlu0 %346
    %s349 = sor.u32 256, 8
    %350 = vbcast.lane.b32.xlu0 %v344, %s349
    %v351 = vpop.permute.xlu0 %350
    %v352 = vlaneseq
    %v353 = vshrl.u32 %v352, 7
    %v354 = vsub.s32 0, %v353
    %v355 = vrot.slane %v37, %v354
    %357 = vbcast.lane.b32.xlu0 %v355, 256
    %v358 = vpop.permute.xlu0 %357
    %s360 = sor.u32 256, 8
    %361 = vbcast.lane.b32.xlu0 %v355, %s360
    %v362 = vpop.permute.xlu0 %361
    %v363 = vlaneseq
    %v364 = vshrl.u32 %v363, 7
    %v365 = vsub.s32 1, %v364
    %v366 = vrot.slane %v37, %v365
    %368 = vbcast.lane.b32.xlu0 %v366, 256
    %v369 = vpop.permute.xlu0 %368
    %s371 = sor.u32 256, 8
    %372 = vbcast.lane.b32.xlu0 %v366, %s371
    %v373 = vpop.permute.xlu0 %372
    %v374 = vlaneseq
    %v375 = vshrl.u32 %v374, 7
    %v376 = vsub.s32 2, %v375
    %v377 = vrot.slane %v37, %v376
    %379 = vbcast.lane.b32.xlu0 %v377, 256
    %v380 = vpop.permute.xlu0 %379
    %s382 = sor.u32 256, 8
    %383 = vbcast.lane.b32.xlu0 %v377, %s382
    %v384 = vpop.permute.xlu0 %383
    %v385 = vlaneseq
    %v386 = vshrl.u32 %v385, 7
    %v387 = vsub.s32 3, %v386
    %v388 = vrot.slane %v37, %v387
    %390 = vbcast.lane.b32.xlu0 %v388, 256
    %v391 = vpop.permute.xlu0 %390
    %s393 = sor.u32 256, 8
    %394 = vbcast.lane.b32.xlu0 %v388, %s393
    %v395 = vpop.permute.xlu0 %394
    %v396 = vlaneseq
    %v397 = vshrl.u32 %v396, 7
    %v398 = vsub.s32 4, %v397
    %v399 = vrot.slane %v37, %v398
    %401 = vbcast.lane.b32.xlu0 %v399, 256
    %v402 = vpop.permute.xlu0 %401
    %s404 = sor.u32 256, 8
    %405 = vbcast.lane.b32.xlu0 %v399, %s404
    %v406 = vpop.permute.xlu0 %405
    %v407 = vlaneseq
    %v408 = vshrl.u32 %v407, 7
    %v409 = vsub.s32 5, %v408
    %v410 = vrot.slane %v37, %v409
    %412 = vbcast.lane.b32.xlu0 %v410, 256
    %v413 = vpop.permute.xlu0 %412
    %s415 = sor.u32 256, 8
    %416 = vbcast.lane.b32.xlu0 %v410, %s415
    %v417 = vpop.permute.xlu0 %416
    %v418 = vlaneseq
    %v419 = vshrl.u32 %v418, 7
    %v420 = vsub.s32 6, %v419
    %v421 = vrot.slane %v37, %v420
    %423 = vbcast.lane.b32.xlu0 %v421, 256
    %v424 = vpop.permute.xlu0 %423
    %s426 = sor.u32 256, 8
    %427 = vbcast.lane.b32.xlu0 %v421, %s426
    %v428 = vpop.permute.xlu0 %427
    %v429 = vlaneseq
    %v430 = vshrl.u32 %v429, 7
    %v431 = vsub.s32 7, %v430
    %v432 = vrot.slane %v37, %v431
    %434 = vbcast.lane.b32.xlu0 %v432, 256
    %v435 = vpop.permute.xlu0 %434
    %s437 = sor.u32 256, 8
    %438 = vbcast.lane.b32.xlu0 %v432, %s437
    %v439 = vpop.permute.xlu0 %438
    %v440 = vlaneseq
    %v441 = vshrl.u32 %v440, 7
    %v442 = vsub.s32 0, %v441
    %v443 = vrot.slane %v38, %v442
    %445 = vbcast.lane.b32.xlu0 %v443, 256
    %v446 = vpop.permute.xlu0 %445
    %s448 = sor.u32 256, 8
    %449 = vbcast.lane.b32.xlu0 %v443, %s448
    %v450 = vpop.permute.xlu0 %449
    %v451 = vlaneseq
    %v452 = vshrl.u32 %v451, 7
    %v453 = vsub.s32 1, %v452
    %v454 = vrot.slane %v38, %v453
    %456 = vbcast.lane.b32.xlu0 %v454, 256
    %v457 = vpop.permute.xlu0 %456
    %s459 = sor.u32 256, 8
    %460 = vbcast.lane.b32.xlu0 %v454, %s459
    %v461 = vpop.permute.xlu0 %460
    %v462 = vlaneseq
    %v463 = vshrl.u32 %v462, 7
    %v464 = vsub.s32 2, %v463
    %v465 = vrot.slane %v38, %v464
    %467 = vbcast.lane.b32.xlu0 %v465, 256
    %v468 = vpop.permute.xlu0 %467
    %s470 = sor.u32 256, 8
    %471 = vbcast.lane.b32.xlu0 %v465, %s470
    %v472 = vpop.permute.xlu0 %471
    %v473 = vlaneseq
    %v474 = vshrl.u32 %v473, 7
    %v475 = vsub.s32 3, %v474
    %v476 = vrot.slane %v38, %v475
    %478 = vbcast.lane.b32.xlu0 %v476, 256
    %v479 = vpop.permute.xlu0 %478
    %s481 = sor.u32 256, 8
    %482 = vbcast.lane.b32.xlu0 %v476, %s481
    %v483 = vpop.permute.xlu0 %482
    %v484 = vlaneseq
    %v485 = vshrl.u32 %v484, 7
    %v486 = vsub.s32 4, %v485
    %v487 = vrot.slane %v38, %v486
    %489 = vbcast.lane.b32.xlu0 %v487, 256
    %v490 = vpop.permute.xlu0 %489
    %s492 = sor.u32 256, 8
    %493 = vbcast.lane.b32.xlu0 %v487, %s492
    %v494 = vpop.permute.xlu0 %493
    %v495 = vlaneseq
    %v496 = vshrl.u32 %v495, 7
    %v497 = vsub.s32 5, %v496
    %v498 = vrot.slane %v38, %v497
    %500 = vbcast.lane.b32.xlu0 %v498, 256
    %v501 = vpop.permute.xlu0 %500
    %s503 = sor.u32 256, 8
    %504 = vbcast.lane.b32.xlu0 %v498, %s503
    %v505 = vpop.permute.xlu0 %504
    %v506 = vlaneseq
    %v507 = vshrl.u32 %v506, 7
    %v508 = vsub.s32 6, %v507
    %v509 = vrot.slane %v38, %v508
    %511 = vbcast.lane.b32.xlu0 %v509, 256
    %v512 = vpop.permute.xlu0 %511
    %s514 = sor.u32 256, 8
    %515 = vbcast.lane.b32.xlu0 %v509, %s514
    %v516 = vpop.permute.xlu0 %515
    %v517 = vlaneseq
    %v518 = vshrl.u32 %v517, 7
    %v519 = vsub.s32 7, %v518
    %v520 = vrot.slane %v38, %v519
    %522 = vbcast.lane.b32.xlu0 %v520, 256
    %v523 = vpop.permute.xlu0 %522
    %s525 = sor.u32 256, 8
    %526 = vbcast.lane.b32.xlu0 %v520, %s525
    %v527 = vpop.permute.xlu0 %526
    %v528 = vlaneseq
    %v529 = vshrl.u32 %v528, 7
    %v530 = vsub.s32 0, %v529
    %v531 = vrot.slane %v39, %v530
    %533 = vbcast.lane.b32.xlu0 %v531, 256
    %v534 = vpop.permute.xlu0 %533
    %s536 = sor.u32 256, 8
    %537 = vbcast.lane.b32.xlu0 %v531, %s536
    %v538 = vpop.permute.xlu0 %537
    %v539 = vlaneseq
    %v540 = vshrl.u32 %v539, 7
    %v541 = vsub.s32 1, %v540
    %v542 = vrot.slane %v39, %v541
    %544 = vbcast.lane.b32.xlu0 %v542, 256
    %v545 = vpop.permute.xlu0 %544
    %s547 = sor.u32 256, 8
    %548 = vbcast.lane.b32.xlu0 %v542, %s547
    %v549 = vpop.permute.xlu0 %548
    %v550 = vlaneseq
    %v551 = vshrl.u32 %v550, 7
    %v552 = vsub.s32 2, %v551
    %v553 = vrot.slane %v39, %v552
    %555 = vbcast.lane.b32.xlu0 %v553, 256
    %v556 = vpop.permute.xlu0 %555
    %s558 = sor.u32 256, 8
    %559 = vbcast.lane.b32.xlu0 %v553, %s558
    %v560 = vpop.permute.xlu0 %559
    %v561 = vlaneseq
    %v562 = vshrl.u32 %v561, 7
    %v563 = vsub.s32 3, %v562
    %v564 = vrot.slane %v39, %v563
    %566 = vbcast.lane.b32.xlu0 %v564, 256
    %v567 = vpop.permute.xlu0 %566
    %s569 = sor.u32 256, 8
    %570 = vbcast.lane.b32.xlu0 %v564, %s569
    %v571 = vpop.permute.xlu0 %570
    %v572 = vlaneseq
    %v573 = vshrl.u32 %v572, 7
    %v574 = vsub.s32 4, %v573
    %v575 = vrot.slane %v39, %v574
    %577 = vbcast.lane.b32.xlu0 %v575, 256
    %v578 = vpop.permute.xlu0 %577
    %s580 = sor.u32 256, 8
    %581 = vbcast.lane.b32.xlu0 %v575, %s580
    %v582 = vpop.permute.xlu0 %581
    %v583 = vlaneseq
    %v584 = vshrl.u32 %v583, 7
    %v585 = vsub.s32 5, %v584
    %v586 = vrot.slane %v39, %v585
    %588 = vbcast.lane.b32.xlu0 %v586, 256
    %v589 = vpop.permute.xlu0 %588
    %s591 = sor.u32 256, 8
    %592 = vbcast.lane.b32.xlu0 %v586, %s591
    %v593 = vpop.permute.xlu0 %592
    %v594 = vlaneseq
    %v595 = vshrl.u32 %v594, 7
    %v596 = vsub.s32 6, %v595
    %v597 = vrot.slane %v39, %v596
    %599 = vbcast.lane.b32.xlu0 %v597, 256
    %v600 = vpop.permute.xlu0 %599
    %s602 = sor.u32 256, 8
    %603 = vbcast.lane.b32.xlu0 %v597, %s602
    %v604 = vpop.permute.xlu0 %603
    %v605 = vlaneseq
    %v606 = vshrl.u32 %v605, 7
    %v607 = vsub.s32 7, %v606
    %v608 = vrot.slane %v39, %v607
    %610 = vbcast.lane.b32.xlu0 %v608, 256
    %v611 = vpop.permute.xlu0 %610
    %s613 = sor.u32 256, 8
    %614 = vbcast.lane.b32.xlu0 %v608, %s613
    %v615 = vpop.permute.xlu0 %614
    %v616 = vlaneseq
    %v617 = vshrl.u32 %v616, 7
    %v618 = vsub.s32 0, %v617
    %v619 = vrot.slane %v91, %v618
    %v620 = vlaneseq
    %v621 = vshrl.u32 %v620, 7
    %v622 = vsub.s32 0, %v621
    %v623 = vrot.slane %v105, %v622
    %v624 = vlaneseq
    %v625 = vshrl.u32 %v624, 7
    %v626 = vsub.s32 0, %v625
    %v627 = vrot.slane %v113, %v626
    %v628 = vlaneseq
    %v629 = vshrl.u32 %v628, 7
    %v630 = vsub.s32 0, %v629
    %v631 = vrot.slane %v115, %v630
    %v632 = vlaneseq
    %v633 = vshrl.u32 %v632, 7
    %v634 = vsub.s32 0, %v633
    %v635 = vrot.slane %v98, %v634
    %v636 = vlaneseq
    %v637 = vshrl.u32 %v636, 7
    %v638 = vsub.s32 0, %v637
    %v639 = vrot.slane %v112, %v638
    %v640 = vlaneseq
    %v641 = vshrl.u32 %v640, 7
    %v642 = vsub.s32 0, %v641
    %v643 = vrot.slane %v114, %v642
    %v644 = vlaneseq
    %v645 = vshrl.u32 %v644, 7
    %v646 = vsub.s32 0, %v645
    %v647 = vrot.slane %v116, %v646
    %v648 = vlaneseq
    %v649 = vshrl.u32 %v648, 7
    %v650 = vsub.s32 0, %v649
    %v651 = vrot.slane %v140, %v650
    %v652 = vlaneseq
    %v653 = vshrl.u32 %v652, 7
    %v654 = vsub.s32 0, %v653
    %v655 = vrot.slane %v154, %v654
    %v656 = vlaneseq
    %v657 = vshrl.u32 %v656, 7
    %v658 = vsub.s32 0, %v657
    %v659 = vrot.slane %v162, %v658
    %v660 = vlaneseq
    %v661 = vshrl.u32 %v660, 7
    %v662 = vsub.s32 0, %v661
    %v663 = vrot.slane %v164, %v662
    %v664 = vlaneseq
    %v665 = vshrl.u32 %v664, 7
    %v666 = vsub.s32 0, %v665
    %v667 = vrot.slane %v147, %v666
    %v668 = vlaneseq
    %v669 = vshrl.u32 %v668, 7
    %v670 = vsub.s32 0, %v669
    %v671 = vrot.slane %v161, %v670
    %v672 = vlaneseq
    %v673 = vshrl.u32 %v672, 7
    %v674 = vsub.s32 0, %v673
    %v675 = vrot.slane %v163, %v674
    %v676 = vlaneseq
    %v677 = vshrl.u32 %v676, 7
    %v678 = vsub.s32 0, %v677
    %v679 = vrot.slane %v165, %v678
    %v680 = vlaneseq
    %v681 = vshrl.u32 %v680, 7
    %v682 = vsub.s32 0, %v681
    %v683 = vrot.slane %v189, %v682
    %v684 = vlaneseq
    %v685 = vshrl.u32 %v684, 7
    %v686 = vsub.s32 0, %v685
    %v687 = vrot.slane %v203, %v686
    %v688 = vlaneseq
    %v689 = vshrl.u32 %v688, 7
    %v690 = vsub.s32 0, %v689
    %v691 = vrot.slane %v211, %v690
    %v692 = vlaneseq
    %v693 = vshrl.u32 %v692, 7
    %v694 = vsub.s32 0, %v693
    %v695 = vrot.slane %v213, %v694
    %v696 = vlaneseq
    %v697 = vshrl.u32 %v696, 7
    %v698 = vsub.s32 0, %v697
    %v699 = vrot.slane %v196, %v698
    %v700 = vlaneseq
    %v701 = vshrl.u32 %v700, 7
    %v702 = vsub.s32 0, %v701
    %v703 = vrot.slane %v210, %v702
    %v704 = vlaneseq
    %v705 = vshrl.u32 %v704, 7
    %v706 = vsub.s32 0, %v705
    %v707 = vrot.slane %v212, %v706
    %v708 = vlaneseq
    %v709 = vshrl.u32 %v708, 7
    %v710 = vsub.s32 0, %v709
    %v711 = vrot.slane %v214, %v710
    %v712 = vlaneseq
    %v713 = vshrl.u32 %v712, 7
    %v714 = vsub.s32 0, %v713
    %v715 = vrot.slane %v238, %v714
    %v716 = vlaneseq
    %v717 = vshrl.u32 %v716, 7
    %v718 = vsub.s32 0, %v717
    %v719 = vrot.slane %v252, %v718
    %v720 = vlaneseq
    %v721 = vshrl.u32 %v720, 7
    %v722 = vsub.s32 0, %v721
    %v723 = vrot.slane %v260, %v722
    %v724 = vlaneseq
    %v725 = vshrl.u32 %v724, 7
    %v726 = vsub.s32 0, %v725
    %v727 = vrot.slane %v262, %v726
    %v728 = vlaneseq
    %v729 = vshrl.u32 %v728, 7
    %v730 = vsub.s32 0, %v729
    %v731 = vrot.slane %v245, %v730
    %v732 = vlaneseq
    %v733 = vshrl.u32 %v732, 7
    %v734 = vsub.s32 0, %v733
    %v735 = vrot.slane %v259, %v734
    %v736 = vlaneseq
    %v737 = vshrl.u32 %v736, 7
    %v738 = vsub.s32 0, %v737
    %v739 = vrot.slane %v261, %v738
    %v740 = vlaneseq
    %v741 = vshrl.u32 %v740, 7
    %v742 = vsub.s32 0, %v741
    %v743 = vrot.slane %v263, %v742
    %vm776 = vcmp.ge.f32.partialorder %v619, %v270
    %vm777 = vcmp.ge.f32.partialorder %v619, %v274
    %vm778 = vcmp.ge.f32.partialorder %v623, %v281
    %vm779 = vcmp.ge.f32.partialorder %v623, %v285
    %vm780 = vcmp.ge.f32.partialorder %v627, %v292
    %vm781 = vcmp.ge.f32.partialorder %v627, %v296
    %vm782 = vcmp.ge.f32.partialorder %v631, %v303
    %vm783 = vcmp.ge.f32.partialorder %v631, %v307
    %vm784 = vcmp.ge.f32.partialorder %v635, %v314
    %vm785 = vcmp.ge.f32.partialorder %v635, %v318
    %vm786 = vcmp.ge.f32.partialorder %v639, %v325
    %vm787 = vcmp.ge.f32.partialorder %v639, %v329
    %vm788 = vcmp.ge.f32.partialorder %v643, %v336
    %vm789 = vcmp.ge.f32.partialorder %v643, %v340
    %vm790 = vcmp.ge.f32.partialorder %v647, %v347
    %vm791 = vcmp.ge.f32.partialorder %v647, %v351
    %vm792 = vcmp.ge.f32.partialorder %v651, %v358
    %vm793 = vcmp.ge.f32.partialorder %v651, %v362
    %vm794 = vcmp.ge.f32.partialorder %v655, %v369
    %vm795 = vcmp.ge.f32.partialorder %v655, %v373
    %vm796 = vcmp.ge.f32.partialorder %v659, %v380
    %vm797 = vcmp.ge.f32.partialorder %v659, %v384
    %vm798 = vcmp.ge.f32.partialorder %v663, %v391
    %vm799 = vcmp.ge.f32.partialorder %v663, %v395
    %vm800 = vcmp.ge.f32.partialorder %v667, %v402
    %vm801 = vcmp.ge.f32.partialorder %v667, %v406
    %vm802 = vcmp.ge.f32.partialorder %v671, %v413
    %vm803 = vcmp.ge.f32.partialorder %v671, %v417
    %vm804 = vcmp.ge.f32.partialorder %v675, %v424
    %vm805 = vcmp.ge.f32.partialorder %v675, %v428
    %vm806 = vcmp.ge.f32.partialorder %v679, %v435
    %vm807 = vcmp.ge.f32.partialorder %v679, %v439
    %vm808 = vcmp.ge.f32.partialorder %v683, %v446
    %vm809 = vcmp.ge.f32.partialorder %v683, %v450
    %vm810 = vcmp.ge.f32.partialorder %v687, %v457
    %vm811 = vcmp.ge.f32.partialorder %v687, %v461
    %vm812 = vcmp.ge.f32.partialorder %v691, %v468
    %vm813 = vcmp.ge.f32.partialorder %v691, %v472
    %vm814 = vcmp.ge.f32.partialorder %v695, %v479
    %vm815 = vcmp.ge.f32.partialorder %v695, %v483
    %vm816 = vcmp.ge.f32.partialorder %v699, %v490
    %vm817 = vcmp.ge.f32.partialorder %v699, %v494
    %vm818 = vcmp.ge.f32.partialorder %v703, %v501
    %vm819 = vcmp.ge.f32.partialorder %v703, %v505
    %vm820 = vcmp.ge.f32.partialorder %v707, %v512
    %vm821 = vcmp.ge.f32.partialorder %v707, %v516
    %vm822 = vcmp.ge.f32.partialorder %v711, %v523
    %vm823 = vcmp.ge.f32.partialorder %v711, %v527
    %vm824 = vcmp.ge.f32.partialorder %v715, %v534
    %vm825 = vcmp.ge.f32.partialorder %v715, %v538
    %vm826 = vcmp.ge.f32.partialorder %v719, %v545
    %vm827 = vcmp.ge.f32.partialorder %v719, %v549
    %vm828 = vcmp.ge.f32.partialorder %v723, %v556
    %vm829 = vcmp.ge.f32.partialorder %v723, %v560
    %vm830 = vcmp.ge.f32.partialorder %v727, %v567
    %vm831 = vcmp.ge.f32.partialorder %v727, %v571
    %vm832 = vcmp.ge.f32.partialorder %v731, %v578
    %vm833 = vcmp.ge.f32.partialorder %v731, %v582
    %vm834 = vcmp.ge.f32.partialorder %v735, %v589
    %vm835 = vcmp.ge.f32.partialorder %v735, %v593
    %vm836 = vcmp.ge.f32.partialorder %v739, %v600
    %vm837 = vcmp.ge.f32.partialorder %v739, %v604
    %vm838 = vcmp.ge.f32.partialorder %v743, %v611
    %vm839 = vcmp.ge.f32.partialorder %v743, %v615
    %vm840 = vcmp.lt.f32.partialorder %v619, %v270
    %vm841 = vcmp.lt.f32.partialorder %v619, %v274
    %vm842 = vcmp.lt.f32.partialorder %v623, %v281
    %vm843 = vcmp.lt.f32.partialorder %v623, %v285
    %vm844 = vcmp.lt.f32.partialorder %v627, %v292
    %vm845 = vcmp.lt.f32.partialorder %v627, %v296
    %vm846 = vcmp.lt.f32.partialorder %v631, %v303
    %vm847 = vcmp.lt.f32.partialorder %v631, %v307
    %vm848 = vcmp.lt.f32.partialorder %v635, %v314
    %vm849 = vcmp.lt.f32.partialorder %v635, %v318
    %vm850 = vcmp.lt.f32.partialorder %v639, %v325
    %vm851 = vcmp.lt.f32.partialorder %v639, %v329
    %vm852 = vcmp.lt.f32.partialorder %v643, %v336
    %vm853 = vcmp.lt.f32.partialorder %v643, %v340
    %vm854 = vcmp.lt.f32.partialorder %v647, %v347
    %vm855 = vcmp.lt.f32.partialorder %v647, %v351
    %vm856 = vcmp.lt.f32.partialorder %v651, %v358
    %vm857 = vcmp.lt.f32.partialorder %v651, %v362
    %vm858 = vcmp.lt.f32.partialorder %v655, %v369
    %vm859 = vcmp.lt.f32.partialorder %v655, %v373
    %vm860 = vcmp.lt.f32.partialorder %v659, %v380
    %vm861 = vcmp.lt.f32.partialorder %v659, %v384
    %vm862 = vcmp.lt.f32.partialorder %v663, %v391
    %vm863 = vcmp.lt.f32.partialorder %v663, %v395
    %vm864 = vcmp.lt.f32.partialorder %v667, %v402
    %vm865 = vcmp.lt.f32.partialorder %v667, %v406
    %vm866 = vcmp.lt.f32.partialorder %v671, %v413
    %vm867 = vcmp.lt.f32.partialorder %v671, %v417
    %vm868 = vcmp.lt.f32.partialorder %v675, %v424
    %vm869 = vcmp.lt.f32.partialorder %v675, %v428
    %vm870 = vcmp.lt.f32.partialorder %v679, %v435
    %vm871 = vcmp.lt.f32.partialorder %v679, %v439
    %vm872 = vcmp.lt.f32.partialorder %v683, %v446
    %vm873 = vcmp.lt.f32.partialorder %v683, %v450
    %vm874 = vcmp.lt.f32.partialorder %v687, %v457
    %vm875 = vcmp.lt.f32.partialorder %v687, %v461
    %vm876 = vcmp.lt.f32.partialorder %v691, %v468
    %vm877 = vcmp.lt.f32.partialorder %v691, %v472
    %vm878 = vcmp.lt.f32.partialorder %v695, %v479
    %vm879 = vcmp.lt.f32.partialorder %v695, %v483
    %vm880 = vcmp.lt.f32.partialorder %v699, %v490
    %vm881 = vcmp.lt.f32.partialorder %v699, %v494
    %vm882 = vcmp.lt.f32.partialorder %v703, %v501
    %vm883 = vcmp.lt.f32.partialorder %v703, %v505
    %vm884 = vcmp.lt.f32.partialorder %v707, %v512
    %vm885 = vcmp.lt.f32.partialorder %v707, %v516
    %vm886 = vcmp.lt.f32.partialorder %v711, %v523
    %vm887 = vcmp.lt.f32.partialorder %v711, %v527
    %vm888 = vcmp.lt.f32.partialorder %v715, %v534
    %vm889 = vcmp.lt.f32.partialorder %v715, %v538
    %vm890 = vcmp.lt.f32.partialorder %v719, %v545
    %vm891 = vcmp.lt.f32.partialorder %v719, %v549
    %vm892 = vcmp.lt.f32.partialorder %v723, %v556
    %vm893 = vcmp.lt.f32.partialorder %v723, %v560
    %vm894 = vcmp.lt.f32.partialorder %v727, %v567
    %vm895 = vcmp.lt.f32.partialorder %v727, %v571
    %vm896 = vcmp.lt.f32.partialorder %v731, %v578
    %vm897 = vcmp.lt.f32.partialorder %v731, %v582
    %vm898 = vcmp.lt.f32.partialorder %v735, %v589
    %vm899 = vcmp.lt.f32.partialorder %v735, %v593
    %vm900 = vcmp.lt.f32.partialorder %v739, %v600
    %vm901 = vcmp.lt.f32.partialorder %v739, %v604
    %vm902 = vcmp.lt.f32.partialorder %v743, %v611
    %vm903 = vcmp.lt.f32.partialorder %v743, %v615
    %v904 = vsel %vm840, 1, 0
    %v905 = vsel %vm841, 1, 0
    %v906 = vsel %vm842, 1, 0
    %v907 = vsel %vm843, 1, 0
    %v908 = vsel %vm844, 1, 0
    %v909 = vsel %vm845, 1, 0
    %v910 = vsel %vm846, 1, 0
    %v911 = vsel %vm847, 1, 0
    %v912 = vsel %vm848, 1, 0
    %v913 = vsel %vm849, 1, 0
    %v914 = vsel %vm850, 1, 0
    %v915 = vsel %vm851, 1, 0
    %v916 = vsel %vm852, 1, 0
    %v917 = vsel %vm853, 1, 0
    %v918 = vsel %vm854, 1, 0
    %v919 = vsel %vm855, 1, 0
    %v920 = vsel %vm856, 1, 0
    %v921 = vsel %vm857, 1, 0
    %v922 = vsel %vm858, 1, 0
    %v923 = vsel %vm859, 1, 0
    %v924 = vsel %vm860, 1, 0
    %v925 = vsel %vm861, 1, 0
    %v926 = vsel %vm862, 1, 0
    %v927 = vsel %vm863, 1, 0
    %v928 = vsel %vm864, 1, 0
    %v929 = vsel %vm865, 1, 0
    %v930 = vsel %vm866, 1, 0
    %v931 = vsel %vm867, 1, 0
    %v932 = vsel %vm868, 1, 0
    %v933 = vsel %vm869, 1, 0
    %v934 = vsel %vm870, 1, 0
    %v935 = vsel %vm871, 1, 0
    %v936 = vsel %vm872, 1, 0
    %v937 = vsel %vm873, 1, 0
    %v938 = vsel %vm874, 1, 0
    %v939 = vsel %vm875, 1, 0
    %v940 = vsel %vm876, 1, 0
    %v941 = vsel %vm877, 1, 0
    %v942 = vsel %vm878, 1, 0
    %v943 = vsel %vm879, 1, 0
    %v944 = vsel %vm880, 1, 0
    %v945 = vsel %vm881, 1, 0
    %v946 = vsel %vm882, 1, 0
    %v947 = vsel %vm883, 1, 0
    %v948 = vsel %vm884, 1, 0
    %v949 = vsel %vm885, 1, 0
    %v950 = vsel %vm886, 1, 0
    %v951 = vsel %vm887, 1, 0
    %v952 = vsel %vm888, 1, 0
    %v953 = vsel %vm889, 1, 0
    %v954 = vsel %vm890, 1, 0
    %v955 = vsel %vm891, 1, 0
    %v956 = vsel %vm892, 1, 0
    %v957 = vsel %vm893, 1, 0
    %v958 = vsel %vm894, 1, 0
    %v959 = vsel %vm895, 1, 0
    %v960 = vsel %vm896, 1, 0
    %v961 = vsel %vm897, 1, 0
    %v962 = vsel %vm898, 1, 0
    %v963 = vsel %vm899, 1, 0
    %v964 = vsel %vm900, 1, 0
    %v965 = vsel %vm901, 1, 0
    %v966 = vsel %vm902, 1, 0
    %v967 = vsel %vm903, 1, 0
    %vm968 = vcmask 1046528
    %v969 = vrot.slane %v904, 1
    %v970 = vrot.slane %v905, 1
    %v971 = vsel %vm968, %v969, %v970
    %v972 = vrot.slane %v906, 1
    %v973 = vrot.slane %v907, 1
    %v974 = vsel %vm968, %v972, %v973
    %v975 = vrot.slane %v908, 1
    %v976 = vrot.slane %v909, 1
    %v977 = vsel %vm968, %v975, %v976
    %v978 = vrot.slane %v910, 1
    %v979 = vrot.slane %v911, 1
    %v980 = vsel %vm968, %v978, %v979
    %v981 = vrot.slane %v912, 1
    %v982 = vrot.slane %v913, 1
    %v983 = vsel %vm968, %v981, %v982
    %v984 = vrot.slane %v914, 1
    %v985 = vrot.slane %v915, 1
    %v986 = vsel %vm968, %v984, %v985
    %v987 = vrot.slane %v916, 1
    %v988 = vrot.slane %v917, 1
    %v989 = vsel %vm968, %v987, %v988
    %v990 = vrot.slane %v918, 1
    %v991 = vrot.slane %v919, 1
    %v992 = vsel %vm968, %v990, %v991
    %v993 = vrot.slane %v920, 1
    %v994 = vrot.slane %v921, 1
    %v995 = vsel %vm968, %v993, %v994
    %v996 = vrot.slane %v922, 1
    %v997 = vrot.slane %v923, 1
    %v998 = vsel %vm968, %v996, %v997
    %v999 = vrot.slane %v924, 1
    %v1000 = vrot.slane %v925, 1
    %v1001 = vsel %vm968, %v999, %v1000
    %v1002 = vrot.slane %v926, 1
    %v1003 = vrot.slane %v927, 1
    %v1004 = vsel %vm968, %v1002, %v1003
    %v1005 = vrot.slane %v928, 1
    %v1006 = vrot.slane %v929, 1
    %v1007 = vsel %vm968, %v1005, %v1006
    %v1008 = vrot.slane %v930, 1
    %v1009 = vrot.slane %v931, 1
    %v1010 = vsel %vm968, %v1008, %v1009
    %v1011 = vrot.slane %v932, 1
    %v1012 = vrot.slane %v933, 1
    %v1013 = vsel %vm968, %v1011, %v1012
    %v1014 = vrot.slane %v934, 1
    %v1015 = vrot.slane %v935, 1
    %v1016 = vsel %vm968, %v1014, %v1015
    %v1017 = vrot.slane %v936, 1
    %v1018 = vrot.slane %v937, 1
    %v1019 = vsel %vm968, %v1017, %v1018
    %v1020 = vrot.slane %v938, 1
    %v1021 = vrot.slane %v939, 1
    %v1022 = vsel %vm968, %v1020, %v1021
    %v1023 = vrot.slane %v940, 1
    %v1024 = vrot.slane %v941, 1
    %v1025 = vsel %vm968, %v1023, %v1024
    %v1026 = vrot.slane %v942, 1
    %v1027 = vrot.slane %v943, 1
    %v1028 = vsel %vm968, %v1026, %v1027
    %v1029 = vrot.slane %v944, 1
    %v1030 = vrot.slane %v945, 1
    %v1031 = vsel %vm968, %v1029, %v1030
    %v1032 = vrot.slane %v946, 1
    %v1033 = vrot.slane %v947, 1
    %v1034 = vsel %vm968, %v1032, %v1033
    %v1035 = vrot.slane %v948, 1
    %v1036 = vrot.slane %v949, 1
    %v1037 = vsel %vm968, %v1035, %v1036
    %v1038 = vrot.slane %v950, 1
    %v1039 = vrot.slane %v951, 1
    %v1040 = vsel %vm968, %v1038, %v1039
    %v1041 = vrot.slane %v952, 1
    %v1042 = vrot.slane %v953, 1
    %v1043 = vsel %vm968, %v1041, %v1042
    %v1044 = vrot.slane %v954, 1
    %v1045 = vrot.slane %v955, 1
    %v1046 = vsel %vm968, %v1044, %v1045
    %v1047 = vrot.slane %v956, 1
    %v1048 = vrot.slane %v957, 1
    %v1049 = vsel %vm968, %v1047, %v1048
    %v1050 = vrot.slane %v958, 1
    %v1051 = vrot.slane %v959, 1
    %v1052 = vsel %vm968, %v1050, %v1051
    %v1053 = vrot.slane %v960, 1
    %v1054 = vrot.slane %v961, 1
    %v1055 = vsel %vm968, %v1053, %v1054
    %v1056 = vrot.slane %v962, 1
    %v1057 = vrot.slane %v963, 1
    %v1058 = vsel %vm968, %v1056, %v1057
    %v1059 = vrot.slane %v964, 1
    %v1060 = vrot.slane %v965, 1
    %v1061 = vsel %vm968, %v1059, %v1060
    %v1062 = vrot.slane %v966, 1
    %v1063 = vrot.slane %v967, 1
    %v1064 = vsel %vm968, %v1062, %v1063
    %vm1065 = vcmp.ne.s32.totalorder %v971, 0
    %vm1066 = vcmp.ne.s32.totalorder %v970, 0
    %vm1067 = vcmp.ne.s32.totalorder %v974, 0
    %vm1068 = vcmp.ne.s32.totalorder %v973, 0
    %vm1069 = vcmp.ne.s32.totalorder %v977, 0
    %vm1070 = vcmp.ne.s32.totalorder %v976, 0
    %vm1071 = vcmp.ne.s32.totalorder %v980, 0
    %vm1072 = vcmp.ne.s32.totalorder %v979, 0
    %vm1073 = vcmp.ne.s32.totalorder %v983, 0
    %vm1074 = vcmp.ne.s32.totalorder %v982, 0
    %vm1075 = vcmp.ne.s32.totalorder %v986, 0
    %vm1076 = vcmp.ne.s32.totalorder %v985, 0
    %vm1077 = vcmp.ne.s32.totalorder %v989, 0
    %vm1078 = vcmp.ne.s32.totalorder %v988, 0
    %vm1079 = vcmp.ne.s32.totalorder %v992, 0
    %vm1080 = vcmp.ne.s32.totalorder %v991, 0
    %vm1081 = vcmp.ne.s32.totalorder %v995, 0
    %vm1082 = vcmp.ne.s32.totalorder %v994, 0
    %vm1083 = vcmp.ne.s32.totalorder %v998, 0
    %vm1084 = vcmp.ne.s32.totalorder %v997, 0
    %vm1085 = vcmp.ne.s32.totalorder %v1001, 0
    %vm1086 = vcmp.ne.s32.totalorder %v1000, 0
    %vm1087 = vcmp.ne.s32.totalorder %v1004, 0
    %vm1088 = vcmp.ne.s32.totalorder %v1003, 0
    %vm1089 = vcmp.ne.s32.totalorder %v1007, 0
    %vm1090 = vcmp.ne.s32.totalorder %v1006, 0
    %vm1091 = vcmp.ne.s32.totalorder %v1010, 0
    %vm1092 = vcmp.ne.s32.totalorder %v1009, 0
    %vm1093 = vcmp.ne.s32.totalorder %v1013, 0
    %vm1094 = vcmp.ne.s32.totalorder %v1012, 0
    %vm1095 = vcmp.ne.s32.totalorder %v1016, 0
    %vm1096 = vcmp.ne.s32.totalorder %v1015, 0
    %vm1097 = vcmp.ne.s32.totalorder %v1019, 0
    %vm1098 = vcmp.ne.s32.totalorder %v1018, 0
    %vm1099 = vcmp.ne.s32.totalorder %v1022, 0
    %vm1100 = vcmp.ne.s32.totalorder %v1021, 0
    %vm1101 = vcmp.ne.s32.totalorder %v1025, 0
    %vm1102 = vcmp.ne.s32.totalorder %v1024, 0
    %vm1103 = vcmp.ne.s32.totalorder %v1028, 0
    %vm1104 = vcmp.ne.s32.totalorder %v1027, 0
    %vm1105 = vcmp.ne.s32.totalorder %v1031, 0
    %vm1106 = vcmp.ne.s32.totalorder %v1030, 0
    %vm1107 = vcmp.ne.s32.totalorder %v1034, 0
    %vm1108 = vcmp.ne.s32.totalorder %v1033, 0
    %vm1109 = vcmp.ne.s32.totalorder %v1037, 0
    %vm1110 = vcmp.ne.s32.totalorder %v1036, 0
    %vm1111 = vcmp.ne.s32.totalorder %v1040, 0
    %vm1112 = vcmp.ne.s32.totalorder %v1039, 0
    %vm1113 = vcmp.ne.s32.totalorder %v1043, 0
    %vm1114 = vcmp.ne.s32.totalorder %v1042, 0
    %vm1115 = vcmp.ne.s32.totalorder %v1046, 0
    %vm1116 = vcmp.ne.s32.totalorder %v1045, 0
    %vm1117 = vcmp.ne.s32.totalorder %v1049, 0
    %vm1118 = vcmp.ne.s32.totalorder %v1048, 0
    %vm1119 = vcmp.ne.s32.totalorder %v1052, 0
    %vm1120 = vcmp.ne.s32.totalorder %v1051, 0
    %vm1121 = vcmp.ne.s32.totalorder %v1055, 0
    %vm1122 = vcmp.ne.s32.totalorder %v1054, 0
    %vm1123 = vcmp.ne.s32.totalorder %v1058, 0
    %vm1124 = vcmp.ne.s32.totalorder %v1057, 0
    %vm1125 = vcmp.ne.s32.totalorder %v1061, 0
    %vm1126 = vcmp.ne.s32.totalorder %v1060, 0
    %vm1127 = vcmp.ne.s32.totalorder %v1064, 0
    %vm1128 = vcmp.ne.s32.totalorder %v1063, 0
    %vm1129 = vmand %vm776, %vm1065
    %vm1130 = vmand %vm777, %vm1066
    %vm1131 = vmand %vm778, %vm1067
    %vm1132 = vmand %vm779, %vm1068
    %vm1133 = vmand %vm780, %vm1069
    %vm1134 = vmand %vm781, %vm1070
    %vm1135 = vmand %vm782, %vm1071
    %vm1136 = vmand %vm783, %vm1072
    %vm1137 = vmand %vm784, %vm1073
    %vm1138 = vmand %vm785, %vm1074
    %vm1139 = vmand %vm786, %vm1075
    %vm1140 = vmand %vm787, %vm1076
    %vm1141 = vmand %vm788, %vm1077
    %vm1142 = vmand %vm789, %vm1078
    %vm1143 = vmand %vm790, %vm1079
    %vm1144 = vmand %vm791, %vm1080
    %vm1145 = vmand %vm792, %vm1081
    %vm1146 = vmand %vm793, %vm1082
    %vm1147 = vmand %vm794, %vm1083
    %vm1148 = vmand %vm795, %vm1084
    %vm1149 = vmand %vm796, %vm1085
    %vm1150 = vmand %vm797, %vm1086
    %vm1151 = vmand %vm798, %vm1087
    %vm1152 = vmand %vm799, %vm1088
    %vm1153 = vmand %vm800, %vm1089
    %vm1154 = vmand %vm801, %vm1090
    %vm1155 = vmand %vm802, %vm1091
    %vm1156 = vmand %vm803, %vm1092
    %vm1157 = vmand %vm804, %vm1093
    %vm1158 = vmand %vm805, %vm1094
    %vm1159 = vmand %vm806, %vm1095
    %vm1160 = vmand %vm807, %vm1096
    %vm1161 = vmand %vm808, %vm1097
    %vm1162 = vmand %vm809, %vm1098
    %vm1163 = vmand %vm810, %vm1099
    %vm1164 = vmand %vm811, %vm1100
    %vm1165 = vmand %vm812, %vm1101
    %vm1166 = vmand %vm813, %vm1102
    %vm1167 = vmand %vm814, %vm1103
    %vm1168 = vmand %vm815, %vm1104
    %vm1169 = vmand %vm816, %vm1105
    %vm1170 = vmand %vm817, %vm1106
    %vm1171 = vmand %vm818, %vm1107
    %vm1172 = vmand %vm819, %vm1108
    %vm1173 = vmand %vm820, %vm1109
    %vm1174 = vmand %vm821, %vm1110
    %vm1175 = vmand %vm822, %vm1111
    %vm1176 = vmand %vm823, %vm1112
    %vm1177 = vmand %vm824, %vm1113
    %vm1178 = vmand %vm825, %vm1114
    %vm1179 = vmand %vm826, %vm1115
    %vm1180 = vmand %vm827, %vm1116
    %vm1181 = vmand %vm828, %vm1117
    %vm1182 = vmand %vm829, %vm1118
    %vm1183 = vmand %vm830, %vm1119
    %vm1184 = vmand %vm831, %vm1120
    %vm1185 = vmand %vm832, %vm1121
    %vm1186 = vmand %vm833, %vm1122
    %vm1187 = vmand %vm834, %vm1123
    %vm1188 = vmand %vm835, %vm1124
    %vm1189 = vmand %vm836, %vm1125
    %vm1190 = vmand %vm837, %vm1126
    %vm1191 = vmand %vm838, %vm1127
    %vm1192 = vmand %vm839, %vm1128
    %v1193 = vsel %vm1129, 1, 0
    %v1194 = vsel %vm1130, 1, 0
    %v1195 = vsel %vm1131, 1, 0
    %v1196 = vsel %vm1132, 1, 0
    %v1197 = vsel %vm1133, 1, 0
    %v1198 = vsel %vm1134, 1, 0
    %v1199 = vsel %vm1135, 1, 0
    %v1200 = vsel %vm1136, 1, 0
    %v1201 = vsel %vm1137, 1, 0
    %v1202 = vsel %vm1138, 1, 0
    %v1203 = vsel %vm1139, 1, 0
    %v1204 = vsel %vm1140, 1, 0
    %v1205 = vsel %vm1141, 1, 0
    %v1206 = vsel %vm1142, 1, 0
    %v1207 = vsel %vm1143, 1, 0
    %v1208 = vsel %vm1144, 1, 0
    %v1209 = vsel %vm1145, 1, 0
    %v1210 = vsel %vm1146, 1, 0
    %v1211 = vsel %vm1147, 1, 0
    %v1212 = vsel %vm1148, 1, 0
    %v1213 = vsel %vm1149, 1, 0
    %v1214 = vsel %vm1150, 1, 0
    %v1215 = vsel %vm1151, 1, 0
    %v1216 = vsel %vm1152, 1, 0
    %v1217 = vsel %vm1153, 1, 0
    %v1218 = vsel %vm1154, 1, 0
    %v1219 = vsel %vm1155, 1, 0
    %v1220 = vsel %vm1156, 1, 0
    %v1221 = vsel %vm1157, 1, 0
    %v1222 = vsel %vm1158, 1, 0
    %v1223 = vsel %vm1159, 1, 0
    %v1224 = vsel %vm1160, 1, 0
    %v1225 = vsel %vm1161, 1, 0
    %v1226 = vsel %vm1162, 1, 0
    %v1227 = vsel %vm1163, 1, 0
    %v1228 = vsel %vm1164, 1, 0
    %v1229 = vsel %vm1165, 1, 0
    %v1230 = vsel %vm1166, 1, 0
    %v1231 = vsel %vm1167, 1, 0
    %v1232 = vsel %vm1168, 1, 0
    %v1233 = vsel %vm1169, 1, 0
    %v1234 = vsel %vm1170, 1, 0
    %v1235 = vsel %vm1171, 1, 0
    %v1236 = vsel %vm1172, 1, 0
    %v1237 = vsel %vm1173, 1, 0
    %v1238 = vsel %vm1174, 1, 0
    %v1239 = vsel %vm1175, 1, 0
    %v1240 = vsel %vm1176, 1, 0
    %v1241 = vsel %vm1177, 1, 0
    %v1242 = vsel %vm1178, 1, 0
    %v1243 = vsel %vm1179, 1, 0
    %v1244 = vsel %vm1180, 1, 0
    %v1245 = vsel %vm1181, 1, 0
    %v1246 = vsel %vm1182, 1, 0
    %v1247 = vsel %vm1183, 1, 0
    %v1248 = vsel %vm1184, 1, 0
    %v1249 = vsel %vm1185, 1, 0
    %v1250 = vsel %vm1186, 1, 0
    %v1251 = vsel %vm1187, 1, 0
    %v1252 = vsel %vm1188, 1, 0
    %v1253 = vsel %vm1189, 1, 0
    %v1254 = vsel %vm1190, 1, 0
    %v1255 = vsel %vm1191, 1, 0
    %v1256 = vsel %vm1192, 1, 0
    %v1257 = vcvt.s32.f32 %v1193
    %v1258 = vcvt.s32.f32 %v1194
    %v1259 = vcvt.s32.f32 %v1195
    %v1260 = vcvt.s32.f32 %v1196
    %v1261 = vcvt.s32.f32 %v1197
    %v1262 = vcvt.s32.f32 %v1198
    %v1263 = vcvt.s32.f32 %v1199
    %v1264 = vcvt.s32.f32 %v1200
    %v1265 = vcvt.s32.f32 %v1201
    %v1266 = vcvt.s32.f32 %v1202
    %v1267 = vcvt.s32.f32 %v1203
    %v1268 = vcvt.s32.f32 %v1204
    %v1269 = vcvt.s32.f32 %v1205
    %v1270 = vcvt.s32.f32 %v1206
    %v1271 = vcvt.s32.f32 %v1207
    %v1272 = vcvt.s32.f32 %v1208
    %v1273 = vcvt.s32.f32 %v1209
    %v1274 = vcvt.s32.f32 %v1210
    %v1275 = vcvt.s32.f32 %v1211
    %v1276 = vcvt.s32.f32 %v1212
    %v1277 = vcvt.s32.f32 %v1213
    %v1278 = vcvt.s32.f32 %v1214
    %v1279 = vcvt.s32.f32 %v1215
    %v1280 = vcvt.s32.f32 %v1216
    %v1281 = vcvt.s32.f32 %v1217
    %v1282 = vcvt.s32.f32 %v1218
    %v1283 = vcvt.s32.f32 %v1219
    %v1284 = vcvt.s32.f32 %v1220
    %v1285 = vcvt.s32.f32 %v1221
    %v1286 = vcvt.s32.f32 %v1222
    %v1287 = vcvt.s32.f32 %v1223
    %v1288 = vcvt.s32.f32 %v1224
    %v1289 = vcvt.s32.f32 %v1225
    %v1290 = vcvt.s32.f32 %v1226
    %v1291 = vcvt.s32.f32 %v1227
    %v1292 = vcvt.s32.f32 %v1228
    %v1293 = vcvt.s32.f32 %v1229
    %v1294 = vcvt.s32.f32 %v1230
    %v1295 = vcvt.s32.f32 %v1231
    %v1296 = vcvt.s32.f32 %v1232
    %v1297 = vcvt.s32.f32 %v1233
    %v1298 = vcvt.s32.f32 %v1234
    %v1299 = vcvt.s32.f32 %v1235
    %v1300 = vcvt.s32.f32 %v1236
    %v1301 = vcvt.s32.f32 %v1237
    %v1302 = vcvt.s32.f32 %v1238
    %v1303 = vcvt.s32.f32 %v1239
    %v1304 = vcvt.s32.f32 %v1240
    %v1305 = vcvt.s32.f32 %v1241
    %v1306 = vcvt.s32.f32 %v1242
    %v1307 = vcvt.s32.f32 %v1243
    %v1308 = vcvt.s32.f32 %v1244
    %v1309 = vcvt.s32.f32 %v1245
    %v1310 = vcvt.s32.f32 %v1246
    %v1311 = vcvt.s32.f32 %v1247
    %v1312 = vcvt.s32.f32 %v1248
    %v1313 = vcvt.s32.f32 %v1249
    %v1314 = vcvt.s32.f32 %v1250
    %v1315 = vcvt.s32.f32 %v1251
    %v1316 = vcvt.s32.f32 %v1252
    %v1317 = vcvt.s32.f32 %v1253
    %v1318 = vcvt.s32.f32 %v1254
    %v1319 = vcvt.s32.f32 %v1255
    %v1320 = vcvt.s32.f32 %v1256
    %1325 = vrot.lane.b32.xlu0 %v36, 1
    %v1326 = vpop.permute.xlu0 %1325
    %1327 = vrot.lane.b32.xlu0 %v37, 1
    %v1328 = vpop.permute.xlu0 %1327
    %1329 = vrot.lane.b32.xlu0 %v38, 1
    %v1330 = vpop.permute.xlu0 %1329
    %1331 = vrot.lane.b32.xlu0 %v39, 1
    %v1332 = vpop.permute.xlu0 %1331
    %v1337 = vsub.f32 %v36, %v1326
    %v1338 = vsub.f32 %v37, %v1328
    %v1339 = vsub.f32 %v38, %v1330
    %v1340 = vsub.f32 %v39, %v1332
    %v1341 = vrcp.pop %v1337
    %v1342 = vmul.f32 1.0, %v1341
    %v1343 = vrcp.pop %v1338
    %v1344 = vmul.f32 1.0, %v1343
    %v1345 = vrcp.pop %v1339
    %v1346 = vmul.f32 1.0, %v1345
    %v1347 = vrcp.pop %v1340
    %v1348 = vmul.f32 1.0, %v1347
    %v1349 = vlaneseq
    %v1350 = vshrl.u32 %v1349, 7
    %v1351 = vsub.s32 0, %v1350
    %v1352 = vrot.slane %v1342, %v1351
    %s1354 = sor.u32 256, 1
    %1355 = vbcast.lane.b32.xlu0 %v1352, %s1354
    %v1356 = vpop.permute.xlu0 %1355
    %s1358 = sor.u32 256, 9
    %1359 = vbcast.lane.b32.xlu0 %v1352, %s1358
    %v1360 = vpop.permute.xlu0 %1359
    %v1361 = vlaneseq
    %v1362 = vshrl.u32 %v1361, 7
    %v1363 = vsub.s32 1, %v1362
    %v1364 = vrot.slane %v1342, %v1363
    %s1366 = sor.u32 256, 1
    %1367 = vbcast.lane.b32.xlu0 %v1364, %s1366
    %v1368 = vpop.permute.xlu0 %1367
    %s1370 = sor.u32 256, 9
    %1371 = vbcast.lane.b32.xlu0 %v1364, %s1370
    %v1372 = vpop.permute.xlu0 %1371
    %v1373 = vlaneseq
    %v1374 = vshrl.u32 %v1373, 7
    %v1375 = vsub.s32 2, %v1374
    %v1376 = vrot.slane %v1342, %v1375
    %s1378 = sor.u32 256, 1
    %1379 = vbcast.lane.b32.xlu0 %v1376, %s1378
    %v1380 = vpop.permute.xlu0 %1379
    %s1382 = sor.u32 256, 9
    %1383 = vbcast.lane.b32.xlu0 %v1376, %s1382
    %v1384 = vpop.permute.xlu0 %1383
    %v1385 = vlaneseq
    %v1386 = vshrl.u32 %v1385, 7
    %v1387 = vsub.s32 3, %v1386
    %v1388 = vrot.slane %v1342, %v1387
    %s1390 = sor.u32 256, 1
    %1391 = vbcast.lane.b32.xlu0 %v1388, %s1390
    %v1392 = vpop.permute.xlu0 %1391
    %s1394 = sor.u32 256, 9
    %1395 = vbcast.lane.b32.xlu0 %v1388, %s1394
    %v1396 = vpop.permute.xlu0 %1395
    %v1397 = vlaneseq
    %v1398 = vshrl.u32 %v1397, 7
    %v1399 = vsub.s32 4, %v1398
    %v1400 = vrot.slane %v1342, %v1399
    %s1402 = sor.u32 256, 1
    %1403 = vbcast.lane.b32.xlu0 %v1400, %s1402
    %v1404 = vpop.permute.xlu0 %1403
    %s1406 = sor.u32 256, 9
    %1407 = vbcast.lane.b32.xlu0 %v1400, %s1406
    %v1408 = vpop.permute.xlu0 %1407
    %v1409 = vlaneseq
    %v1410 = vshrl.u32 %v1409, 7
    %v1411 = vsub.s32 5, %v1410
    %v1412 = vrot.slane %v1342, %v1411
    %s1414 = sor.u32 256, 1
    %1415 = vbcast.lane.b32.xlu0 %v1412, %s1414
    %v1416 = vpop.permute.xlu0 %1415
    %s1418 = sor.u32 256, 9
    %1419 = vbcast.lane.b32.xlu0 %v1412, %s1418
    %v1420 = vpop.permute.xlu0 %1419
    %v1421 = vlaneseq
    %v1422 = vshrl.u32 %v1421, 7
    %v1423 = vsub.s32 6, %v1422
    %v1424 = vrot.slane %v1342, %v1423
    %s1426 = sor.u32 256, 1
    %1427 = vbcast.lane.b32.xlu0 %v1424, %s1426
    %v1428 = vpop.permute.xlu0 %1427
    %s1430 = sor.u32 256, 9
    %1431 = vbcast.lane.b32.xlu0 %v1424, %s1430
    %v1432 = vpop.permute.xlu0 %1431
    %v1433 = vlaneseq
    %v1434 = vshrl.u32 %v1433, 7
    %v1435 = vsub.s32 7, %v1434
    %v1436 = vrot.slane %v1342, %v1435
    %s1438 = sor.u32 256, 1
    %1439 = vbcast.lane.b32.xlu0 %v1436, %s1438
    %v1440 = vpop.permute.xlu0 %1439
    %s1442 = sor.u32 256, 9
    %1443 = vbcast.lane.b32.xlu0 %v1436, %s1442
    %v1444 = vpop.permute.xlu0 %1443
    %v1445 = vlaneseq
    %v1446 = vshrl.u32 %v1445, 7
    %v1447 = vsub.s32 0, %v1446
    %v1448 = vrot.slane %v1344, %v1447
    %s1450 = sor.u32 256, 1
    %1451 = vbcast.lane.b32.xlu0 %v1448, %s1450
    %v1452 = vpop.permute.xlu0 %1451
    %s1454 = sor.u32 256, 9
    %1455 = vbcast.lane.b32.xlu0 %v1448, %s1454
    %v1456 = vpop.permute.xlu0 %1455
    %v1457 = vlaneseq
    %v1458 = vshrl.u32 %v1457, 7
    %v1459 = vsub.s32 1, %v1458
    %v1460 = vrot.slane %v1344, %v1459
    %s1462 = sor.u32 256, 1
    %1463 = vbcast.lane.b32.xlu0 %v1460, %s1462
    %v1464 = vpop.permute.xlu0 %1463
    %s1466 = sor.u32 256, 9
    %1467 = vbcast.lane.b32.xlu0 %v1460, %s1466
    %v1468 = vpop.permute.xlu0 %1467
    %v1469 = vlaneseq
    %v1470 = vshrl.u32 %v1469, 7
    %v1471 = vsub.s32 2, %v1470
    %v1472 = vrot.slane %v1344, %v1471
    %s1474 = sor.u32 256, 1
    %1475 = vbcast.lane.b32.xlu0 %v1472, %s1474
    %v1476 = vpop.permute.xlu0 %1475
    %s1478 = sor.u32 256, 9
    %1479 = vbcast.lane.b32.xlu0 %v1472, %s1478
    %v1480 = vpop.permute.xlu0 %1479
    %v1481 = vlaneseq
    %v1482 = vshrl.u32 %v1481, 7
    %v1483 = vsub.s32 3, %v1482
    %v1484 = vrot.slane %v1344, %v1483
    %s1486 = sor.u32 256, 1
    %1487 = vbcast.lane.b32.xlu0 %v1484, %s1486
    %v1488 = vpop.permute.xlu0 %1487
    %s1490 = sor.u32 256, 9
    %1491 = vbcast.lane.b32.xlu0 %v1484, %s1490
    %v1492 = vpop.permute.xlu0 %1491
    %v1493 = vlaneseq
    %v1494 = vshrl.u32 %v1493, 7
    %v1495 = vsub.s32 4, %v1494
    %v1496 = vrot.slane %v1344, %v1495
    %s1498 = sor.u32 256, 1
    %1499 = vbcast.lane.b32.xlu0 %v1496, %s1498
    %v1500 = vpop.permute.xlu0 %1499
    %s1502 = sor.u32 256, 9
    %1503 = vbcast.lane.b32.xlu0 %v1496, %s1502
    %v1504 = vpop.permute.xlu0 %1503
    %v1505 = vlaneseq
    %v1506 = vshrl.u32 %v1505, 7
    %v1507 = vsub.s32 5, %v1506
    %v1508 = vrot.slane %v1344, %v1507
    %s1510 = sor.u32 256, 1
    %1511 = vbcast.lane.b32.xlu0 %v1508, %s1510
    %v1512 = vpop.permute.xlu0 %1511
    %s1514 = sor.u32 256, 9
    %1515 = vbcast.lane.b32.xlu0 %v1508, %s1514
    %v1516 = vpop.permute.xlu0 %1515
    %v1517 = vlaneseq
    %v1518 = vshrl.u32 %v1517, 7
    %v1519 = vsub.s32 6, %v1518
    %v1520 = vrot.slane %v1344, %v1519
    %s1522 = sor.u32 256, 1
    %1523 = vbcast.lane.b32.xlu0 %v1520, %s1522
    %v1524 = vpop.permute.xlu0 %1523
    %s1526 = sor.u32 256, 9
    %1527 = vbcast.lane.b32.xlu0 %v1520, %s1526
    %v1528 = vpop.permute.xlu0 %1527
    %v1529 = vlaneseq
    %v1530 = vshrl.u32 %v1529, 7
    %v1531 = vsub.s32 7, %v1530
    %v1532 = vrot.slane %v1344, %v1531
    %s1534 = sor.u32 256, 1
    %1535 = vbcast.lane.b32.xlu0 %v1532, %s1534
    %v1536 = vpop.permute.xlu0 %1535
    %s1538 = sor.u32 256, 9
    %1539 = vbcast.lane.b32.xlu0 %v1532, %s1538
    %v1540 = vpop.permute.xlu0 %1539
    %v1541 = vlaneseq
    %v1542 = vshrl.u32 %v1541, 7
    %v1543 = vsub.s32 0, %v1542
    %v1544 = vrot.slane %v1346, %v1543
    %s1546 = sor.u32 256, 1
    %1547 = vbcast.lane.b32.xlu0 %v1544, %s1546
    %v1548 = vpop.permute.xlu0 %1547
    %s1550 = sor.u32 256, 9
    %1551 = vbcast.lane.b32.xlu0 %v1544, %s1550
    %v1552 = vpop.permute.xlu0 %1551
    %v1553 = vlaneseq
    %v1554 = vshrl.u32 %v1553, 7
    %v1555 = vsub.s32 1, %v1554
    %v1556 = vrot.slane %v1346, %v1555
    %s1558 = sor.u32 256, 1
    %1559 = vbcast.lane.b32.xlu0 %v1556, %s1558
    %v1560 = vpop.permute.xlu0 %1559
    %s1562 = sor.u32 256, 9
    %1563 = vbcast.lane.b32.xlu0 %v1556, %s1562
    %v1564 = vpop.permute.xlu0 %1563
    %v1565 = vlaneseq
    %v1566 = vshrl.u32 %v1565, 7
    %v1567 = vsub.s32 2, %v1566
    %v1568 = vrot.slane %v1346, %v1567
    %s1570 = sor.u32 256, 1
    %1571 = vbcast.lane.b32.xlu0 %v1568, %s1570
    %v1572 = vpop.permute.xlu0 %1571
    %s1574 = sor.u32 256, 9
    %1575 = vbcast.lane.b32.xlu0 %v1568, %s1574
    %v1576 = vpop.permute.xlu0 %1575
    %v1577 = vlaneseq
    %v1578 = vshrl.u32 %v1577, 7
    %v1579 = vsub.s32 3, %v1578
    %v1580 = vrot.slane %v1346, %v1579
    %s1582 = sor.u32 256, 1
    %1583 = vbcast.lane.b32.xlu0 %v1580, %s1582
    %v1584 = vpop.permute.xlu0 %1583
    %s1586 = sor.u32 256, 9
    %1587 = vbcast.lane.b32.xlu0 %v1580, %s1586
    %v1588 = vpop.permute.xlu0 %1587
    %v1589 = vlaneseq
    %v1590 = vshrl.u32 %v1589, 7
    %v1591 = vsub.s32 4, %v1590
    %v1592 = vrot.slane %v1346, %v1591
    %s1594 = sor.u32 256, 1
    %1595 = vbcast.lane.b32.xlu0 %v1592, %s1594
    %v1596 = vpop.permute.xlu0 %1595
    %s1598 = sor.u32 256, 9
    %1599 = vbcast.lane.b32.xlu0 %v1592, %s1598
    %v1600 = vpop.permute.xlu0 %1599
    %v1601 = vlaneseq
    %v1602 = vshrl.u32 %v1601, 7
    %v1603 = vsub.s32 5, %v1602
    %v1604 = vrot.slane %v1346, %v1603
    %s1606 = sor.u32 256, 1
    %1607 = vbcast.lane.b32.xlu0 %v1604, %s1606
    %v1608 = vpop.permute.xlu0 %1607
    %s1610 = sor.u32 256, 9
    %1611 = vbcast.lane.b32.xlu0 %v1604, %s1610
    %v1612 = vpop.permute.xlu0 %1611
    %v1613 = vlaneseq
    %v1614 = vshrl.u32 %v1613, 7
    %v1615 = vsub.s32 6, %v1614
    %v1616 = vrot.slane %v1346, %v1615
    %s1618 = sor.u32 256, 1
    %1619 = vbcast.lane.b32.xlu0 %v1616, %s1618
    %v1620 = vpop.permute.xlu0 %1619
    %s1622 = sor.u32 256, 9
    %1623 = vbcast.lane.b32.xlu0 %v1616, %s1622
    %v1624 = vpop.permute.xlu0 %1623
    %v1625 = vlaneseq
    %v1626 = vshrl.u32 %v1625, 7
    %v1627 = vsub.s32 7, %v1626
    %v1628 = vrot.slane %v1346, %v1627
    %s1630 = sor.u32 256, 1
    %1631 = vbcast.lane.b32.xlu0 %v1628, %s1630
    %v1632 = vpop.permute.xlu0 %1631
    %s1634 = sor.u32 256, 9
    %1635 = vbcast.lane.b32.xlu0 %v1628, %s1634
    %v1636 = vpop.permute.xlu0 %1635
    %v1637 = vlaneseq
    %v1638 = vshrl.u32 %v1637, 7
    %v1639 = vsub.s32 0, %v1638
    %v1640 = vrot.slane %v1348, %v1639
    %s1642 = sor.u32 256, 1
    %1643 = vbcast.lane.b32.xlu0 %v1640, %s1642
    %v1644 = vpop.permute.xlu0 %1643
    %s1646 = sor.u32 256, 9
    %1647 = vbcast.lane.b32.xlu0 %v1640, %s1646
    %v1648 = vpop.permute.xlu0 %1647
    %v1649 = vlaneseq
    %v1650 = vshrl.u32 %v1649, 7
    %v1651 = vsub.s32 1, %v1650
    %v1652 = vrot.slane %v1348, %v1651
    %s1654 = sor.u32 256, 1
    %1655 = vbcast.lane.b32.xlu0 %v1652, %s1654
    %v1656 = vpop.permute.xlu0 %1655
    %s1658 = sor.u32 256, 9
    %1659 = vbcast.lane.b32.xlu0 %v1652, %s1658
    %v1660 = vpop.permute.xlu0 %1659
    %v1661 = vlaneseq
    %v1662 = vshrl.u32 %v1661, 7
    %v1663 = vsub.s32 2, %v1662
    %v1664 = vrot.slane %v1348, %v1663
    %s1666 = sor.u32 256, 1
    %1667 = vbcast.lane.b32.xlu0 %v1664, %s1666
    %v1668 = vpop.permute.xlu0 %1667
    %s1670 = sor.u32 256, 9
    %1671 = vbcast.lane.b32.xlu0 %v1664, %s1670
    %v1672 = vpop.permute.xlu0 %1671
    %v1673 = vlaneseq
    %v1674 = vshrl.u32 %v1673, 7
    %v1675 = vsub.s32 3, %v1674
    %v1676 = vrot.slane %v1348, %v1675
    %s1678 = sor.u32 256, 1
    %1679 = vbcast.lane.b32.xlu0 %v1676, %s1678
    %v1680 = vpop.permute.xlu0 %1679
    %s1682 = sor.u32 256, 9
    %1683 = vbcast.lane.b32.xlu0 %v1676, %s1682
    %v1684 = vpop.permute.xlu0 %1683
    %v1685 = vlaneseq
    %v1686 = vshrl.u32 %v1685, 7
    %v1687 = vsub.s32 4, %v1686
    %v1688 = vrot.slane %v1348, %v1687
    %s1690 = sor.u32 256, 1
    %1691 = vbcast.lane.b32.xlu0 %v1688, %s1690
    %v1692 = vpop.permute.xlu0 %1691
    %s1694 = sor.u32 256, 9
    %1695 = vbcast.lane.b32.xlu0 %v1688, %s1694
    %v1696 = vpop.permute.xlu0 %1695
    %v1697 = vlaneseq
    %v1698 = vshrl.u32 %v1697, 7
    %v1699 = vsub.s32 5, %v1698
    %v1700 = vrot.slane %v1348, %v1699
    %s1702 = sor.u32 256, 1
    %1703 = vbcast.lane.b32.xlu0 %v1700, %s1702
    %v1704 = vpop.permute.xlu0 %1703
    %s1706 = sor.u32 256, 9
    %1707 = vbcast.lane.b32.xlu0 %v1700, %s1706
    %v1708 = vpop.permute.xlu0 %1707
    %v1709 = vlaneseq
    %v1710 = vshrl.u32 %v1709, 7
    %v1711 = vsub.s32 6, %v1710
    %v1712 = vrot.slane %v1348, %v1711
    %s1714 = sor.u32 256, 1
    %1715 = vbcast.lane.b32.xlu0 %v1712, %s1714
    %v1716 = vpop.permute.xlu0 %1715
    %s1718 = sor.u32 256, 9
    %1719 = vbcast.lane.b32.xlu0 %v1712, %s1718
    %v1720 = vpop.permute.xlu0 %1719
    %v1721 = vlaneseq
    %v1722 = vshrl.u32 %v1721, 7
    %v1723 = vsub.s32 7, %v1722
    %v1724 = vrot.slane %v1348, %v1723
    %s1726 = sor.u32 256, 1
    %1727 = vbcast.lane.b32.xlu0 %v1724, %s1726
    %v1728 = vpop.permute.xlu0 %1727
    %s1730 = sor.u32 256, 9
    %1731 = vbcast.lane.b32.xlu0 %v1724, %s1730
    %v1732 = vpop.permute.xlu0 %1731
    %s1734 = sor.u32 256, 2
    %1735 = vbcast.lane.b32.xlu0 %v1352, %s1734
    %v1736 = vpop.permute.xlu0 %1735
    %s1738 = sor.u32 256, 10
    %1739 = vbcast.lane.b32.xlu0 %v1352, %s1738
    %v1740 = vpop.permute.xlu0 %1739
    %s1742 = sor.u32 256, 2
    %1743 = vbcast.lane.b32.xlu0 %v1364, %s1742
    %v1744 = vpop.permute.xlu0 %1743
    %s1746 = sor.u32 256, 10
    %1747 = vbcast.lane.b32.xlu0 %v1364, %s1746
    %v1748 = vpop.permute.xlu0 %1747
    %s1750 = sor.u32 256, 2
    %1751 = vbcast.lane.b32.xlu0 %v1376, %s1750
    %v1752 = vpop.permute.xlu0 %1751
    %s1754 = sor.u32 256, 10
    %1755 = vbcast.lane.b32.xlu0 %v1376, %s1754
    %v1756 = vpop.permute.xlu0 %1755
    %s1758 = sor.u32 256, 2
    %1759 = vbcast.lane.b32.xlu0 %v1388, %s1758
    %v1760 = vpop.permute.xlu0 %1759
    %s1762 = sor.u32 256, 10
    %1763 = vbcast.lane.b32.xlu0 %v1388, %s1762
    %v1764 = vpop.permute.xlu0 %1763
    %s1766 = sor.u32 256, 2
    %1767 = vbcast.lane.b32.xlu0 %v1400, %s1766
    %v1768 = vpop.permute.xlu0 %1767
    %s1770 = sor.u32 256, 10
    %1771 = vbcast.lane.b32.xlu0 %v1400, %s1770
    %v1772 = vpop.permute.xlu0 %1771
    %s1774 = sor.u32 256, 2
    %1775 = vbcast.lane.b32.xlu0 %v1412, %s1774
    %v1776 = vpop.permute.xlu0 %1775
    %s1778 = sor.u32 256, 10
    %1779 = vbcast.lane.b32.xlu0 %v1412, %s1778
    %v1780 = vpop.permute.xlu0 %1779
    %s1782 = sor.u32 256, 2
    %1783 = vbcast.lane.b32.xlu0 %v1424, %s1782
    %v1784 = vpop.permute.xlu0 %1783
    %s1786 = sor.u32 256, 10
    %1787 = vbcast.lane.b32.xlu0 %v1424, %s1786
    %v1788 = vpop.permute.xlu0 %1787
    %s1790 = sor.u32 256, 2
    %1791 = vbcast.lane.b32.xlu0 %v1436, %s1790
    %v1792 = vpop.permute.xlu0 %1791
    %s1794 = sor.u32 256, 10
    %1795 = vbcast.lane.b32.xlu0 %v1436, %s1794
    %v1796 = vpop.permute.xlu0 %1795
    %s1798 = sor.u32 256, 2
    %1799 = vbcast.lane.b32.xlu0 %v1448, %s1798
    %v1800 = vpop.permute.xlu0 %1799
    %s1802 = sor.u32 256, 10
    %1803 = vbcast.lane.b32.xlu0 %v1448, %s1802
    %v1804 = vpop.permute.xlu0 %1803
    %s1806 = sor.u32 256, 2
    %1807 = vbcast.lane.b32.xlu0 %v1460, %s1806
    %v1808 = vpop.permute.xlu0 %1807
    %s1810 = sor.u32 256, 10
    %1811 = vbcast.lane.b32.xlu0 %v1460, %s1810
    %v1812 = vpop.permute.xlu0 %1811
    %s1814 = sor.u32 256, 2
    %1815 = vbcast.lane.b32.xlu0 %v1472, %s1814
    %v1816 = vpop.permute.xlu0 %1815
    %s1818 = sor.u32 256, 10
    %1819 = vbcast.lane.b32.xlu0 %v1472, %s1818
    %v1820 = vpop.permute.xlu0 %1819
    %s1822 = sor.u32 256, 2
    %1823 = vbcast.lane.b32.xlu0 %v1484, %s1822
    %v1824 = vpop.permute.xlu0 %1823
    %s1826 = sor.u32 256, 10
    %1827 = vbcast.lane.b32.xlu0 %v1484, %s1826
    %v1828 = vpop.permute.xlu0 %1827
    %s1830 = sor.u32 256, 2
    %1831 = vbcast.lane.b32.xlu0 %v1496, %s1830
    %v1832 = vpop.permute.xlu0 %1831
    %s1834 = sor.u32 256, 10
    %1835 = vbcast.lane.b32.xlu0 %v1496, %s1834
    %v1836 = vpop.permute.xlu0 %1835
    %s1838 = sor.u32 256, 2
    %1839 = vbcast.lane.b32.xlu0 %v1508, %s1838
    %v1840 = vpop.permute.xlu0 %1839
    %s1842 = sor.u32 256, 10
    %1843 = vbcast.lane.b32.xlu0 %v1508, %s1842
    %v1844 = vpop.permute.xlu0 %1843
    %s1846 = sor.u32 256, 2
    %1847 = vbcast.lane.b32.xlu0 %v1520, %s1846
    %v1848 = vpop.permute.xlu0 %1847
    %s1850 = sor.u32 256, 10
    %1851 = vbcast.lane.b32.xlu0 %v1520, %s1850
    %v1852 = vpop.permute.xlu0 %1851
    %s1854 = sor.u32 256, 2
    %1855 = vbcast.lane.b32.xlu0 %v1532, %s1854
    %v1856 = vpop.permute.xlu0 %1855
    %s1858 = sor.u32 256, 10
    %1859 = vbcast.lane.b32.xlu0 %v1532, %s1858
    %v1860 = vpop.permute.xlu0 %1859
    %s1862 = sor.u32 256, 2
    %1863 = vbcast.lane.b32.xlu0 %v1544, %s1862
    %v1864 = vpop.permute.xlu0 %1863
    %s1866 = sor.u32 256, 10
    %1867 = vbcast.lane.b32.xlu0 %v1544, %s1866
    %v1868 = vpop.permute.xlu0 %1867
    %s1870 = sor.u32 256, 2
    %1871 = vbcast.lane.b32.xlu0 %v1556, %s1870
    %v1872 = vpop.permute.xlu0 %1871
    %s1874 = sor.u32 256, 10
    %1875 = vbcast.lane.b32.xlu0 %v1556, %s1874
    %v1876 = vpop.permute.xlu0 %1875
    %s1878 = sor.u32 256, 2
    %1879 = vbcast.lane.b32.xlu0 %v1568, %s1878
    %v1880 = vpop.permute.xlu0 %1879
    %s1882 = sor.u32 256, 10
    %1883 = vbcast.lane.b32.xlu0 %v1568, %s1882
    %v1884 = vpop.permute.xlu0 %1883
    %s1886 = sor.u32 256, 2
    %1887 = vbcast.lane.b32.xlu0 %v1580, %s1886
    %v1888 = vpop.permute.xlu0 %1887
    %s1890 = sor.u32 256, 10
    %1891 = vbcast.lane.b32.xlu0 %v1580, %s1890
    %v1892 = vpop.permute.xlu0 %1891
    %s1894 = sor.u32 256, 2
    %1895 = vbcast.lane.b32.xlu0 %v1592, %s1894
    %v1896 = vpop.permute.xlu0 %1895
    %s1898 = sor.u32 256, 10
    %1899 = vbcast.lane.b32.xlu0 %v1592, %s1898
    %v1900 = vpop.permute.xlu0 %1899
    %s1902 = sor.u32 256, 2
    %1903 = vbcast.lane.b32.xlu0 %v1604, %s1902
    %v1904 = vpop.permute.xlu0 %1903
    %s1906 = sor.u32 256, 10
    %1907 = vbcast.lane.b32.xlu0 %v1604, %s1906
    %v1908 = vpop.permute.xlu0 %1907
    %s1910 = sor.u32 256, 2
    %1911 = vbcast.lane.b32.xlu0 %v1616, %s1910
    %v1912 = vpop.permute.xlu0 %1911
    %s1914 = sor.u32 256, 10
    %1915 = vbcast.lane.b32.xlu0 %v1616, %s1914
    %v1916 = vpop.permute.xlu0 %1915
    %s1918 = sor.u32 256, 2
    %1919 = vbcast.lane.b32.xlu0 %v1628, %s1918
    %v1920 = vpop.permute.xlu0 %1919
    %s1922 = sor.u32 256, 10
    %1923 = vbcast.lane.b32.xlu0 %v1628, %s1922
    %v1924 = vpop.permute.xlu0 %1923
    %s1926 = sor.u32 256, 2
    %1927 = vbcast.lane.b32.xlu0 %v1640, %s1926
    %v1928 = vpop.permute.xlu0 %1927
    %s1930 = sor.u32 256, 10
    %1931 = vbcast.lane.b32.xlu0 %v1640, %s1930
    %v1932 = vpop.permute.xlu0 %1931
    %s1934 = sor.u32 256, 2
    %1935 = vbcast.lane.b32.xlu0 %v1652, %s1934
    %v1936 = vpop.permute.xlu0 %1935
    %s1938 = sor.u32 256, 10
    %1939 = vbcast.lane.b32.xlu0 %v1652, %s1938
    %v1940 = vpop.permute.xlu0 %1939
    %s1942 = sor.u32 256, 2
    %1943 = vbcast.lane.b32.xlu0 %v1664, %s1942
    %v1944 = vpop.permute.xlu0 %1943
    %s1946 = sor.u32 256, 10
    %1947 = vbcast.lane.b32.xlu0 %v1664, %s1946
    %v1948 = vpop.permute.xlu0 %1947
    %s1950 = sor.u32 256, 2
    %1951 = vbcast.lane.b32.xlu0 %v1676, %s1950
    %v1952 = vpop.permute.xlu0 %1951
    %s1954 = sor.u32 256, 10
    %1955 = vbcast.lane.b32.xlu0 %v1676, %s1954
    %v1956 = vpop.permute.xlu0 %1955
    %s1958 = sor.u32 256, 2
    %1959 = vbcast.lane.b32.xlu0 %v1688, %s1958
    %v1960 = vpop.permute.xlu0 %1959
    %s1962 = sor.u32 256, 10
    %1963 = vbcast.lane.b32.xlu0 %v1688, %s1962
    %v1964 = vpop.permute.xlu0 %1963
    %s1966 = sor.u32 256, 2
    %1967 = vbcast.lane.b32.xlu0 %v1700, %s1966
    %v1968 = vpop.permute.xlu0 %1967
    %s1970 = sor.u32 256, 10
    %1971 = vbcast.lane.b32.xlu0 %v1700, %s1970
    %v1972 = vpop.permute.xlu0 %1971
    %s1974 = sor.u32 256, 2
    %1975 = vbcast.lane.b32.xlu0 %v1712, %s1974
    %v1976 = vpop.permute.xlu0 %1975
    %s1978 = sor.u32 256, 10
    %1979 = vbcast.lane.b32.xlu0 %v1712, %s1978
    %v1980 = vpop.permute.xlu0 %1979
    %s1982 = sor.u32 256, 2
    %1983 = vbcast.lane.b32.xlu0 %v1724, %s1982
    %v1984 = vpop.permute.xlu0 %1983
    %s1986 = sor.u32 256, 10
    %1987 = vbcast.lane.b32.xlu0 %v1724, %s1986
    %v1988 = vpop.permute.xlu0 %1987
    %v1989 = vsub.f32 %v619, %v270
    %v1990 = vsub.f32 %v619, %v274
    %v1991 = vsub.f32 %v623, %v281
    %v1992 = vsub.f32 %v623, %v285
    %v1993 = vsub.f32 %v627, %v292
    %v1994 = vsub.f32 %v627, %v296
    %v1995 = vsub.f32 %v631, %v303
    %v1996 = vsub.f32 %v631, %v307
    %v1997 = vsub.f32 %v635, %v314
    %v1998 = vsub.f32 %v635, %v318
    %v1999 = vsub.f32 %v639, %v325
    %v2000 = vsub.f32 %v639, %v329
    %v2001 = vsub.f32 %v643, %v336
    %v2002 = vsub.f32 %v643, %v340
    %v2003 = vsub.f32 %v647, %v347
    %v2004 = vsub.f32 %v647, %v351
    %v2005 = vsub.f32 %v651, %v358
    %v2006 = vsub.f32 %v651, %v362
    %v2007 = vsub.f32 %v655, %v369
    %v2008 = vsub.f32 %v655, %v373
    %v2009 = vsub.f32 %v659, %v380
    %v2010 = vsub.f32 %v659, %v384
    %v2011 = vsub.f32 %v663, %v391
    %v2012 = vsub.f32 %v663, %v395
    %v2013 = vsub.f32 %v667, %v402
    %v2014 = vsub.f32 %v667, %v406
    %v2015 = vsub.f32 %v671, %v413
    %v2016 = vsub.f32 %v671, %v417
    %v2017 = vsub.f32 %v675, %v424
    %v2018 = vsub.f32 %v675, %v428
    %v2019 = vsub.f32 %v679, %v435
    %v2020 = vsub.f32 %v679, %v439
    %v2021 = vsub.f32 %v683, %v446
    %v2022 = vsub.f32 %v683, %v450
    %v2023 = vsub.f32 %v687, %v457
    %v2024 = vsub.f32 %v687, %v461
    %v2025 = vsub.f32 %v691, %v468
    %v2026 = vsub.f32 %v691, %v472
    %v2027 = vsub.f32 %v695, %v479
    %v2028 = vsub.f32 %v695, %v483
    %v2029 = vsub.f32 %v699, %v490
    %v2030 = vsub.f32 %v699, %v494
    %v2031 = vsub.f32 %v703, %v501
    %v2032 = vsub.f32 %v703, %v505
    %v2033 = vsub.f32 %v707, %v512
    %v2034 = vsub.f32 %v707, %v516
    %v2035 = vsub.f32 %v711, %v523
    %v2036 = vsub.f32 %v711, %v527
    %v2037 = vsub.f32 %v715, %v534
    %v2038 = vsub.f32 %v715, %v538
    %v2039 = vsub.f32 %v719, %v545
    %v2040 = vsub.f32 %v719, %v549
    %v2041 = vsub.f32 %v723, %v556
    %v2042 = vsub.f32 %v723, %v560
    %v2043 = vsub.f32 %v727, %v567
    %v2044 = vsub.f32 %v727, %v571
    %v2045 = vsub.f32 %v731, %v578
    %v2046 = vsub.f32 %v731, %v582
    %v2047 = vsub.f32 %v735, %v589
    %v2048 = vsub.f32 %v735, %v593
    %v2049 = vsub.f32 %v739, %v600
    %v2050 = vsub.f32 %v739, %v604
    %v2051 = vsub.f32 %v743, %v611
    %v2052 = vsub.f32 %v743, %v615
    %v2053 = vmul.f32 %v1989, %v1356
    %v2054 = vmul.f32 %v1990, %v1360
    %v2055 = vmul.f32 %v1991, %v1368
    %v2056 = vmul.f32 %v1992, %v1372
    %v2057 = vmul.f32 %v1993, %v1380
    %v2058 = vmul.f32 %v1994, %v1384
    %v2059 = vmul.f32 %v1995, %v1392
    %v2060 = vmul.f32 %v1996, %v1396
    %v2061 = vmul.f32 %v1997, %v1404
    %v2062 = vmul.f32 %v1998, %v1408
    %v2063 = vmul.f32 %v1999, %v1416
    %v2064 = vmul.f32 %v2000, %v1420
    %v2065 = vmul.f32 %v2001, %v1428
    %v2066 = vmul.f32 %v2002, %v1432
    %v2067 = vmul.f32 %v2003, %v1440
    %v2068 = vmul.f32 %v2004, %v1444
    %v2069 = vmul.f32 %v2005, %v1452
    %v2070 = vmul.f32 %v2006, %v1456
    %v2071 = vmul.f32 %v2007, %v1464
    %v2072 = vmul.f32 %v2008, %v1468
    %v2073 = vmul.f32 %v2009, %v1476
    %v2074 = vmul.f32 %v2010, %v1480
    %v2075 = vmul.f32 %v2011, %v1488
    %v2076 = vmul.f32 %v2012, %v1492
    %v2077 = vmul.f32 %v2013, %v1500
    %v2078 = vmul.f32 %v2014, %v1504
    %v2079 = vmul.f32 %v2015, %v1512
    %v2080 = vmul.f32 %v2016, %v1516
    %v2081 = vmul.f32 %v2017, %v1524
    %v2082 = vmul.f32 %v2018, %v1528
    %v2083 = vmul.f32 %v2019, %v1536
    %v2084 = vmul.f32 %v2020, %v1540
    %v2085 = vmul.f32 %v2021, %v1548
    %v2086 = vmul.f32 %v2022, %v1552
    %v2087 = vmul.f32 %v2023, %v1560
    %v2088 = vmul.f32 %v2024, %v1564
    %v2089 = vmul.f32 %v2025, %v1572
    %v2090 = vmul.f32 %v2026, %v1576
    %v2091 = vmul.f32 %v2027, %v1584
    %v2092 = vmul.f32 %v2028, %v1588
    %v2093 = vmul.f32 %v2029, %v1596
    %v2094 = vmul.f32 %v2030, %v1600
    %v2095 = vmul.f32 %v2031, %v1608
    %v2096 = vmul.f32 %v2032, %v1612
    %v2097 = vmul.f32 %v2033, %v1620
    %v2098 = vmul.f32 %v2034, %v1624
    %v2099 = vmul.f32 %v2035, %v1632
    %v2100 = vmul.f32 %v2036, %v1636
    %v2101 = vmul.f32 %v2037, %v1644
    %v2102 = vmul.f32 %v2038, %v1648
    %v2103 = vmul.f32 %v2039, %v1656
    %v2104 = vmul.f32 %v2040, %v1660
    %v2105 = vmul.f32 %v2041, %v1668
    %v2106 = vmul.f32 %v2042, %v1672
    %v2107 = vmul.f32 %v2043, %v1680
    %v2108 = vmul.f32 %v2044, %v1684
    %v2109 = vmul.f32 %v2045, %v1692
    %v2110 = vmul.f32 %v2046, %v1696
    %v2111 = vmul.f32 %v2047, %v1704
    %v2112 = vmul.f32 %v2048, %v1708
    %v2113 = vmul.f32 %v2049, %v1716
    %v2114 = vmul.f32 %v2050, %v1720
    %v2115 = vmul.f32 %v2051, %v1728
    %v2116 = vmul.f32 %v2052, %v1732
    %v2117 = vsub.f32 %v270, %v619
    %v2118 = vsub.f32 %v274, %v619
    %v2119 = vsub.f32 %v281, %v623
    %v2120 = vsub.f32 %v285, %v623
    %v2121 = vsub.f32 %v292, %v627
    %v2122 = vsub.f32 %v296, %v627
    %v2123 = vsub.f32 %v303, %v631
    %v2124 = vsub.f32 %v307, %v631
    %v2125 = vsub.f32 %v314, %v635
    %v2126 = vsub.f32 %v318, %v635
    %v2127 = vsub.f32 %v325, %v639
    %v2128 = vsub.f32 %v329, %v639
    %v2129 = vsub.f32 %v336, %v643
    %v2130 = vsub.f32 %v340, %v643
    %v2131 = vsub.f32 %v347, %v647
    %v2132 = vsub.f32 %v351, %v647
    %v2133 = vsub.f32 %v358, %v651
    %v2134 = vsub.f32 %v362, %v651
    %v2135 = vsub.f32 %v369, %v655
    %v2136 = vsub.f32 %v373, %v655
    %v2137 = vsub.f32 %v380, %v659
    %v2138 = vsub.f32 %v384, %v659
    %v2139 = vsub.f32 %v391, %v663
    %v2140 = vsub.f32 %v395, %v663
    %v2141 = vsub.f32 %v402, %v667
    %v2142 = vsub.f32 %v406, %v667
    %v2143 = vsub.f32 %v413, %v671
    %v2144 = vsub.f32 %v417, %v671
    %v2145 = vsub.f32 %v424, %v675
    %v2146 = vsub.f32 %v428, %v675
    %v2147 = vsub.f32 %v435, %v679
    %v2148 = vsub.f32 %v439, %v679
    %v2149 = vsub.f32 %v446, %v683
    %v2150 = vsub.f32 %v450, %v683
    %v2151 = vsub.f32 %v457, %v687
    %v2152 = vsub.f32 %v461, %v687
    %v2153 = vsub.f32 %v468, %v691
    %v2154 = vsub.f32 %v472, %v691
    %v2155 = vsub.f32 %v479, %v695
    %v2156 = vsub.f32 %v483, %v695
    %v2157 = vsub.f32 %v490, %v699
    %v2158 = vsub.f32 %v494, %v699
    %v2159 = vsub.f32 %v501, %v703
    %v2160 = vsub.f32 %v505, %v703
    %v2161 = vsub.f32 %v512, %v707
    %v2162 = vsub.f32 %v516, %v707
    %v2163 = vsub.f32 %v523, %v711
    %v2164 = vsub.f32 %v527, %v711
    %v2165 = vsub.f32 %v534, %v715
    %v2166 = vsub.f32 %v538, %v715
    %v2167 = vsub.f32 %v545, %v719
    %v2168 = vsub.f32 %v549, %v719
    %v2169 = vsub.f32 %v556, %v723
    %v2170 = vsub.f32 %v560, %v723
    %v2171 = vsub.f32 %v567, %v727
    %v2172 = vsub.f32 %v571, %v727
    %v2173 = vsub.f32 %v578, %v731
    %v2174 = vsub.f32 %v582, %v731
    %v2175 = vsub.f32 %v589, %v735
    %v2176 = vsub.f32 %v593, %v735
    %v2177 = vsub.f32 %v600, %v739
    %v2178 = vsub.f32 %v604, %v739
    %v2179 = vsub.f32 %v611, %v743
    %v2180 = vsub.f32 %v615, %v743
    %vm2245 = vcmask 1041408
    %v2246 = vrot.slane %v1736, 6
    %v2247 = vrot.slane %v1740, 6
    %v2248 = vsel %vm2245, %v2246, %v2247
    %v2249 = vrot.slane %v1744, 6
    %v2250 = vrot.slane %v1748, 6
    %v2251 = vsel %vm2245, %v2249, %v2250
    %v2252 = vrot.slane %v1752, 6
    %v2253 = vrot.slane %v1756, 6
    %v2254 = vsel %vm2245, %v2252, %v2253
    %v2255 = vrot.slane %v1760, 6
    %v2256 = vrot.slane %v1764, 6
    %v2257 = vsel %vm2245, %v2255, %v2256
    %v2258 = vrot.slane %v1768, 6
    %v2259 = vrot.slane %v1772, 6
    %v2260 = vsel %vm2245, %v2258, %v2259
    %v2261 = vrot.slane %v1776, 6
    %v2262 = vrot.slane %v1780, 6
    %v2263 = vsel %vm2245, %v2261, %v2262
    %v2264 = vrot.slane %v1784, 6
    %v2265 = vrot.slane %v1788, 6
    %v2266 = vsel %vm2245, %v2264, %v2265
    %v2267 = vrot.slane %v1792, 6
    %v2268 = vrot.slane %v1796, 6
    %v2269 = vsel %vm2245, %v2267, %v2268
    %v2270 = vrot.slane %v1800, 6
    %v2271 = vrot.slane %v1804, 6
    %v2272 = vsel %vm2245, %v2270, %v2271
    %v2273 = vrot.slane %v1808, 6
    %v2274 = vrot.slane %v1812, 6
    %v2275 = vsel %vm2245, %v2273, %v2274
    %v2276 = vrot.slane %v1816, 6
    %v2277 = vrot.slane %v1820, 6
    %v2278 = vsel %vm2245, %v2276, %v2277
    %v2279 = vrot.slane %v1824, 6
    %v2280 = vrot.slane %v1828, 6
    %v2281 = vsel %vm2245, %v2279, %v2280
    %v2282 = vrot.slane %v1832, 6
    %v2283 = vrot.slane %v1836, 6
    %v2284 = vsel %vm2245, %v2282, %v2283
    %v2285 = vrot.slane %v1840, 6
    %v2286 = vrot.slane %v1844, 6
    %v2287 = vsel %vm2245, %v2285, %v2286
    %v2288 = vrot.slane %v1848, 6
    %v2289 = vrot.slane %v1852, 6
    %v2290 = vsel %vm2245, %v2288, %v2289
    %v2291 = vrot.slane %v1856, 6
    %v2292 = vrot.slane %v1860, 6
    %v2293 = vsel %vm2245, %v2291, %v2292
    %v2294 = vrot.slane %v1864, 6
    %v2295 = vrot.slane %v1868, 6
    %v2296 = vsel %vm2245, %v2294, %v2295
    %v2297 = vrot.slane %v1872, 6
    %v2298 = vrot.slane %v1876, 6
    %v2299 = vsel %vm2245, %v2297, %v2298
    %v2300 = vrot.slane %v1880, 6
    %v2301 = vrot.slane %v1884, 6
    %v2302 = vsel %vm2245, %v2300, %v2301
    %v2303 = vrot.slane %v1888, 6
    %v2304 = vrot.slane %v1892, 6
    %v2305 = vsel %vm2245, %v2303, %v2304
    %v2306 = vrot.slane %v1896, 6
    %v2307 = vrot.slane %v1900, 6
    %v2308 = vsel %vm2245, %v2306, %v2307
    %v2309 = vrot.slane %v1904, 6
    %v2310 = vrot.slane %v1908, 6
    %v2311 = vsel %vm2245, %v2309, %v2310
    %v2312 = vrot.slane %v1912, 6
    %v2313 = vrot.slane %v1916, 6
    %v2314 = vsel %vm2245, %v2312, %v2313
    %v2315 = vrot.slane %v1920, 6
    %v2316 = vrot.slane %v1924, 6
    %v2317 = vsel %vm2245, %v2315, %v2316
    %v2318 = vrot.slane %v1928, 6
    %v2319 = vrot.slane %v1932, 6
    %v2320 = vsel %vm2245, %v2318, %v2319
    %v2321 = vrot.slane %v1936, 6
    %v2322 = vrot.slane %v1940, 6
    %v2323 = vsel %vm2245, %v2321, %v2322
    %v2324 = vrot.slane %v1944, 6
    %v2325 = vrot.slane %v1948, 6
    %v2326 = vsel %vm2245, %v2324, %v2325
    %v2327 = vrot.slane %v1952, 6
    %v2328 = vrot.slane %v1956, 6
    %v2329 = vsel %vm2245, %v2327, %v2328
    %v2330 = vrot.slane %v1960, 6
    %v2331 = vrot.slane %v1964, 6
    %v2332 = vsel %vm2245, %v2330, %v2331
    %v2333 = vrot.slane %v1968, 6
    %v2334 = vrot.slane %v1972, 6
    %v2335 = vsel %vm2245, %v2333, %v2334
    %v2336 = vrot.slane %v1976, 6
    %v2337 = vrot.slane %v1980, 6
    %v2338 = vsel %vm2245, %v2336, %v2337
    %v2339 = vrot.slane %v1984, 6
    %v2340 = vrot.slane %v1988, 6
    %v2341 = vsel %vm2245, %v2339, %v2340
    %v2406 = vmul.f32 %v2117, %v2246
    %v2407 = vmul.f32 %v2118, %v2248
    %v2408 = vmul.f32 %v2119, %v2249
    %v2409 = vmul.f32 %v2120, %v2251
    %v2410 = vmul.f32 %v2121, %v2252
    %v2411 = vmul.f32 %v2122, %v2254
    %v2412 = vmul.f32 %v2123, %v2255
    %v2413 = vmul.f32 %v2124, %v2257
    %v2414 = vmul.f32 %v2125, %v2258
    %v2415 = vmul.f32 %v2126, %v2260
    %v2416 = vmul.f32 %v2127, %v2261
    %v2417 = vmul.f32 %v2128, %v2263
    %v2418 = vmul.f32 %v2129, %v2264
    %v2419 = vmul.f32 %v2130, %v2266
    %v2420 = vmul.f32 %v2131, %v2267
    %v2421 = vmul.f32 %v2132, %v2269
    %v2422 = vmul.f32 %v2133, %v2270
    %v2423 = vmul.f32 %v2134, %v2272
    %v2424 = vmul.f32 %v2135, %v2273
    %v2425 = vmul.f32 %v2136, %v2275
    %v2426 = vmul.f32 %v2137, %v2276
    %v2427 = vmul.f32 %v2138, %v2278
    %v2428 = vmul.f32 %v2139, %v2279
    %v2429 = vmul.f32 %v2140, %v2281
    %v2430 = vmul.f32 %v2141, %v2282
    %v2431 = vmul.f32 %v2142, %v2284
    %v2432 = vmul.f32 %v2143, %v2285
    %v2433 = vmul.f32 %v2144, %v2287
    %v2434 = vmul.f32 %v2145, %v2288
    %v2435 = vmul.f32 %v2146, %v2290
    %v2436 = vmul.f32 %v2147, %v2291
    %v2437 = vmul.f32 %v2148, %v2293
    %v2438 = vmul.f32 %v2149, %v2294
    %v2439 = vmul.f32 %v2150, %v2296
    %v2440 = vmul.f32 %v2151, %v2297
    %v2441 = vmul.f32 %v2152, %v2299
    %v2442 = vmul.f32 %v2153, %v2300
    %v2443 = vmul.f32 %v2154, %v2302
    %v2444 = vmul.f32 %v2155, %v2303
    %v2445 = vmul.f32 %v2156, %v2305
    %v2446 = vmul.f32 %v2157, %v2306
    %v2447 = vmul.f32 %v2158, %v2308
    %v2448 = vmul.f32 %v2159, %v2309
    %v2449 = vmul.f32 %v2160, %v2311
    %v2450 = vmul.f32 %v2161, %v2312
    %v2451 = vmul.f32 %v2162, %v2314
    %v2452 = vmul.f32 %v2163, %v2315
    %v2453 = vmul.f32 %v2164, %v2317
    %v2454 = vmul.f32 %v2165, %v2318
    %v2455 = vmul.f32 %v2166, %v2320
    %v2456 = vmul.f32 %v2167, %v2321
    %v2457 = vmul.f32 %v2168, %v2323
    %v2458 = vmul.f32 %v2169, %v2324
    %v2459 = vmul.f32 %v2170, %v2326
    %v2460 = vmul.f32 %v2171, %v2327
    %v2461 = vmul.f32 %v2172, %v2329
    %v2462 = vmul.f32 %v2173, %v2330
    %v2463 = vmul.f32 %v2174, %v2332
    %v2464 = vmul.f32 %v2175, %v2333
    %v2465 = vmul.f32 %v2176, %v2335
    %v2466 = vmul.f32 %v2177, %v2336
    %v2467 = vmul.f32 %v2178, %v2338
    %v2468 = vmul.f32 %v2179, %v2339
    %v2469 = vmul.f32 %v2180, %v2341
    %v2470 = vmul.f32 %v2053, %v1257
    %v2471 = vmul.f32 %v2054, %v1258
    %v2472 = vmul.f32 %v2055, %v1259
    %v2473 = vmul.f32 %v2056, %v1260
    %v2474 = vmul.f32 %v2057, %v1261
    %v2475 = vmul.f32 %v2058, %v1262
    %v2476 = vmul.f32 %v2059, %v1263
    %v2477 = vmul.f32 %v2060, %v1264
    %v2478 = vmul.f32 %v2061, %v1265
    %v2479 = vmul.f32 %v2062, %v1266
    %v2480 = vmul.f32 %v2063, %v1267
    %v2481 = vmul.f32 %v2064, %v1268
    %v2482 = vmul.f32 %v2065, %v1269
    %v2483 = vmul.f32 %v2066, %v1270
    %v2484 = vmul.f32 %v2067, %v1271
    %v2485 = vmul.f32 %v2068, %v1272
    %v2486 = vmul.f32 %v2069, %v1273
    %v2487 = vmul.f32 %v2070, %v1274
    %v2488 = vmul.f32 %v2071, %v1275
    %v2489 = vmul.f32 %v2072, %v1276
    %v2490 = vmul.f32 %v2073, %v1277
    %v2491 = vmul.f32 %v2074, %v1278
    %v2492 = vmul.f32 %v2075, %v1279
    %v2493 = vmul.f32 %v2076, %v1280
    %v2494 = vmul.f32 %v2077, %v1281
    %v2495 = vmul.f32 %v2078, %v1282
    %v2496 = vmul.f32 %v2079, %v1283
    %v2497 = vmul.f32 %v2080, %v1284
    %v2498 = vmul.f32 %v2081, %v1285
    %v2499 = vmul.f32 %v2082, %v1286
    %v2500 = vmul.f32 %v2083, %v1287
    %v2501 = vmul.f32 %v2084, %v1288
    %v2502 = vmul.f32 %v2085, %v1289
    %v2503 = vmul.f32 %v2086, %v1290
    %v2504 = vmul.f32 %v2087, %v1291
    %v2505 = vmul.f32 %v2088, %v1292
    %v2506 = vmul.f32 %v2089, %v1293
    %v2507 = vmul.f32 %v2090, %v1294
    %v2508 = vmul.f32 %v2091, %v1295
    %v2509 = vmul.f32 %v2092, %v1296
    %v2510 = vmul.f32 %v2093, %v1297
    %v2511 = vmul.f32 %v2094, %v1298
    %v2512 = vmul.f32 %v2095, %v1299
    %v2513 = vmul.f32 %v2096, %v1300
    %v2514 = vmul.f32 %v2097, %v1301
    %v2515 = vmul.f32 %v2098, %v1302
    %v2516 = vmul.f32 %v2099, %v1303
    %v2517 = vmul.f32 %v2100, %v1304
    %v2518 = vmul.f32 %v2101, %v1305
    %v2519 = vmul.f32 %v2102, %v1306
    %v2520 = vmul.f32 %v2103, %v1307
    %v2521 = vmul.f32 %v2104, %v1308
    %v2522 = vmul.f32 %v2105, %v1309
    %v2523 = vmul.f32 %v2106, %v1310
    %v2524 = vmul.f32 %v2107, %v1311
    %v2525 = vmul.f32 %v2108, %v1312
    %v2526 = vmul.f32 %v2109, %v1313
    %v2527 = vmul.f32 %v2110, %v1314
    %v2528 = vmul.f32 %v2111, %v1315
    %v2529 = vmul.f32 %v2112, %v1316
    %v2530 = vmul.f32 %v2113, %v1317
    %v2531 = vmul.f32 %v2114, %v1318
    %v2532 = vmul.f32 %v2115, %v1319
    %v2533 = vmul.f32 %v2116, %v1320
    %vm2598 = vcmask 1040384
    %v2599 = vrot.slane %v1257, 7
    %v2600 = vrot.slane %v1258, 7
    %v2601 = vsel %vm2598, %v2599, %v2600
    %v2602 = vrot.slane %v1259, 7
    %v2603 = vrot.slane %v1260, 7
    %v2604 = vsel %vm2598, %v2602, %v2603
    %v2605 = vrot.slane %v1261, 7
    %v2606 = vrot.slane %v1262, 7
    %v2607 = vsel %vm2598, %v2605, %v2606
    %v2608 = vrot.slane %v1263, 7
    %v2609 = vrot.slane %v1264, 7
    %v2610 = vsel %vm2598, %v2608, %v2609
    %v2611 = vrot.slane %v1265, 7
    %v2612 = vrot.slane %v1266, 7
    %v2613 = vsel %vm2598, %v2611, %v2612
    %v2614 = vrot.slane %v1267, 7
    %v2615 = vrot.slane %v1268, 7
    %v2616 = vsel %vm2598, %v2614, %v2615
    %v2617 = vrot.slane %v1269, 7
    %v2618 = vrot.slane %v1270, 7
    %v2619 = vsel %vm2598, %v2617, %v2618
    %v2620 = vrot.slane %v1271, 7
    %v2621 = vrot.slane %v1272, 7
    %v2622 = vsel %vm2598, %v2620, %v2621
    %v2623 = vrot.slane %v1273, 7
    %v2624 = vrot.slane %v1274, 7
    %v2625 = vsel %vm2598, %v2623, %v2624
    %v2626 = vrot.slane %v1275, 7
    %v2627 = vrot.slane %v1276, 7
    %v2628 = vsel %vm2598, %v2626, %v2627
    %v2629 = vrot.slane %v1277, 7
    %v2630 = vrot.slane %v1278, 7
    %v2631 = vsel %vm2598, %v2629, %v2630
    %v2632 = vrot.slane %v1279, 7
    %v2633 = vrot.slane %v1280, 7
    %v2634 = vsel %vm2598, %v2632, %v2633
    %v2635 = vrot.slane %v1281, 7
    %v2636 = vrot.slane %v1282, 7
    %v2637 = vsel %vm2598, %v2635, %v2636
    %v2638 = vrot.slane %v1283, 7
    %v2639 = vrot.slane %v1284, 7
    %v2640 = vsel %vm2598, %v2638, %v2639
    %v2641 = vrot.slane %v1285, 7
    %v2642 = vrot.slane %v1286, 7
    %v2643 = vsel %vm2598, %v2641, %v2642
    %v2644 = vrot.slane %v1287, 7
    %v2645 = vrot.slane %v1288, 7
    %v2646 = vsel %vm2598, %v2644, %v2645
    %v2647 = vrot.slane %v1289, 7
    %v2648 = vrot.slane %v1290, 7
    %v2649 = vsel %vm2598, %v2647, %v2648
    %v2650 = vrot.slane %v1291, 7
    %v2651 = vrot.slane %v1292, 7
    %v2652 = vsel %vm2598, %v2650, %v2651
    %v2653 = vrot.slane %v1293, 7
    %v2654 = vrot.slane %v1294, 7
    %v2655 = vsel %vm2598, %v2653, %v2654
    %v2656 = vrot.slane %v1295, 7
    %v2657 = vrot.slane %v1296, 7
    %v2658 = vsel %vm2598, %v2656, %v2657
    %v2659 = vrot.slane %v1297, 7
    %v2660 = vrot.slane %v1298, 7
    %v2661 = vsel %vm2598, %v2659, %v2660
    %v2662 = vrot.slane %v1299, 7
    %v2663 = vrot.slane %v1300, 7
    %v2664 = vsel %vm2598, %v2662, %v2663
    %v2665 = vrot.slane %v1301, 7
    %v2666 = vrot.slane %v1302, 7
    %v2667 = vsel %vm2598, %v2665, %v2666
    %v2668 = vrot.slane %v1303, 7
    %v2669 = vrot.slane %v1304, 7
    %v2670 = vsel %vm2598, %v2668, %v2669
    %v2671 = vrot.slane %v1305, 7
    %v2672 = vrot.slane %v1306, 7
    %v2673 = vsel %vm2598, %v2671, %v2672
    %v2674 = vrot.slane %v1307, 7
    %v2675 = vrot.slane %v1308, 7
    %v2676 = vsel %vm2598, %v2674, %v2675
    %v2677 = vrot.slane %v1309, 7
    %v2678 = vrot.slane %v1310, 7
    %v2679 = vsel %vm2598, %v2677, %v2678
    %v2680 = vrot.slane %v1311, 7
    %v2681 = vrot.slane %v1312, 7
    %v2682 = vsel %vm2598, %v2680, %v2681
    %v2683 = vrot.slane %v1313, 7
    %v2684 = vrot.slane %v1314, 7
    %v2685 = vsel %vm2598, %v2683, %v2684
    %v2686 = vrot.slane %v1315, 7
    %v2687 = vrot.slane %v1316, 7
    %v2688 = vsel %vm2598, %v2686, %v2687
    %v2689 = vrot.slane %v1317, 7
    %v2690 = vrot.slane %v1318, 7
    %v2691 = vsel %vm2598, %v2689, %v2690
    %v2692 = vrot.slane %v1319, 7
    %v2693 = vrot.slane %v1320, 7
    %v2694 = vsel %vm2598, %v2692, %v2693
    %v2759 = vmul.f32 %v2406, %v2599
    %v2760 = vmul.f32 %v2407, %v2601
    %v2761 = vmul.f32 %v2408, %v2602
    %v2762 = vmul.f32 %v2409, %v2604
    %v2763 = vmul.f32 %v2410, %v2605
    %v2764 = vmul.f32 %v2411, %v2607
    %v2765 = vmul.f32 %v2412, %v2608
    %v2766 = vmul.f32 %v2413, %v2610
    %v2767 = vmul.f32 %v2414, %v2611
    %v2768 = vmul.f32 %v2415, %v2613
    %v2769 = vmul.f32 %v2416, %v2614
    %v2770 = vmul.f32 %v2417, %v2616
    %v2771 = vmul.f32 %v2418, %v2617
    %v2772 = vmul.f32 %v2419, %v2619
    %v2773 = vmul.f32 %v2420, %v2620
    %v2774 = vmul.f32 %v2421, %v2622
    %v2775 = vmul.f32 %v2422, %v2623
    %v2776 = vmul.f32 %v2423, %v2625
    %v2777 = vmul.f32 %v2424, %v2626
    %v2778 = vmul.f32 %v2425, %v2628
    %v2779 = vmul.f32 %v2426, %v2629
    %v2780 = vmul.f32 %v2427, %v2631
    %v2781 = vmul.f32 %v2428, %v2632
    %v2782 = vmul.f32 %v2429, %v2634
    %v2783 = vmul.f32 %v2430, %v2635
    %v2784 = vmul.f32 %v2431, %v2637
    %v2785 = vmul.f32 %v2432, %v2638
    %v2786 = vmul.f32 %v2433, %v2640
    %v2787 = vmul.f32 %v2434, %v2641
    %v2788 = vmul.f32 %v2435, %v2643
    %v2789 = vmul.f32 %v2436, %v2644
    %v2790 = vmul.f32 %v2437, %v2646
    %v2791 = vmul.f32 %v2438, %v2647
    %v2792 = vmul.f32 %v2439, %v2649
    %v2793 = vmul.f32 %v2440, %v2650
    %v2794 = vmul.f32 %v2441, %v2652
    %v2795 = vmul.f32 %v2442, %v2653
    %v2796 = vmul.f32 %v2443, %v2655
    %v2797 = vmul.f32 %v2444, %v2656
    %v2798 = vmul.f32 %v2445, %v2658
    %v2799 = vmul.f32 %v2446, %v2659
    %v2800 = vmul.f32 %v2447, %v2661
    %v2801 = vmul.f32 %v2448, %v2662
    %v2802 = vmul.f32 %v2449, %v2664
    %v2803 = vmul.f32 %v2450, %v2665
    %v2804 = vmul.f32 %v2451, %v2667
    %v2805 = vmul.f32 %v2452, %v2668
    %v2806 = vmul.f32 %v2453, %v2670
    %v2807 = vmul.f32 %v2454, %v2671
    %v2808 = vmul.f32 %v2455, %v2673
    %v2809 = vmul.f32 %v2456, %v2674
    %v2810 = vmul.f32 %v2457, %v2676
    %v2811 = vmul.f32 %v2458, %v2677
    %v2812 = vmul.f32 %v2459, %v2679
    %v2813 = vmul.f32 %v2460, %v2680
    %v2814 = vmul.f32 %v2461, %v2682
    %v2815 = vmul.f32 %v2462, %v2683
    %v2816 = vmul.f32 %v2463, %v2685
    %v2817 = vmul.f32 %v2464, %v2686
    %v2818 = vmul.f32 %v2465, %v2688
    %v2819 = vmul.f32 %v2466, %v2689
    %v2820 = vmul.f32 %v2467, %v2691
    %v2821 = vmul.f32 %v2468, %v2692
    %v2822 = vmul.f32 %v2469, %v2694
    %vm2887 = vcmask 1045504
    %v2888 = vrot.slane %v2759, 2
    %v2889 = vrot.slane %v2760, 2
    %v2890 = vsel %vm2887, %v2888, %v2889
    %v2891 = vrot.slane %v2761, 2
    %v2892 = vrot.slane %v2762, 2
    %v2893 = vsel %vm2887, %v2891, %v2892
    %v2894 = vrot.slane %v2763, 2
    %v2895 = vrot.slane %v2764, 2
    %v2896 = vsel %vm2887, %v2894, %v2895
    %v2897 = vrot.slane %v2765, 2
    %v2898 = vrot.slane %v2766, 2
    %v2899 = vsel %vm2887, %v2897, %v2898
    %v2900 = vrot.slane %v2767, 2
    %v2901 = vrot.slane %v2768, 2
    %v2902 = vsel %vm2887, %v2900, %v2901
    %v2903 = vrot.slane %v2769, 2
    %v2904 = vrot.slane %v2770, 2
    %v2905 = vsel %vm2887, %v2903, %v2904
    %v2906 = vrot.slane %v2771, 2
    %v2907 = vrot.slane %v2772, 2
    %v2908 = vsel %vm2887, %v2906, %v2907
    %v2909 = vrot.slane %v2773, 2
    %v2910 = vrot.slane %v2774, 2
    %v2911 = vsel %vm2887, %v2909, %v2910
    %v2912 = vrot.slane %v2775, 2
    %v2913 = vrot.slane %v2776, 2
    %v2914 = vsel %vm2887, %v2912, %v2913
    %v2915 = vrot.slane %v2777, 2
    %v2916 = vrot.slane %v2778, 2
    %v2917 = vsel %vm2887, %v2915, %v2916
    %v2918 = vrot.slane %v2779, 2
    %v2919 = vrot.slane %v2780, 2
    %v2920 = vsel %vm2887, %v2918, %v2919
    %v2921 = vrot.slane %v2781, 2
    %v2922 = vrot.slane %v2782, 2
    %v2923 = vsel %vm2887, %v2921, %v2922
    %v2924 = vrot.slane %v2783, 2
    %v2925 = vrot.slane %v2784, 2
    %v2926 = vsel %vm2887, %v2924, %v2925
    %v2927 = vrot.slane %v2785, 2
    %v2928 = vrot.slane %v2786, 2
    %v2929 = vsel %vm2887, %v2927, %v2928
    %v2930 = vrot.slane %v2787, 2
    %v2931 = vrot.slane %v2788, 2
    %v2932 = vsel %vm2887, %v2930, %v2931
    %v2933 = vrot.slane %v2789, 2
    %v2934 = vrot.slane %v2790, 2
    %v2935 = vsel %vm2887, %v2933, %v2934
    %v2936 = vrot.slane %v2791, 2
    %v2937 = vrot.slane %v2792, 2
    %v2938 = vsel %vm2887, %v2936, %v2937
    %v2939 = vrot.slane %v2793, 2
    %v2940 = vrot.slane %v2794, 2
    %v2941 = vsel %vm2887, %v2939, %v2940
    %v2942 = vrot.slane %v2795, 2
    %v2943 = vrot.slane %v2796, 2
    %v2944 = vsel %vm2887, %v2942, %v2943
    %v2945 = vrot.slane %v2797, 2
    %v2946 = vrot.slane %v2798, 2
    %v2947 = vsel %vm2887, %v2945, %v2946
    %v2948 = vrot.slane %v2799, 2
    %v2949 = vrot.slane %v2800, 2
    %v2950 = vsel %vm2887, %v2948, %v2949
    %v2951 = vrot.slane %v2801, 2
    %v2952 = vrot.slane %v2802, 2
    %v2953 = vsel %vm2887, %v2951, %v2952
    %v2954 = vrot.slane %v2803, 2
    %v2955 = vrot.slane %v2804, 2
    %v2956 = vsel %vm2887, %v2954, %v2955
    %v2957 = vrot.slane %v2805, 2
    %v2958 = vrot.slane %v2806, 2
    %v2959 = vsel %vm2887, %v2957, %v2958
    %v2960 = vrot.slane %v2807, 2
    %v2961 = vrot.slane %v2808, 2
    %v2962 = vsel %vm2887, %v2960, %v2961
    %v2963 = vrot.slane %v2809, 2
    %v2964 = vrot.slane %v2810, 2
    %v2965 = vsel %vm2887, %v2963, %v2964
    %v2966 = vrot.slane %v2811, 2
    %v2967 = vrot.slane %v2812, 2
    %v2968 = vsel %vm2887, %v2966, %v2967
    %v2969 = vrot.slane %v2813, 2
    %v2970 = vrot.slane %v2814, 2
    %v2971 = vsel %vm2887, %v2969, %v2970
    %v2972 = vrot.slane %v2815, 2
    %v2973 = vrot.slane %v2816, 2
    %v2974 = vsel %vm2887, %v2972, %v2973
    %v2975 = vrot.slane %v2817, 2
    %v2976 = vrot.slane %v2818, 2
    %v2977 = vsel %vm2887, %v2975, %v2976
    %v2978 = vrot.slane %v2819, 2
    %v2979 = vrot.slane %v2820, 2
    %v2980 = vsel %vm2887, %v2978, %v2979
    %v2981 = vrot.slane %v2821, 2
    %v2982 = vrot.slane %v2822, 2
    %v2983 = vsel %vm2887, %v2981, %v2982
    %v3048 = vadd.f32 %v2470, %v2890
    %v3049 = vadd.f32 %v2471, %v2889
    %v3050 = vadd.f32 %v2472, %v2893
    %v3051 = vadd.f32 %v2473, %v2892
    %v3052 = vadd.f32 %v2474, %v2896
    %v3053 = vadd.f32 %v2475, %v2895
    %v3054 = vadd.f32 %v2476, %v2899
    %v3055 = vadd.f32 %v2477, %v2898
    %v3056 = vadd.f32 %v2478, %v2902
    %v3057 = vadd.f32 %v2479, %v2901
    %v3058 = vadd.f32 %v2480, %v2905
    %v3059 = vadd.f32 %v2481, %v2904
    %v3060 = vadd.f32 %v2482, %v2908
    %v3061 = vadd.f32 %v2483, %v2907
    %v3062 = vadd.f32 %v2484, %v2911
    %v3063 = vadd.f32 %v2485, %v2910
    %v3064 = vadd.f32 %v2486, %v2914
    %v3065 = vadd.f32 %v2487, %v2913
    %v3066 = vadd.f32 %v2488, %v2917
    %v3067 = vadd.f32 %v2489, %v2916
    %v3068 = vadd.f32 %v2490, %v2920
    %v3069 = vadd.f32 %v2491, %v2919
    %v3070 = vadd.f32 %v2492, %v2923
    %v3071 = vadd.f32 %v2493, %v2922
    %v3072 = vadd.f32 %v2494, %v2926
    %v3073 = vadd.f32 %v2495, %v2925
    %v3074 = vadd.f32 %v2496, %v2929
    %v3075 = vadd.f32 %v2497, %v2928
    %v3076 = vadd.f32 %v2498, %v2932
    %v3077 = vadd.f32 %v2499, %v2931
    %v3078 = vadd.f32 %v2500, %v2935
    %v3079 = vadd.f32 %v2501, %v2934
    %v3080 = vadd.f32 %v2502, %v2938
    %v3081 = vadd.f32 %v2503, %v2937
    %v3082 = vadd.f32 %v2504, %v2941
    %v3083 = vadd.f32 %v2505, %v2940
    %v3084 = vadd.f32 %v2506, %v2944
    %v3085 = vadd.f32 %v2507, %v2943
    %v3086 = vadd.f32 %v2508, %v2947
    %v3087 = vadd.f32 %v2509, %v2946
    %v3088 = vadd.f32 %v2510, %v2950
    %v3089 = vadd.f32 %v2511, %v2949
    %v3090 = vadd.f32 %v2512, %v2953
    %v3091 = vadd.f32 %v2513, %v2952
    %v3092 = vadd.f32 %v2514, %v2956
    %v3093 = vadd.f32 %v2515, %v2955
    %v3094 = vadd.f32 %v2516, %v2959
    %v3095 = vadd.f32 %v2517, %v2958
    %v3096 = vadd.f32 %v2518, %v2962
    %v3097 = vadd.f32 %v2519, %v2961
    %v3098 = vadd.f32 %v2520, %v2965
    %v3099 = vadd.f32 %v2521, %v2964
    %v3100 = vadd.f32 %v2522, %v2968
    %v3101 = vadd.f32 %v2523, %v2967
    %v3102 = vadd.f32 %v2524, %v2971
    %v3103 = vadd.f32 %v2525, %v2970
    %v3104 = vadd.f32 %v2526, %v2974
    %v3105 = vadd.f32 %v2527, %v2973
    %v3106 = vadd.f32 %v2528, %v2977
    %v3107 = vadd.f32 %v2529, %v2976
    %v3108 = vadd.f32 %v2530, %v2980
    %v3109 = vadd.f32 %v2531, %v2979
    %v3110 = vadd.f32 %v2532, %v2983
    %v3111 = vadd.f32 %v2533, %v2982
    %3112 = vrot.lane.b32.xlu0 %v36, 2
    %v3113 = vpop.permute.xlu0 %3112
    %3114 = vrot.lane.b32.xlu0 %v37, 2
    %v3115 = vpop.permute.xlu0 %3114
    %3116 = vrot.lane.b32.xlu0 %v38, 2
    %v3117 = vpop.permute.xlu0 %3116
    %3118 = vrot.lane.b32.xlu0 %v39, 2
    %v3119 = vpop.permute.xlu0 %3118
    %v3124 = vsub.f32 %v36, %v3113
    %v3125 = vsub.f32 %v37, %v3115
    %v3126 = vsub.f32 %v38, %v3117
    %v3127 = vsub.f32 %v39, %v3119
    %v3128 = vrcp.pop %v3124
    %v3129 = vmul.f32 1.0, %v3128
    %v3130 = vrcp.pop %v3125
    %v3131 = vmul.f32 1.0, %v3130
    %v3132 = vrcp.pop %v3126
    %v3133 = vmul.f32 1.0, %v3132
    %v3134 = vrcp.pop %v3127
    %v3135 = vmul.f32 1.0, %v3134
    %v3136 = vlaneseq
    %v3137 = vshrl.u32 %v3136, 7
    %v3138 = vsub.s32 0, %v3137
    %v3139 = vrot.slane %v3129, %v3138
    %s3141 = sor.u32 256, 2
    %3142 = vbcast.lane.b32.xlu0 %v3139, %s3141
    %v3143 = vpop.permute.xlu0 %3142
    %s3145 = sor.u32 256, 10
    %3146 = vbcast.lane.b32.xlu0 %v3139, %s3145
    %v3147 = vpop.permute.xlu0 %3146
    %v3148 = vlaneseq
    %v3149 = vshrl.u32 %v3148, 7
    %v3150 = vsub.s32 1, %v3149
    %v3151 = vrot.slane %v3129, %v3150
    %s3153 = sor.u32 256, 2
    %3154 = vbcast.lane.b32.xlu0 %v3151, %s3153
    %v3155 = vpop.permute.xlu0 %3154
    %s3157 = sor.u32 256, 10
    %3158 = vbcast.lane.b32.xlu0 %v3151, %s3157
    %v3159 = vpop.permute.xlu0 %3158
    %v3160 = vlaneseq
    %v3161 = vshrl.u32 %v3160, 7
    %v3162 = vsub.s32 2, %v3161
    %v3163 = vrot.slane %v3129, %v3162
    %s3165 = sor.u32 256, 2
    %3166 = vbcast.lane.b32.xlu0 %v3163, %s3165
    %v3167 = vpop.permute.xlu0 %3166
    %s3169 = sor.u32 256, 10
    %3170 = vbcast.lane.b32.xlu0 %v3163, %s3169
    %v3171 = vpop.permute.xlu0 %3170
    %v3172 = vlaneseq
    %v3173 = vshrl.u32 %v3172, 7
    %v3174 = vsub.s32 3, %v3173
    %v3175 = vrot.slane %v3129, %v3174
    %s3177 = sor.u32 256, 2
    %3178 = vbcast.lane.b32.xlu0 %v3175, %s3177
    %v3179 = vpop.permute.xlu0 %3178
    %s3181 = sor.u32 256, 10
    %3182 = vbcast.lane.b32.xlu0 %v3175, %s3181
    %v3183 = vpop.permute.xlu0 %3182
    %v3184 = vlaneseq
    %v3185 = vshrl.u32 %v3184, 7
    %v3186 = vsub.s32 4, %v3185
    %v3187 = vrot.slane %v3129, %v3186
    %s3189 = sor.u32 256, 2
    %3190 = vbcast.lane.b32.xlu0 %v3187, %s3189
    %v3191 = vpop.permute.xlu0 %3190
    %s3193 = sor.u32 256, 10
    %3194 = vbcast.lane.b32.xlu0 %v3187, %s3193
    %v3195 = vpop.permute.xlu0 %3194
    %v3196 = vlaneseq
    %v3197 = vshrl.u32 %v3196, 7
    %v3198 = vsub.s32 5, %v3197
    %v3199 = vrot.slane %v3129, %v3198
    %s3201 = sor.u32 256, 2
    %3202 = vbcast.lane.b32.xlu0 %v3199, %s3201
    %v3203 = vpop.permute.xlu0 %3202
    %s3205 = sor.u32 256, 10
    %3206 = vbcast.lane.b32.xlu0 %v3199, %s3205
    %v3207 = vpop.permute.xlu0 %3206
    %v3208 = vlaneseq
    %v3209 = vshrl.u32 %v3208, 7
    %v3210 = vsub.s32 6, %v3209
    %v3211 = vrot.slane %v3129, %v3210
    %s3213 = sor.u32 256, 2
    %3214 = vbcast.lane.b32.xlu0 %v3211, %s3213
    %v3215 = vpop.permute.xlu0 %3214
    %s3217 = sor.u32 256, 10
    %3218 = vbcast.lane.b32.xlu0 %v3211, %s3217
    %v3219 = vpop.permute.xlu0 %3218
    %v3220 = vlaneseq
    %v3221 = vshrl.u32 %v3220, 7
    %v3222 = vsub.s32 7, %v3221
    %v3223 = vrot.slane %v3129, %v3222
    %s3225 = sor.u32 256, 2
    %3226 = vbcast.lane.b32.xlu0 %v3223, %s3225
    %v3227 = vpop.permute.xlu0 %3226
    %s3229 = sor.u32 256, 10
    %3230 = vbcast.lane.b32.xlu0 %v3223, %s3229
    %v3231 = vpop.permute.xlu0 %3230
    %v3232 = vlaneseq
    %v3233 = vshrl.u32 %v3232, 7
    %v3234 = vsub.s32 0, %v3233
    %v3235 = vrot.slane %v3131, %v3234
    %s3237 = sor.u32 256, 2
    %3238 = vbcast.lane.b32.xlu0 %v3235, %s3237
    %v3239 = vpop.permute.xlu0 %3238
    %s3241 = sor.u32 256, 10
    %3242 = vbcast.lane.b32.xlu0 %v3235, %s3241
    %v3243 = vpop.permute.xlu0 %3242
    %v3244 = vlaneseq
    %v3245 = vshrl.u32 %v3244, 7
    %v3246 = vsub.s32 1, %v3245
    %v3247 = vrot.slane %v3131, %v3246
    %s3249 = sor.u32 256, 2
    %3250 = vbcast.lane.b32.xlu0 %v3247, %s3249
    %v3251 = vpop.permute.xlu0 %3250
    %s3253 = sor.u32 256, 10
    %3254 = vbcast.lane.b32.xlu0 %v3247, %s3253
    %v3255 = vpop.permute.xlu0 %3254
    %v3256 = vlaneseq
    %v3257 = vshrl.u32 %v3256, 7
    %v3258 = vsub.s32 2, %v3257
    %v3259 = vrot.slane %v3131, %v3258
    %s3261 = sor.u32 256, 2
    %3262 = vbcast.lane.b32.xlu0 %v3259, %s3261
    %v3263 = vpop.permute.xlu0 %3262
    %s3265 = sor.u32 256, 10
    %3266 = vbcast.lane.b32.xlu0 %v3259, %s3265
    %v3267 = vpop.permute.xlu0 %3266
    %v3268 = vlaneseq
    %v3269 = vshrl.u32 %v3268, 7
    %v3270 = vsub.s32 3, %v3269
    %v3271 = vrot.slane %v3131, %v3270
    %s3273 = sor.u32 256, 2
    %3274 = vbcast.lane.b32.xlu0 %v3271, %s3273
    %v3275 = vpop.permute.xlu0 %3274
    %s3277 = sor.u32 256, 10
    %3278 = vbcast.lane.b32.xlu0 %v3271, %s3277
    %v3279 = vpop.permute.xlu0 %3278
    %v3280 = vlaneseq
    %v3281 = vshrl.u32 %v3280, 7
    %v3282 = vsub.s32 4, %v3281
    %v3283 = vrot.slane %v3131, %v3282
    %s3285 = sor.u32 256, 2
    %3286 = vbcast.lane.b32.xlu0 %v3283, %s3285
    %v3287 = vpop.permute.xlu0 %3286
    %s3289 = sor.u32 256, 10
    %3290 = vbcast.lane.b32.xlu0 %v3283, %s3289
    %v3291 = vpop.permute.xlu0 %3290
    %v3292 = vlaneseq
    %v3293 = vshrl.u32 %v3292, 7
    %v3294 = vsub.s32 5, %v3293
    %v3295 = vrot.slane %v3131, %v3294
    %s3297 = sor.u32 256, 2
    %3298 = vbcast.lane.b32.xlu0 %v3295, %s3297
    %v3299 = vpop.permute.xlu0 %3298
    %s3301 = sor.u32 256, 10
    %3302 = vbcast.lane.b32.xlu0 %v3295, %s3301
    %v3303 = vpop.permute.xlu0 %3302
    %v3304 = vlaneseq
    %v3305 = vshrl.u32 %v3304, 7
    %v3306 = vsub.s32 6, %v3305
    %v3307 = vrot.slane %v3131, %v3306
    %s3309 = sor.u32 256, 2
    %3310 = vbcast.lane.b32.xlu0 %v3307, %s3309
    %v3311 = vpop.permute.xlu0 %3310
    %s3313 = sor.u32 256, 10
    %3314 = vbcast.lane.b32.xlu0 %v3307, %s3313
    %v3315 = vpop.permute.xlu0 %3314
    %v3316 = vlaneseq
    %v3317 = vshrl.u32 %v3316, 7
    %v3318 = vsub.s32 7, %v3317
    %v3319 = vrot.slane %v3131, %v3318
    %s3321 = sor.u32 256, 2
    %3322 = vbcast.lane.b32.xlu0 %v3319, %s3321
    %v3323 = vpop.permute.xlu0 %3322
    %s3325 = sor.u32 256, 10
    %3326 = vbcast.lane.b32.xlu0 %v3319, %s3325
    %v3327 = vpop.permute.xlu0 %3326
    %v3328 = vlaneseq
    %v3329 = vshrl.u32 %v3328, 7
    %v3330 = vsub.s32 0, %v3329
    %v3331 = vrot.slane %v3133, %v3330
    %s3333 = sor.u32 256, 2
    %3334 = vbcast.lane.b32.xlu0 %v3331, %s3333
    %v3335 = vpop.permute.xlu0 %3334
    %s3337 = sor.u32 256, 10
    %3338 = vbcast.lane.b32.xlu0 %v3331, %s3337
    %v3339 = vpop.permute.xlu0 %3338
    %v3340 = vlaneseq
    %v3341 = vshrl.u32 %v3340, 7
    %v3342 = vsub.s32 1, %v3341
    %v3343 = vrot.slane %v3133, %v3342
    %s3345 = sor.u32 256, 2
    %3346 = vbcast.lane.b32.xlu0 %v3343, %s3345
    %v3347 = vpop.permute.xlu0 %3346
    %s3349 = sor.u32 256, 10
    %3350 = vbcast.lane.b32.xlu0 %v3343, %s3349
    %v3351 = vpop.permute.xlu0 %3350
    %v3352 = vlaneseq
    %v3353 = vshrl.u32 %v3352, 7
    %v3354 = vsub.s32 2, %v3353
    %v3355 = vrot.slane %v3133, %v3354
    %s3357 = sor.u32 256, 2
    %3358 = vbcast.lane.b32.xlu0 %v3355, %s3357
    %v3359 = vpop.permute.xlu0 %3358
    %s3361 = sor.u32 256, 10
    %3362 = vbcast.lane.b32.xlu0 %v3355, %s3361
    %v3363 = vpop.permute.xlu0 %3362
    %v3364 = vlaneseq
    %v3365 = vshrl.u32 %v3364, 7
    %v3366 = vsub.s32 3, %v3365
    %v3367 = vrot.slane %v3133, %v3366
    %s3369 = sor.u32 256, 2
    %3370 = vbcast.lane.b32.xlu0 %v3367, %s3369
    %v3371 = vpop.permute.xlu0 %3370
    %s3373 = sor.u32 256, 10
    %3374 = vbcast.lane.b32.xlu0 %v3367, %s3373
    %v3375 = vpop.permute.xlu0 %3374
    %v3376 = vlaneseq
    %v3377 = vshrl.u32 %v3376, 7
    %v3378 = vsub.s32 4, %v3377
    %v3379 = vrot.slane %v3133, %v3378
    %s3381 = sor.u32 256, 2
    %3382 = vbcast.lane.b32.xlu0 %v3379, %s3381
    %v3383 = vpop.permute.xlu0 %3382
    %s3385 = sor.u32 256, 10
    %3386 = vbcast.lane.b32.xlu0 %v3379, %s3385
    %v3387 = vpop.permute.xlu0 %3386
    %v3388 = vlaneseq
    %v3389 = vshrl.u32 %v3388, 7
    %v3390 = vsub.s32 5, %v3389
    %v3391 = vrot.slane %v3133, %v3390
    %s3393 = sor.u32 256, 2
    %3394 = vbcast.lane.b32.xlu0 %v3391, %s3393
    %v3395 = vpop.permute.xlu0 %3394
    %s3397 = sor.u32 256, 10
    %3398 = vbcast.lane.b32.xlu0 %v3391, %s3397
    %v3399 = vpop.permute.xlu0 %3398
    %v3400 = vlaneseq
    %v3401 = vshrl.u32 %v3400, 7
    %v3402 = vsub.s32 6, %v3401
    %v3403 = vrot.slane %v3133, %v3402
    %s3405 = sor.u32 256, 2
    %3406 = vbcast.lane.b32.xlu0 %v3403, %s3405
    %v3407 = vpop.permute.xlu0 %3406
    %s3409 = sor.u32 256, 10
    %3410 = vbcast.lane.b32.xlu0 %v3403, %s3409
    %v3411 = vpop.permute.xlu0 %3410
    %v3412 = vlaneseq
    %v3413 = vshrl.u32 %v3412, 7
    %v3414 = vsub.s32 7, %v3413
    %v3415 = vrot.slane %v3133, %v3414
    %s3417 = sor.u32 256, 2
    %3418 = vbcast.lane.b32.xlu0 %v3415, %s3417
    %v3419 = vpop.permute.xlu0 %3418
    %s3421 = sor.u32 256, 10
    %3422 = vbcast.lane.b32.xlu0 %v3415, %s3421
    %v3423 = vpop.permute.xlu0 %3422
    %v3424 = vlaneseq
    %v3425 = vshrl.u32 %v3424, 7
    %v3426 = vsub.s32 0, %v3425
    %v3427 = vrot.slane %v3135, %v3426
    %s3429 = sor.u32 256, 2
    %3430 = vbcast.lane.b32.xlu0 %v3427, %s3429
    %v3431 = vpop.permute.xlu0 %3430
    %s3433 = sor.u32 256, 10
    %3434 = vbcast.lane.b32.xlu0 %v3427, %s3433
    %v3435 = vpop.permute.xlu0 %3434
    %v3436 = vlaneseq
    %v3437 = vshrl.u32 %v3436, 7
    %v3438 = vsub.s32 1, %v3437
    %v3439 = vrot.slane %v3135, %v3438
    %s3441 = sor.u32 256, 2
    %3442 = vbcast.lane.b32.xlu0 %v3439, %s3441
    %v3443 = vpop.permute.xlu0 %3442
    %s3445 = sor.u32 256, 10
    %3446 = vbcast.lane.b32.xlu0 %v3439, %s3445
    %v3447 = vpop.permute.xlu0 %3446
    %v3448 = vlaneseq
    %v3449 = vshrl.u32 %v3448, 7
    %v3450 = vsub.s32 2, %v3449
    %v3451 = vrot.slane %v3135, %v3450
    %s3453 = sor.u32 256, 2
    %3454 = vbcast.lane.b32.xlu0 %v3451, %s3453
    %v3455 = vpop.permute.xlu0 %3454
    %s3457 = sor.u32 256, 10
    %3458 = vbcast.lane.b32.xlu0 %v3451, %s3457
    %v3459 = vpop.permute.xlu0 %3458
    %v3460 = vlaneseq
    %v3461 = vshrl.u32 %v3460, 7
    %v3462 = vsub.s32 3, %v3461
    %v3463 = vrot.slane %v3135, %v3462
    %s3465 = sor.u32 256, 2
    %3466 = vbcast.lane.b32.xlu0 %v3463, %s3465
    %v3467 = vpop.permute.xlu0 %3466
    %s3469 = sor.u32 256, 10
    %3470 = vbcast.lane.b32.xlu0 %v3463, %s3469
    %v3471 = vpop.permute.xlu0 %3470
    %v3472 = vlaneseq
    %v3473 = vshrl.u32 %v3472, 7
    %v3474 = vsub.s32 4, %v3473
    %v3475 = vrot.slane %v3135, %v3474
    %s3477 = sor.u32 256, 2
    %3478 = vbcast.lane.b32.xlu0 %v3475, %s3477
    %v3479 = vpop.permute.xlu0 %3478
    %s3481 = sor.u32 256, 10
    %3482 = vbcast.lane.b32.xlu0 %v3475, %s3481
    %v3483 = vpop.permute.xlu0 %3482
    %v3484 = vlaneseq
    %v3485 = vshrl.u32 %v3484, 7
    %v3486 = vsub.s32 5, %v3485
    %v3487 = vrot.slane %v3135, %v3486
    %s3489 = sor.u32 256, 2
    %3490 = vbcast.lane.b32.xlu0 %v3487, %s3489
    %v3491 = vpop.permute.xlu0 %3490
    %s3493 = sor.u32 256, 10
    %3494 = vbcast.lane.b32.xlu0 %v3487, %s3493
    %v3495 = vpop.permute.xlu0 %3494
    %v3496 = vlaneseq
    %v3497 = vshrl.u32 %v3496, 7
    %v3498 = vsub.s32 6, %v3497
    %v3499 = vrot.slane %v3135, %v3498
    %s3501 = sor.u32 256, 2
    %3502 = vbcast.lane.b32.xlu0 %v3499, %s3501
    %v3503 = vpop.permute.xlu0 %3502
    %s3505 = sor.u32 256, 10
    %3506 = vbcast.lane.b32.xlu0 %v3499, %s3505
    %v3507 = vpop.permute.xlu0 %3506
    %v3508 = vlaneseq
    %v3509 = vshrl.u32 %v3508, 7
    %v3510 = vsub.s32 7, %v3509
    %v3511 = vrot.slane %v3135, %v3510
    %s3513 = sor.u32 256, 2
    %3514 = vbcast.lane.b32.xlu0 %v3511, %s3513
    %v3515 = vpop.permute.xlu0 %3514
    %s3517 = sor.u32 256, 10
    %3518 = vbcast.lane.b32.xlu0 %v3511, %s3517
    %v3519 = vpop.permute.xlu0 %3518
    %s3521 = sor.u32 256, 3
    %3522 = vbcast.lane.b32.xlu0 %v3139, %s3521
    %v3523 = vpop.permute.xlu0 %3522
    %s3525 = sor.u32 256, 11
    %3526 = vbcast.lane.b32.xlu0 %v3139, %s3525
    %v3527 = vpop.permute.xlu0 %3526
    %s3529 = sor.u32 256, 3
    %3530 = vbcast.lane.b32.xlu0 %v3151, %s3529
    %v3531 = vpop.permute.xlu0 %3530
    %s3533 = sor.u32 256, 11
    %3534 = vbcast.lane.b32.xlu0 %v3151, %s3533
    %v3535 = vpop.permute.xlu0 %3534
    %s3537 = sor.u32 256, 3
    %3538 = vbcast.lane.b32.xlu0 %v3163, %s3537
    %v3539 = vpop.permute.xlu0 %3538
    %s3541 = sor.u32 256, 11
    %3542 = vbcast.lane.b32.xlu0 %v3163, %s3541
    %v3543 = vpop.permute.xlu0 %3542
    %s3545 = sor.u32 256, 3
    %3546 = vbcast.lane.b32.xlu0 %v3175, %s3545
    %v3547 = vpop.permute.xlu0 %3546
    %s3549 = sor.u32 256, 11
    %3550 = vbcast.lane.b32.xlu0 %v3175, %s3549
    %v3551 = vpop.permute.xlu0 %3550
    %s3553 = sor.u32 256, 3
    %3554 = vbcast.lane.b32.xlu0 %v3187, %s3553
    %v3555 = vpop.permute.xlu0 %3554
    %s3557 = sor.u32 256, 11
    %3558 = vbcast.lane.b32.xlu0 %v3187, %s3557
    %v3559 = vpop.permute.xlu0 %3558
    %s3561 = sor.u32 256, 3
    %3562 = vbcast.lane.b32.xlu0 %v3199, %s3561
    %v3563 = vpop.permute.xlu0 %3562
    %s3565 = sor.u32 256, 11
    %3566 = vbcast.lane.b32.xlu0 %v3199, %s3565
    %v3567 = vpop.permute.xlu0 %3566
    %s3569 = sor.u32 256, 3
    %3570 = vbcast.lane.b32.xlu0 %v3211, %s3569
    %v3571 = vpop.permute.xlu0 %3570
    %s3573 = sor.u32 256, 11
    %3574 = vbcast.lane.b32.xlu0 %v3211, %s3573
    %v3575 = vpop.permute.xlu0 %3574
    %s3577 = sor.u32 256, 3
    %3578 = vbcast.lane.b32.xlu0 %v3223, %s3577
    %v3579 = vpop.permute.xlu0 %3578
    %s3581 = sor.u32 256, 11
    %3582 = vbcast.lane.b32.xlu0 %v3223, %s3581
    %v3583 = vpop.permute.xlu0 %3582
    %s3585 = sor.u32 256, 3
    %3586 = vbcast.lane.b32.xlu0 %v3235, %s3585
    %v3587 = vpop.permute.xlu0 %3586
    %s3589 = sor.u32 256, 11
    %3590 = vbcast.lane.b32.xlu0 %v3235, %s3589
    %v3591 = vpop.permute.xlu0 %3590
    %s3593 = sor.u32 256, 3
    %3594 = vbcast.lane.b32.xlu0 %v3247, %s3593
    %v3595 = vpop.permute.xlu0 %3594
    %s3597 = sor.u32 256, 11
    %3598 = vbcast.lane.b32.xlu0 %v3247, %s3597
    %v3599 = vpop.permute.xlu0 %3598
    %s3601 = sor.u32 256, 3
    %3602 = vbcast.lane.b32.xlu0 %v3259, %s3601
    %v3603 = vpop.permute.xlu0 %3602
    %s3605 = sor.u32 256, 11
    %3606 = vbcast.lane.b32.xlu0 %v3259, %s3605
    %v3607 = vpop.permute.xlu0 %3606
    %s3609 = sor.u32 256, 3
    %3610 = vbcast.lane.b32.xlu0 %v3271, %s3609
    %v3611 = vpop.permute.xlu0 %3610
    %s3613 = sor.u32 256, 11
    %3614 = vbcast.lane.b32.xlu0 %v3271, %s3613
    %v3615 = vpop.permute.xlu0 %3614
    %s3617 = sor.u32 256, 3
    %3618 = vbcast.lane.b32.xlu0 %v3283, %s3617
    %v3619 = vpop.permute.xlu0 %3618
    %s3621 = sor.u32 256, 11
    %3622 = vbcast.lane.b32.xlu0 %v3283, %s3621
    %v3623 = vpop.permute.xlu0 %3622
    %s3625 = sor.u32 256, 3
    %3626 = vbcast.lane.b32.xlu0 %v3295, %s3625
    %v3627 = vpop.permute.xlu0 %3626
    %s3629 = sor.u32 256, 11
    %3630 = vbcast.lane.b32.xlu0 %v3295, %s3629
    %v3631 = vpop.permute.xlu0 %3630
    %s3633 = sor.u32 256, 3
    %3634 = vbcast.lane.b32.xlu0 %v3307, %s3633
    %v3635 = vpop.permute.xlu0 %3634
    %s3637 = sor.u32 256, 11
    %3638 = vbcast.lane.b32.xlu0 %v3307, %s3637
    %v3639 = vpop.permute.xlu0 %3638
    %s3641 = sor.u32 256, 3
    %3642 = vbcast.lane.b32.xlu0 %v3319, %s3641
    %v3643 = vpop.permute.xlu0 %3642
    %s3645 = sor.u32 256, 11
    %3646 = vbcast.lane.b32.xlu0 %v3319, %s3645
    %v3647 = vpop.permute.xlu0 %3646
    %s3649 = sor.u32 256, 3
    %3650 = vbcast.lane.b32.xlu0 %v3331, %s3649
    %v3651 = vpop.permute.xlu0 %3650
    %s3653 = sor.u32 256, 11
    %3654 = vbcast.lane.b32.xlu0 %v3331, %s3653
    %v3655 = vpop.permute.xlu0 %3654
    %s3657 = sor.u32 256, 3
    %3658 = vbcast.lane.b32.xlu0 %v3343, %s3657
    %v3659 = vpop.permute.xlu0 %3658
    %s3661 = sor.u32 256, 11
    %3662 = vbcast.lane.b32.xlu0 %v3343, %s3661
    %v3663 = vpop.permute.xlu0 %3662
    %s3665 = sor.u32 256, 3
    %3666 = vbcast.lane.b32.xlu0 %v3355, %s3665
    %v3667 = vpop.permute.xlu0 %3666
    %s3669 = sor.u32 256, 11
    %3670 = vbcast.lane.b32.xlu0 %v3355, %s3669
    %v3671 = vpop.permute.xlu0 %3670
    %s3673 = sor.u32 256, 3
    %3674 = vbcast.lane.b32.xlu0 %v3367, %s3673
    %v3675 = vpop.permute.xlu0 %3674
    %s3677 = sor.u32 256, 11
    %3678 = vbcast.lane.b32.xlu0 %v3367, %s3677
    %v3679 = vpop.permute.xlu0 %3678
    %s3681 = sor.u32 256, 3
    %3682 = vbcast.lane.b32.xlu0 %v3379, %s3681
    %v3683 = vpop.permute.xlu0 %3682
    %s3685 = sor.u32 256, 11
    %3686 = vbcast.lane.b32.xlu0 %v3379, %s3685
    %v3687 = vpop.permute.xlu0 %3686
    %s3689 = sor.u32 256, 3
    %3690 = vbcast.lane.b32.xlu0 %v3391, %s3689
    %v3691 = vpop.permute.xlu0 %3690
    %s3693 = sor.u32 256, 11
    %3694 = vbcast.lane.b32.xlu0 %v3391, %s3693
    %v3695 = vpop.permute.xlu0 %3694
    %s3697 = sor.u32 256, 3
    %3698 = vbcast.lane.b32.xlu0 %v3403, %s3697
    %v3699 = vpop.permute.xlu0 %3698
    %s3701 = sor.u32 256, 11
    %3702 = vbcast.lane.b32.xlu0 %v3403, %s3701
    %v3703 = vpop.permute.xlu0 %3702
    %s3705 = sor.u32 256, 3
    %3706 = vbcast.lane.b32.xlu0 %v3415, %s3705
    %v3707 = vpop.permute.xlu0 %3706
    %s3709 = sor.u32 256, 11
    %3710 = vbcast.lane.b32.xlu0 %v3415, %s3709
    %v3711 = vpop.permute.xlu0 %3710
    %s3713 = sor.u32 256, 3
    %3714 = vbcast.lane.b32.xlu0 %v3427, %s3713
    %v3715 = vpop.permute.xlu0 %3714
    %s3717 = sor.u32 256, 11
    %3718 = vbcast.lane.b32.xlu0 %v3427, %s3717
    %v3719 = vpop.permute.xlu0 %3718
    %s3721 = sor.u32 256, 3
    %3722 = vbcast.lane.b32.xlu0 %v3439, %s3721
    %v3723 = vpop.permute.xlu0 %3722
    %s3725 = sor.u32 256, 11
    %3726 = vbcast.lane.b32.xlu0 %v3439, %s3725
    %v3727 = vpop.permute.xlu0 %3726
    %s3729 = sor.u32 256, 3
    %3730 = vbcast.lane.b32.xlu0 %v3451, %s3729
    %v3731 = vpop.permute.xlu0 %3730
    %s3733 = sor.u32 256, 11
    %3734 = vbcast.lane.b32.xlu0 %v3451, %s3733
    %v3735 = vpop.permute.xlu0 %3734
    %s3737 = sor.u32 256, 3
    %3738 = vbcast.lane.b32.xlu0 %v3463, %s3737
    %v3739 = vpop.permute.xlu0 %3738
    %s3741 = sor.u32 256, 11
    %3742 = vbcast.lane.b32.xlu0 %v3463, %s3741
    %v3743 = vpop.permute.xlu0 %3742
    %s3745 = sor.u32 256, 3
    %3746 = vbcast.lane.b32.xlu0 %v3475, %s3745
    %v3747 = vpop.permute.xlu0 %3746
    %s3749 = sor.u32 256, 11
    %3750 = vbcast.lane.b32.xlu0 %v3475, %s3749
    %v3751 = vpop.permute.xlu0 %3750
    %s3753 = sor.u32 256, 3
    %3754 = vbcast.lane.b32.xlu0 %v3487, %s3753
    %v3755 = vpop.permute.xlu0 %3754
    %s3757 = sor.u32 256, 11
    %3758 = vbcast.lane.b32.xlu0 %v3487, %s3757
    %v3759 = vpop.permute.xlu0 %3758
    %s3761 = sor.u32 256, 3
    %3762 = vbcast.lane.b32.xlu0 %v3499, %s3761
    %v3763 = vpop.permute.xlu0 %3762
    %s3765 = sor.u32 256, 11
    %3766 = vbcast.lane.b32.xlu0 %v3499, %s3765
    %v3767 = vpop.permute.xlu0 %3766
    %s3769 = sor.u32 256, 3
    %3770 = vbcast.lane.b32.xlu0 %v3511, %s3769
    %v3771 = vpop.permute.xlu0 %3770
    %s3773 = sor.u32 256, 11
    %3774 = vbcast.lane.b32.xlu0 %v3511, %s3773
    %v3775 = vpop.permute.xlu0 %3774
    %v3776 = vmul.f32 %v1989, %v3143
    %v3777 = vmul.f32 %v1990, %v3147
    %v3778 = vmul.f32 %v1991, %v3155
    %v3779 = vmul.f32 %v1992, %v3159
    %v3780 = vmul.f32 %v1993, %v3167
    %v3781 = vmul.f32 %v1994, %v3171
    %v3782 = vmul.f32 %v1995, %v3179
    %v3783 = vmul.f32 %v1996, %v3183
    %v3784 = vmul.f32 %v1997, %v3191
    %v3785 = vmul.f32 %v1998, %v3195
    %v3786 = vmul.f32 %v1999, %v3203
    %v3787 = vmul.f32 %v2000, %v3207
    %v3788 = vmul.f32 %v2001, %v3215
    %v3789 = vmul.f32 %v2002, %v3219
    %v3790 = vmul.f32 %v2003, %v3227
    %v3791 = vmul.f32 %v2004, %v3231
    %v3792 = vmul.f32 %v2005, %v3239
    %v3793 = vmul.f32 %v2006, %v3243
    %v3794 = vmul.f32 %v2007, %v3251
    %v3795 = vmul.f32 %v2008, %v3255
    %v3796 = vmul.f32 %v2009, %v3263
    %v3797 = vmul.f32 %v2010, %v3267
    %v3798 = vmul.f32 %v2011, %v3275
    %v3799 = vmul.f32 %v2012, %v3279
    %v3800 = vmul.f32 %v2013, %v3287
    %v3801 = vmul.f32 %v2014, %v3291
    %v3802 = vmul.f32 %v2015, %v3299
    %v3803 = vmul.f32 %v2016, %v3303
    %v3804 = vmul.f32 %v2017, %v3311
    %v3805 = vmul.f32 %v2018, %v3315
    %v3806 = vmul.f32 %v2019, %v3323
    %v3807 = vmul.f32 %v2020, %v3327
    %v3808 = vmul.f32 %v2021, %v3335
    %v3809 = vmul.f32 %v2022, %v3339
    %v3810 = vmul.f32 %v2023, %v3347
    %v3811 = vmul.f32 %v2024, %v3351
    %v3812 = vmul.f32 %v2025, %v3359
    %v3813 = vmul.f32 %v2026, %v3363
    %v3814 = vmul.f32 %v2027, %v3371
    %v3815 = vmul.f32 %v2028, %v3375
    %v3816 = vmul.f32 %v2029, %v3383
    %v3817 = vmul.f32 %v2030, %v3387
    %v3818 = vmul.f32 %v2031, %v3395
    %v3819 = vmul.f32 %v2032, %v3399
    %v3820 = vmul.f32 %v2033, %v3407
    %v3821 = vmul.f32 %v2034, %v3411
    %v3822 = vmul.f32 %v2035, %v3419
    %v3823 = vmul.f32 %v2036, %v3423
    %v3824 = vmul.f32 %v2037, %v3431
    %v3825 = vmul.f32 %v2038, %v3435
    %v3826 = vmul.f32 %v2039, %v3443
    %v3827 = vmul.f32 %v2040, %v3447
    %v3828 = vmul.f32 %v2041, %v3455
    %v3829 = vmul.f32 %v2042, %v3459
    %v3830 = vmul.f32 %v2043, %v3467
    %v3831 = vmul.f32 %v2044, %v3471
    %v3832 = vmul.f32 %v2045, %v3479
    %v3833 = vmul.f32 %v2046, %v3483
    %v3834 = vmul.f32 %v2047, %v3491
    %v3835 = vmul.f32 %v2048, %v3495
    %v3836 = vmul.f32 %v2049, %v3503
    %v3837 = vmul.f32 %v2050, %v3507
    %v3838 = vmul.f32 %v2051, %v3515
    %v3839 = vmul.f32 %v2052, %v3519
    %vm3904 = vcmask 1042432
    %v3905 = vrot.slane %v3523, 5
    %v3906 = vrot.slane %v3527, 5
    %v3907 = vsel %vm3904, %v3905, %v3906
    %v3908 = vrot.slane %v3531, 5
    %v3909 = vrot.slane %v3535, 5
    %v3910 = vsel %vm3904, %v3908, %v3909
    %v3911 = vrot.slane %v3539, 5
    %v3912 = vrot.slane %v3543, 5
    %v3913 = vsel %vm3904, %v3911, %v3912
    %v3914 = vrot.slane %v3547, 5
    %v3915 = vrot.slane %v3551, 5
    %v3916 = vsel %vm3904, %v3914, %v3915
    %v3917 = vrot.slane %v3555, 5
    %v3918 = vrot.slane %v3559, 5
    %v3919 = vsel %vm3904, %v3917, %v3918
    %v3920 = vrot.slane %v3563, 5
    %v3921 = vrot.slane %v3567, 5
    %v3922 = vsel %vm3904, %v3920, %v3921
    %v3923 = vrot.slane %v3571, 5
    %v3924 = vrot.slane %v3575, 5
    %v3925 = vsel %vm3904, %v3923, %v3924
    %v3926 = vrot.slane %v3579, 5
    %v3927 = vrot.slane %v3583, 5
    %v3928 = vsel %vm3904, %v3926, %v3927
    %v3929 = vrot.slane %v3587, 5
    %v3930 = vrot.slane %v3591, 5
    %v3931 = vsel %vm3904, %v3929, %v3930
    %v3932 = vrot.slane %v3595, 5
    %v3933 = vrot.slane %v3599, 5
    %v3934 = vsel %vm3904, %v3932, %v3933
    %v3935 = vrot.slane %v3603, 5
    %v3936 = vrot.slane %v3607, 5
    %v3937 = vsel %vm3904, %v3935, %v3936
    %v3938 = vrot.slane %v3611, 5
    %v3939 = vrot.slane %v3615, 5
    %v3940 = vsel %vm3904, %v3938, %v3939
    %v3941 = vrot.slane %v3619, 5
    %v3942 = vrot.slane %v3623, 5
    %v3943 = vsel %vm3904, %v3941, %v3942
    %v3944 = vrot.slane %v3627, 5
    %v3945 = vrot.slane %v3631, 5
    %v3946 = vsel %vm3904, %v3944, %v3945
    %v3947 = vrot.slane %v3635, 5
    %v3948 = vrot.slane %v3639, 5
    %v3949 = vsel %vm3904, %v3947, %v3948
    %v3950 = vrot.slane %v3643, 5
    %v3951 = vrot.slane %v3647, 5
    %v3952 = vsel %vm3904, %v3950, %v3951
    %v3953 = vrot.slane %v3651, 5
    %v3954 = vrot.slane %v3655, 5
    %v3955 = vsel %vm3904, %v3953, %v3954
    %v3956 = vrot.slane %v3659, 5
    %v3957 = vrot.slane %v3663, 5
    %v3958 = vsel %vm3904, %v3956, %v3957
    %v3959 = vrot.slane %v3667, 5
    %v3960 = vrot.slane %v3671, 5
    %v3961 = vsel %vm3904, %v3959, %v3960
    %v3962 = vrot.slane %v3675, 5
    %v3963 = vrot.slane %v3679, 5
    %v3964 = vsel %vm3904, %v3962, %v3963
    %v3965 = vrot.slane %v3683, 5
    %v3966 = vrot.slane %v3687, 5
    %v3967 = vsel %vm3904, %v3965, %v3966
    %v3968 = vrot.slane %v3691, 5
    %v3969 = vrot.slane %v3695, 5
    %v3970 = vsel %vm3904, %v3968, %v3969
    %v3971 = vrot.slane %v3699, 5
    %v3972 = vrot.slane %v3703, 5
    %v3973 = vsel %vm3904, %v3971, %v3972
    %v3974 = vrot.slane %v3707, 5
    %v3975 = vrot.slane %v3711, 5
    %v3976 = vsel %vm3904, %v3974, %v3975
    %v3977 = vrot.slane %v3715, 5
    %v3978 = vrot.slane %v3719, 5
    %v3979 = vsel %vm3904, %v3977, %v3978
    %v3980 = vrot.slane %v3723, 5
    %v3981 = vrot.slane %v3727, 5
    %v3982 = vsel %vm3904, %v3980, %v3981
    %v3983 = vrot.slane %v3731, 5
    %v3984 = vrot.slane %v3735, 5
    %v3985 = vsel %vm3904, %v3983, %v3984
    %v3986 = vrot.slane %v3739, 5
    %v3987 = vrot.slane %v3743, 5
    %v3988 = vsel %vm3904, %v3986, %v3987
    %v3989 = vrot.slane %v3747, 5
    %v3990 = vrot.slane %v3751, 5
    %v3991 = vsel %vm3904, %v3989, %v3990
    %v3992 = vrot.slane %v3755, 5
    %v3993 = vrot.slane %v3759, 5
    %v3994 = vsel %vm3904, %v3992, %v3993
    %v3995 = vrot.slane %v3763, 5
    %v3996 = vrot.slane %v3767, 5
    %v3997 = vsel %vm3904, %v3995, %v3996
    %v3998 = vrot.slane %v3771, 5
    %v3999 = vrot.slane %v3775, 5
    %v4000 = vsel %vm3904, %v3998, %v3999
    %v4065 = vmul.f32 %v2117, %v3905
    %v4066 = vmul.f32 %v2118, %v3907
    %v4067 = vmul.f32 %v2119, %v3908
    %v4068 = vmul.f32 %v2120, %v3910
    %v4069 = vmul.f32 %v2121, %v3911
    %v4070 = vmul.f32 %v2122, %v3913
    %v4071 = vmul.f32 %v2123, %v3914
    %v4072 = vmul.f32 %v2124, %v3916
    %v4073 = vmul.f32 %v2125, %v3917
    %v4074 = vmul.f32 %v2126, %v3919
    %v4075 = vmul.f32 %v2127, %v3920
    %v4076 = vmul.f32 %v2128, %v3922
    %v4077 = vmul.f32 %v2129, %v3923
    %v4078 = vmul.f32 %v2130, %v3925
    %v4079 = vmul.f32 %v2131, %v3926
    %v4080 = vmul.f32 %v2132, %v3928
    %v4081 = vmul.f32 %v2133, %v3929
    %v4082 = vmul.f32 %v2134, %v3931
    %v4083 = vmul.f32 %v2135, %v3932
    %v4084 = vmul.f32 %v2136, %v3934
    %v4085 = vmul.f32 %v2137, %v3935
    %v4086 = vmul.f32 %v2138, %v3937
    %v4087 = vmul.f32 %v2139, %v3938
    %v4088 = vmul.f32 %v2140, %v3940
    %v4089 = vmul.f32 %v2141, %v3941
    %v4090 = vmul.f32 %v2142, %v3943
    %v4091 = vmul.f32 %v2143, %v3944
    %v4092 = vmul.f32 %v2144, %v3946
    %v4093 = vmul.f32 %v2145, %v3947
    %v4094 = vmul.f32 %v2146, %v3949
    %v4095 = vmul.f32 %v2147, %v3950
    %v4096 = vmul.f32 %v2148, %v3952
    %v4097 = vmul.f32 %v2149, %v3953
    %v4098 = vmul.f32 %v2150, %v3955
    %v4099 = vmul.f32 %v2151, %v3956
    %v4100 = vmul.f32 %v2152, %v3958
    %v4101 = vmul.f32 %v2153, %v3959
    %v4102 = vmul.f32 %v2154, %v3961
    %v4103 = vmul.f32 %v2155, %v3962
    %v4104 = vmul.f32 %v2156, %v3964
    %v4105 = vmul.f32 %v2157, %v3965
    %v4106 = vmul.f32 %v2158, %v3967
    %v4107 = vmul.f32 %v2159, %v3968
    %v4108 = vmul.f32 %v2160, %v3970
    %v4109 = vmul.f32 %v2161, %v3971
    %v4110 = vmul.f32 %v2162, %v3973
    %v4111 = vmul.f32 %v2163, %v3974
    %v4112 = vmul.f32 %v2164, %v3976
    %v4113 = vmul.f32 %v2165, %v3977
    %v4114 = vmul.f32 %v2166, %v3979
    %v4115 = vmul.f32 %v2167, %v3980
    %v4116 = vmul.f32 %v2168, %v3982
    %v4117 = vmul.f32 %v2169, %v3983
    %v4118 = vmul.f32 %v2170, %v3985
    %v4119 = vmul.f32 %v2171, %v3986
    %v4120 = vmul.f32 %v2172, %v3988
    %v4121 = vmul.f32 %v2173, %v3989
    %v4122 = vmul.f32 %v2174, %v3991
    %v4123 = vmul.f32 %v2175, %v3992
    %v4124 = vmul.f32 %v2176, %v3994
    %v4125 = vmul.f32 %v2177, %v3995
    %v4126 = vmul.f32 %v2178, %v3997
    %v4127 = vmul.f32 %v2179, %v3998
    %v4128 = vmul.f32 %v2180, %v4000
    %v4129 = vmul.f32 %v3776, %v3048
    %v4130 = vmul.f32 %v3777, %v3049
    %v4131 = vmul.f32 %v3778, %v3050
    %v4132 = vmul.f32 %v3779, %v3051
    %v4133 = vmul.f32 %v3780, %v3052
    %v4134 = vmul.f32 %v3781, %v3053
    %v4135 = vmul.f32 %v3782, %v3054
    %v4136 = vmul.f32 %v3783, %v3055
    %v4137 = vmul.f32 %v3784, %v3056
    %v4138 = vmul.f32 %v3785, %v3057
    %v4139 = vmul.f32 %v3786, %v3058
    %v4140 = vmul.f32 %v3787, %v3059
    %v4141 = vmul.f32 %v3788, %v3060
    %v4142 = vmul.f32 %v3789, %v3061
    %v4143 = vmul.f32 %v3790, %v3062
    %v4144 = vmul.f32 %v3791, %v3063
    %v4145 = vmul.f32 %v3792, %v3064
    %v4146 = vmul.f32 %v3793, %v3065
    %v4147 = vmul.f32 %v3794, %v3066
    %v4148 = vmul.f32 %v3795, %v3067
    %v4149 = vmul.f32 %v3796, %v3068
    %v4150 = vmul.f32 %v3797, %v3069
    %v4151 = vmul.f32 %v3798, %v3070
    %v4152 = vmul.f32 %v3799, %v3071
    %v4153 = vmul.f32 %v3800, %v3072
    %v4154 = vmul.f32 %v3801, %v3073
    %v4155 = vmul.f32 %v3802, %v3074
    %v4156 = vmul.f32 %v3803, %v3075
    %v4157 = vmul.f32 %v3804, %v3076
    %v4158 = vmul.f32 %v3805, %v3077
    %v4159 = vmul.f32 %v3806, %v3078
    %v4160 = vmul.f32 %v3807, %v3079
    %v4161 = vmul.f32 %v3808, %v3080
    %v4162 = vmul.f32 %v3809, %v3081
    %v4163 = vmul.f32 %v3810, %v3082
    %v4164 = vmul.f32 %v3811, %v3083
    %v4165 = vmul.f32 %v3812, %v3084
    %v4166 = vmul.f32 %v3813, %v3085
    %v4167 = vmul.f32 %v3814, %v3086
    %v4168 = vmul.f32 %v3815, %v3087
    %v4169 = vmul.f32 %v3816, %v3088
    %v4170 = vmul.f32 %v3817, %v3089
    %v4171 = vmul.f32 %v3818, %v3090
    %v4172 = vmul.f32 %v3819, %v3091
    %v4173 = vmul.f32 %v3820, %v3092
    %v4174 = vmul.f32 %v3821, %v3093
    %v4175 = vmul.f32 %v3822, %v3094
    %v4176 = vmul.f32 %v3823, %v3095
    %v4177 = vmul.f32 %v3824, %v3096
    %v4178 = vmul.f32 %v3825, %v3097
    %v4179 = vmul.f32 %v3826, %v3098
    %v4180 = vmul.f32 %v3827, %v3099
    %v4181 = vmul.f32 %v3828, %v3100
    %v4182 = vmul.f32 %v3829, %v3101
    %v4183 = vmul.f32 %v3830, %v3102
    %v4184 = vmul.f32 %v3831, %v3103
    %v4185 = vmul.f32 %v3832, %v3104
    %v4186 = vmul.f32 %v3833, %v3105
    %v4187 = vmul.f32 %v3834, %v3106
    %v4188 = vmul.f32 %v3835, %v3107
    %v4189 = vmul.f32 %v3836, %v3108
    %v4190 = vmul.f32 %v3837, %v3109
    %v4191 = vmul.f32 %v3838, %v3110
    %v4192 = vmul.f32 %v3839, %v3111
    %v4257 = vrot.slane %v3048, 6
    %v4258 = vrot.slane %v3049, 6
    %v4259 = vsel %vm2245, %v4257, %v4258
    %v4260 = vrot.slane %v3050, 6
    %v4261 = vrot.slane %v3051, 6
    %v4262 = vsel %vm2245, %v4260, %v4261
    %v4263 = vrot.slane %v3052, 6
    %v4264 = vrot.slane %v3053, 6
    %v4265 = vsel %vm2245, %v4263, %v4264
    %v4266 = vrot.slane %v3054, 6
    %v4267 = vrot.slane %v3055, 6
    %v4268 = vsel %vm2245, %v4266, %v4267
    %v4269 = vrot.slane %v3056, 6
    %v4270 = vrot.slane %v3057, 6
    %v4271 = vsel %vm2245, %v4269, %v4270
    %v4272 = vrot.slane %v3058, 6
    %v4273 = vrot.slane %v3059, 6
    %v4274 = vsel %vm2245, %v4272, %v4273
    %v4275 = vrot.slane %v3060, 6
    %v4276 = vrot.slane %v3061, 6
    %v4277 = vsel %vm2245, %v4275, %v4276
    %v4278 = vrot.slane %v3062, 6
    %v4279 = vrot.slane %v3063, 6
    %v4280 = vsel %vm2245, %v4278, %v4279
    %v4281 = vrot.slane %v3064, 6
    %v4282 = vrot.slane %v3065, 6
    %v4283 = vsel %vm2245, %v4281, %v4282
    %v4284 = vrot.slane %v3066, 6
    %v4285 = vrot.slane %v3067, 6
    %v4286 = vsel %vm2245, %v4284, %v4285
    %v4287 = vrot.slane %v3068, 6
    %v4288 = vrot.slane %v3069, 6
    %v4289 = vsel %vm2245, %v4287, %v4288
    %v4290 = vrot.slane %v3070, 6
    %v4291 = vrot.slane %v3071, 6
    %v4292 = vsel %vm2245, %v4290, %v4291
    %v4293 = vrot.slane %v3072, 6
    %v4294 = vrot.slane %v3073, 6
    %v4295 = vsel %vm2245, %v4293, %v4294
    %v4296 = vrot.slane %v3074, 6
    %v4297 = vrot.slane %v3075, 6
    %v4298 = vsel %vm2245, %v4296, %v4297
    %v4299 = vrot.slane %v3076, 6
    %v4300 = vrot.slane %v3077, 6
    %v4301 = vsel %vm2245, %v4299, %v4300
    %v4302 = vrot.slane %v3078, 6
    %v4303 = vrot.slane %v3079, 6
    %v4304 = vsel %vm2245, %v4302, %v4303
    %v4305 = vrot.slane %v3080, 6
    %v4306 = vrot.slane %v3081, 6
    %v4307 = vsel %vm2245, %v4305, %v4306
    %v4308 = vrot.slane %v3082, 6
    %v4309 = vrot.slane %v3083, 6
    %v4310 = vsel %vm2245, %v4308, %v4309
    %v4311 = vrot.slane %v3084, 6
    %v4312 = vrot.slane %v3085, 6
    %v4313 = vsel %vm2245, %v4311, %v4312
    %v4314 = vrot.slane %v3086, 6
    %v4315 = vrot.slane %v3087, 6
    %v4316 = vsel %vm2245, %v4314, %v4315
    %v4317 = vrot.slane %v3088, 6
    %v4318 = vrot.slane %v3089, 6
    %v4319 = vsel %vm2245, %v4317, %v4318
    %v4320 = vrot.slane %v3090, 6
    %v4321 = vrot.slane %v3091, 6
    %v4322 = vsel %vm2245, %v4320, %v4321
    %v4323 = vrot.slane %v3092, 6
    %v4324 = vrot.slane %v3093, 6
    %v4325 = vsel %vm2245, %v4323, %v4324
    %v4326 = vrot.slane %v3094, 6
    %v4327 = vrot.slane %v3095, 6
    %v4328 = vsel %vm2245, %v4326, %v4327
    %v4329 = vrot.slane %v3096, 6
    %v4330 = vrot.slane %v3097, 6
    %v4331 = vsel %vm2245, %v4329, %v4330
    %v4332 = vrot.slane %v3098, 6
    %v4333 = vrot.slane %v3099, 6
    %v4334 = vsel %vm2245, %v4332, %v4333
    %v4335 = vrot.slane %v3100, 6
    %v4336 = vrot.slane %v3101, 6
    %v4337 = vsel %vm2245, %v4335, %v4336
    %v4338 = vrot.slane %v3102, 6
    %v4339 = vrot.slane %v3103, 6
    %v4340 = vsel %vm2245, %v4338, %v4339
    %v4341 = vrot.slane %v3104, 6
    %v4342 = vrot.slane %v3105, 6
    %v4343 = vsel %vm2245, %v4341, %v4342
    %v4344 = vrot.slane %v3106, 6
    %v4345 = vrot.slane %v3107, 6
    %v4346 = vsel %vm2245, %v4344, %v4345
    %v4347 = vrot.slane %v3108, 6
    %v4348 = vrot.slane %v3109, 6
    %v4349 = vsel %vm2245, %v4347, %v4348
    %v4350 = vrot.slane %v3110, 6
    %v4351 = vrot.slane %v3111, 6
    %v4352 = vsel %vm2245, %v4350, %v4351
    %v4417 = vmul.f32 %v4065, %v4257
    %v4418 = vmul.f32 %v4066, %v4259
    %v4419 = vmul.f32 %v4067, %v4260
    %v4420 = vmul.f32 %v4068, %v4262
    %v4421 = vmul.f32 %v4069, %v4263
    %v4422 = vmul.f32 %v4070, %v4265
    %v4423 = vmul.f32 %v4071, %v4266
    %v4424 = vmul.f32 %v4072, %v4268
    %v4425 = vmul.f32 %v4073, %v4269
    %v4426 = vmul.f32 %v4074, %v4271
    %v4427 = vmul.f32 %v4075, %v4272
    %v4428 = vmul.f32 %v4076, %v4274
    %v4429 = vmul.f32 %v4077, %v4275
    %v4430 = vmul.f32 %v4078, %v4277
    %v4431 = vmul.f32 %v4079, %v4278
    %v4432 = vmul.f32 %v4080, %v4280
    %v4433 = vmul.f32 %v4081, %v4281
    %v4434 = vmul.f32 %v4082, %v4283
    %v4435 = vmul.f32 %v4083, %v4284
    %v4436 = vmul.f32 %v4084, %v4286
    %v4437 = vmul.f32 %v4085, %v4287
    %v4438 = vmul.f32 %v4086, %v4289
    %v4439 = vmul.f32 %v4087, %v4290
    %v4440 = vmul.f32 %v4088, %v4292
    %v4441 = vmul.f32 %v4089, %v4293
    %v4442 = vmul.f32 %v4090, %v4295
    %v4443 = vmul.f32 %v4091, %v4296
    %v4444 = vmul.f32 %v4092, %v4298
    %v4445 = vmul.f32 %v4093, %v4299
    %v4446 = vmul.f32 %v4094, %v4301
    %v4447 = vmul.f32 %v4095, %v4302
    %v4448 = vmul.f32 %v4096, %v4304
    %v4449 = vmul.f32 %v4097, %v4305
    %v4450 = vmul.f32 %v4098, %v4307
    %v4451 = vmul.f32 %v4099, %v4308
    %v4452 = vmul.f32 %v4100, %v4310
    %v4453 = vmul.f32 %v4101, %v4311
    %v4454 = vmul.f32 %v4102, %v4313
    %v4455 = vmul.f32 %v4103, %v4314
    %v4456 = vmul.f32 %v4104, %v4316
    %v4457 = vmul.f32 %v4105, %v4317
    %v4458 = vmul.f32 %v4106, %v4319
    %v4459 = vmul.f32 %v4107, %v4320
    %v4460 = vmul.f32 %v4108, %v4322
    %v4461 = vmul.f32 %v4109, %v4323
    %v4462 = vmul.f32 %v4110, %v4325
    %v4463 = vmul.f32 %v4111, %v4326
    %v4464 = vmul.f32 %v4112, %v4328
    %v4465 = vmul.f32 %v4113, %v4329
    %v4466 = vmul.f32 %v4114, %v4331
    %v4467 = vmul.f32 %v4115, %v4332
    %v4468 = vmul.f32 %v4116, %v4334
    %v4469 = vmul.f32 %v4117, %v4335
    %v4470 = vmul.f32 %v4118, %v4337
    %v4471 = vmul.f32 %v4119, %v4338
    %v4472 = vmul.f32 %v4120, %v4340
    %v4473 = vmul.f32 %v4121, %v4341
    %v4474 = vmul.f32 %v4122, %v4343
    %v4475 = vmul.f32 %v4123, %v4344
    %v4476 = vmul.f32 %v4124, %v4346
    %v4477 = vmul.f32 %v4125, %v4347
    %v4478 = vmul.f32 %v4126, %v4349
    %v4479 = vmul.f32 %v4127, %v4350
    %v4480 = vmul.f32 %v4128, %v4352
    %vm4545 = vcmask 1044480
    %v4546 = vrot.slane %v4417, 3
    %v4547 = vrot.slane %v4418, 3
    %v4548 = vsel %vm4545, %v4546, %v4547
    %v4549 = vrot.slane %v4419, 3
    %v4550 = vrot.slane %v4420, 3
    %v4551 = vsel %vm4545, %v4549, %v4550
    %v4552 = vrot.slane %v4421, 3
    %v4553 = vrot.slane %v4422, 3
    %v4554 = vsel %vm4545, %v4552, %v4553
    %v4555 = vrot.slane %v4423, 3
    %v4556 = vrot.slane %v4424, 3
    %v4557 = vsel %vm4545, %v4555, %v4556
    %v4558 = vrot.slane %v4425, 3
    %v4559 = vrot.slane %v4426, 3
    %v4560 = vsel %vm4545, %v4558, %v4559
    %v4561 = vrot.slane %v4427, 3
    %v4562 = vrot.slane %v4428, 3
    %v4563 = vsel %vm4545, %v4561, %v4562
    %v4564 = vrot.slane %v4429, 3
    %v4565 = vrot.slane %v4430, 3
    %v4566 = vsel %vm4545, %v4564, %v4565
    %v4567 = vrot.slane %v4431, 3
    %v4568 = vrot.slane %v4432, 3
    %v4569 = vsel %vm4545, %v4567, %v4568
    %v4570 = vrot.slane %v4433, 3
    %v4571 = vrot.slane %v4434, 3
    %v4572 = vsel %vm4545, %v4570, %v4571
    %v4573 = vrot.slane %v4435, 3
    %v4574 = vrot.slane %v4436, 3
    %v4575 = vsel %vm4545, %v4573, %v4574
    %v4576 = vrot.slane %v4437, 3
    %v4577 = vrot.slane %v4438, 3
    %v4578 = vsel %vm4545, %v4576, %v4577
    %v4579 = vrot.slane %v4439, 3
    %v4580 = vrot.slane %v4440, 3
    %v4581 = vsel %vm4545, %v4579, %v4580
    %v4582 = vrot.slane %v4441, 3
    %v4583 = vrot.slane %v4442, 3
    %v4584 = vsel %vm4545, %v4582, %v4583
    %v4585 = vrot.slane %v4443, 3
    %v4586 = vrot.slane %v4444, 3
    %v4587 = vsel %vm4545, %v4585, %v4586
    %v4588 = vrot.slane %v4445, 3
    %v4589 = vrot.slane %v4446, 3
    %v4590 = vsel %vm4545, %v4588, %v4589
    %v4591 = vrot.slane %v4447, 3
    %v4592 = vrot.slane %v4448, 3
    %v4593 = vsel %vm4545, %v4591, %v4592
    %v4594 = vrot.slane %v4449, 3
    %v4595 = vrot.slane %v4450, 3
    %v4596 = vsel %vm4545, %v4594, %v4595
    %v4597 = vrot.slane %v4451, 3
    %v4598 = vrot.slane %v4452, 3
    %v4599 = vsel %vm4545, %v4597, %v4598
    %v4600 = vrot.slane %v4453, 3
    %v4601 = vrot.slane %v4454, 3
    %v4602 = vsel %vm4545, %v4600, %v4601
    %v4603 = vrot.slane %v4455, 3
    %v4604 = vrot.slane %v4456, 3
    %v4605 = vsel %vm4545, %v4603, %v4604
    %v4606 = vrot.slane %v4457, 3
    %v4607 = vrot.slane %v4458, 3
    %v4608 = vsel %vm4545, %v4606, %v4607
    %v4609 = vrot.slane %v4459, 3
    %v4610 = vrot.slane %v4460, 3
    %v4611 = vsel %vm4545, %v4609, %v4610
    %v4612 = vrot.slane %v4461, 3
    %v4613 = vrot.slane %v4462, 3
    %v4614 = vsel %vm4545, %v4612, %v4613
    %v4615 = vrot.slane %v4463, 3
    %v4616 = vrot.slane %v4464, 3
    %v4617 = vsel %vm4545, %v4615, %v4616
    %v4618 = vrot.slane %v4465, 3
    %v4619 = vrot.slane %v4466, 3
    %v4620 = vsel %vm4545, %v4618, %v4619
    %v4621 = vrot.slane %v4467, 3
    %v4622 = vrot.slane %v4468, 3
    %v4623 = vsel %vm4545, %v4621, %v4622
    %v4624 = vrot.slane %v4469, 3
    %v4625 = vrot.slane %v4470, 3
    %v4626 = vsel %vm4545, %v4624, %v4625
    %v4627 = vrot.slane %v4471, 3
    %v4628 = vrot.slane %v4472, 3
    %v4629 = vsel %vm4545, %v4627, %v4628
    %v4630 = vrot.slane %v4473, 3
    %v4631 = vrot.slane %v4474, 3
    %v4632 = vsel %vm4545, %v4630, %v4631
    %v4633 = vrot.slane %v4475, 3
    %v4634 = vrot.slane %v4476, 3
    %v4635 = vsel %vm4545, %v4633, %v4634
    %v4636 = vrot.slane %v4477, 3
    %v4637 = vrot.slane %v4478, 3
    %v4638 = vsel %vm4545, %v4636, %v4637
    %v4639 = vrot.slane %v4479, 3
    %v4640 = vrot.slane %v4480, 3
    %v4641 = vsel %vm4545, %v4639, %v4640
    %v4706 = vadd.f32 %v4129, %v4548
    %v4707 = vadd.f32 %v4130, %v4547
    %v4708 = vadd.f32 %v4131, %v4551
    %v4709 = vadd.f32 %v4132, %v4550
    %v4710 = vadd.f32 %v4133, %v4554
    %v4711 = vadd.f32 %v4134, %v4553
    %v4712 = vadd.f32 %v4135, %v4557
    %v4713 = vadd.f32 %v4136, %v4556
    %v4714 = vadd.f32 %v4137, %v4560
    %v4715 = vadd.f32 %v4138, %v4559
    %v4716 = vadd.f32 %v4139, %v4563
    %v4717 = vadd.f32 %v4140, %v4562
    %v4718 = vadd.f32 %v4141, %v4566
    %v4719 = vadd.f32 %v4142, %v4565
    %v4720 = vadd.f32 %v4143, %v4569
    %v4721 = vadd.f32 %v4144, %v4568
    %v4722 = vadd.f32 %v4145, %v4572
    %v4723 = vadd.f32 %v4146, %v4571
    %v4724 = vadd.f32 %v4147, %v4575
    %v4725 = vadd.f32 %v4148, %v4574
    %v4726 = vadd.f32 %v4149, %v4578
    %v4727 = vadd.f32 %v4150, %v4577
    %v4728 = vadd.f32 %v4151, %v4581
    %v4729 = vadd.f32 %v4152, %v4580
    %v4730 = vadd.f32 %v4153, %v4584
    %v4731 = vadd.f32 %v4154, %v4583
    %v4732 = vadd.f32 %v4155, %v4587
    %v4733 = vadd.f32 %v4156, %v4586
    %v4734 = vadd.f32 %v4157, %v4590
    %v4735 = vadd.f32 %v4158, %v4589
    %v4736 = vadd.f32 %v4159, %v4593
    %v4737 = vadd.f32 %v4160, %v4592
    %v4738 = vadd.f32 %v4161, %v4596
    %v4739 = vadd.f32 %v4162, %v4595
    %v4740 = vadd.f32 %v4163, %v4599
    %v4741 = vadd.f32 %v4164, %v4598
    %v4742 = vadd.f32 %v4165, %v4602
    %v4743 = vadd.f32 %v4166, %v4601
    %v4744 = vadd.f32 %v4167, %v4605
    %v4745 = vadd.f32 %v4168, %v4604
    %v4746 = vadd.f32 %v4169, %v4608
    %v4747 = vadd.f32 %v4170, %v4607
    %v4748 = vadd.f32 %v4171, %v4611
    %v4749 = vadd.f32 %v4172, %v4610
    %v4750 = vadd.f32 %v4173, %v4614
    %v4751 = vadd.f32 %v4174, %v4613
    %v4752 = vadd.f32 %v4175, %v4617
    %v4753 = vadd.f32 %v4176, %v4616
    %v4754 = vadd.f32 %v4177, %v4620
    %v4755 = vadd.f32 %v4178, %v4619
    %v4756 = vadd.f32 %v4179, %v4623
    %v4757 = vadd.f32 %v4180, %v4622
    %v4758 = vadd.f32 %v4181, %v4626
    %v4759 = vadd.f32 %v4182, %v4625
    %v4760 = vadd.f32 %v4183, %v4629
    %v4761 = vadd.f32 %v4184, %v4628
    %v4762 = vadd.f32 %v4185, %v4632
    %v4763 = vadd.f32 %v4186, %v4631
    %v4764 = vadd.f32 %v4187, %v4635
    %v4765 = vadd.f32 %v4188, %v4634
    %v4766 = vadd.f32 %v4189, %v4638
    %v4767 = vadd.f32 %v4190, %v4637
    %v4768 = vadd.f32 %v4191, %v4641
    %v4769 = vadd.f32 %v4192, %v4640
    %4770 = vrot.lane.b32.xlu0 %v36, 3
    %v4771 = vpop.permute.xlu0 %4770
    %4772 = vrot.lane.b32.xlu0 %v37, 3
    %v4773 = vpop.permute.xlu0 %4772
    %4774 = vrot.lane.b32.xlu0 %v38, 3
    %v4775 = vpop.permute.xlu0 %4774
    %4776 = vrot.lane.b32.xlu0 %v39, 3
    %v4777 = vpop.permute.xlu0 %4776
    %v4782 = vsub.f32 %v36, %v4771
    %v4783 = vsub.f32 %v37, %v4773
    %v4784 = vsub.f32 %v38, %v4775
    %v4785 = vsub.f32 %v39, %v4777
    %v4786 = vrcp.pop %v4782
    %v4787 = vmul.f32 1.0, %v4786
    %v4788 = vrcp.pop %v4783
    %v4789 = vmul.f32 1.0, %v4788
    %v4790 = vrcp.pop %v4784
    %v4791 = vmul.f32 1.0, %v4790
    %v4792 = vrcp.pop %v4785
    %v4793 = vmul.f32 1.0, %v4792
    %v4794 = vlaneseq
    %v4795 = vshrl.u32 %v4794, 7
    %v4796 = vsub.s32 0, %v4795
    %v4797 = vrot.slane %v4787, %v4796
    %s4799 = sor.u32 256, 3
    %4800 = vbcast.lane.b32.xlu0 %v4797, %s4799
    %v4801 = vpop.permute.xlu0 %4800
    %v4802 = vlaneseq
    %v4803 = vshrl.u32 %v4802, 7
    %v4804 = vsub.s32 1, %v4803
    %v4805 = vrot.slane %v4787, %v4804
    %s4807 = sor.u32 256, 3
    %4808 = vbcast.lane.b32.xlu0 %v4805, %s4807
    %v4809 = vpop.permute.xlu0 %4808
    %v4810 = vlaneseq
    %v4811 = vshrl.u32 %v4810, 7
    %v4812 = vsub.s32 2, %v4811
    %v4813 = vrot.slane %v4787, %v4812
    %s4815 = sor.u32 256, 3
    %4816 = vbcast.lane.b32.xlu0 %v4813, %s4815
    %v4817 = vpop.permute.xlu0 %4816
    %v4818 = vlaneseq
    %v4819 = vshrl.u32 %v4818, 7
    %v4820 = vsub.s32 3, %v4819
    %v4821 = vrot.slane %v4787, %v4820
    %s4823 = sor.u32 256, 3
    %4824 = vbcast.lane.b32.xlu0 %v4821, %s4823
    %v4825 = vpop.permute.xlu0 %4824
    %v4826 = vlaneseq
    %v4827 = vshrl.u32 %v4826, 7
    %v4828 = vsub.s32 4, %v4827
    %v4829 = vrot.slane %v4787, %v4828
    %s4831 = sor.u32 256, 3
    %4832 = vbcast.lane.b32.xlu0 %v4829, %s4831
    %v4833 = vpop.permute.xlu0 %4832
    %v4834 = vlaneseq
    %v4835 = vshrl.u32 %v4834, 7
    %v4836 = vsub.s32 5, %v4835
    %v4837 = vrot.slane %v4787, %v4836
    %s4839 = sor.u32 256, 3
    %4840 = vbcast.lane.b32.xlu0 %v4837, %s4839
    %v4841 = vpop.permute.xlu0 %4840
    %v4842 = vlaneseq
    %v4843 = vshrl.u32 %v4842, 7
    %v4844 = vsub.s32 6, %v4843
    %v4845 = vrot.slane %v4787, %v4844
    %s4847 = sor.u32 256, 3
    %4848 = vbcast.lane.b32.xlu0 %v4845, %s4847
    %v4849 = vpop.permute.xlu0 %4848
    %v4850 = vlaneseq
    %v4851 = vshrl.u32 %v4850, 7
    %v4852 = vsub.s32 7, %v4851
    %v4853 = vrot.slane %v4787, %v4852
    %s4855 = sor.u32 256, 3
    %4856 = vbcast.lane.b32.xlu0 %v4853, %s4855
    %v4857 = vpop.permute.xlu0 %4856
    %v4858 = vlaneseq
    %v4859 = vshrl.u32 %v4858, 7
    %v4860 = vsub.s32 0, %v4859
    %v4861 = vrot.slane %v4789, %v4860
    %s4863 = sor.u32 256, 3
    %4864 = vbcast.lane.b32.xlu0 %v4861, %s4863
    %v4865 = vpop.permute.xlu0 %4864
    %v4866 = vlaneseq
    %v4867 = vshrl.u32 %v4866, 7
    %v4868 = vsub.s32 1, %v4867
    %v4869 = vrot.slane %v4789, %v4868
    %s4871 = sor.u32 256, 3
    %4872 = vbcast.lane.b32.xlu0 %v4869, %s4871
    %v4873 = vpop.permute.xlu0 %4872
    %v4874 = vlaneseq
    %v4875 = vshrl.u32 %v4874, 7
    %v4876 = vsub.s32 2, %v4875
    %v4877 = vrot.slane %v4789, %v4876
    %s4879 = sor.u32 256, 3
    %4880 = vbcast.lane.b32.xlu0 %v4877, %s4879
    %v4881 = vpop.permute.xlu0 %4880
    %v4882 = vlaneseq
    %v4883 = vshrl.u32 %v4882, 7
    %v4884 = vsub.s32 3, %v4883
    %v4885 = vrot.slane %v4789, %v4884
    %s4887 = sor.u32 256, 3
    %4888 = vbcast.lane.b32.xlu0 %v4885, %s4887
    %v4889 = vpop.permute.xlu0 %4888
    %v4890 = vlaneseq
    %v4891 = vshrl.u32 %v4890, 7
    %v4892 = vsub.s32 4, %v4891
    %v4893 = vrot.slane %v4789, %v4892
    %s4895 = sor.u32 256, 3
    %4896 = vbcast.lane.b32.xlu0 %v4893, %s4895
    %v4897 = vpop.permute.xlu0 %4896
    %v4898 = vlaneseq
    %v4899 = vshrl.u32 %v4898, 7
    %v4900 = vsub.s32 5, %v4899
    %v4901 = vrot.slane %v4789, %v4900
    %s4903 = sor.u32 256, 3
    %4904 = vbcast.lane.b32.xlu0 %v4901, %s4903
    %v4905 = vpop.permute.xlu0 %4904
    %v4906 = vlaneseq
    %v4907 = vshrl.u32 %v4906, 7
    %v4908 = vsub.s32 6, %v4907
    %v4909 = vrot.slane %v4789, %v4908
    %s4911 = sor.u32 256, 3
    %4912 = vbcast.lane.b32.xlu0 %v4909, %s4911
    %v4913 = vpop.permute.xlu0 %4912
    %v4914 = vlaneseq
    %v4915 = vshrl.u32 %v4914, 7
    %v4916 = vsub.s32 7, %v4915
    %v4917 = vrot.slane %v4789, %v4916
    %s4919 = sor.u32 256, 3
    %4920 = vbcast.lane.b32.xlu0 %v4917, %s4919
    %v4921 = vpop.permute.xlu0 %4920
    %v4922 = vlaneseq
    %v4923 = vshrl.u32 %v4922, 7
    %v4924 = vsub.s32 0, %v4923
    %v4925 = vrot.slane %v4791, %v4924
    %s4927 = sor.u32 256, 3
    %4928 = vbcast.lane.b32.xlu0 %v4925, %s4927
    %v4929 = vpop.permute.xlu0 %4928
    %v4930 = vlaneseq
    %v4931 = vshrl.u32 %v4930, 7
    %v4932 = vsub.s32 1, %v4931
    %v4933 = vrot.slane %v4791, %v4932
    %s4935 = sor.u32 256, 3
    %4936 = vbcast.lane.b32.xlu0 %v4933, %s4935
    %v4937 = vpop.permute.xlu0 %4936
    %v4938 = vlaneseq
    %v4939 = vshrl.u32 %v4938, 7
    %v4940 = vsub.s32 2, %v4939
    %v4941 = vrot.slane %v4791, %v4940
    %s4943 = sor.u32 256, 3
    %4944 = vbcast.lane.b32.xlu0 %v4941, %s4943
    %v4945 = vpop.permute.xlu0 %4944
    %v4946 = vlaneseq
    %v4947 = vshrl.u32 %v4946, 7
    %v4948 = vsub.s32 3, %v4947
    %v4949 = vrot.slane %v4791, %v4948
    %s4951 = sor.u32 256, 3
    %4952 = vbcast.lane.b32.xlu0 %v4949, %s4951
    %v4953 = vpop.permute.xlu0 %4952
    %v4954 = vlaneseq
    %v4955 = vshrl.u32 %v4954, 7
    %v4956 = vsub.s32 4, %v4955
    %v4957 = vrot.slane %v4791, %v4956
    %s4959 = sor.u32 256, 3
    %4960 = vbcast.lane.b32.xlu0 %v4957, %s4959
    %v4961 = vpop.permute.xlu0 %4960
    %v4962 = vlaneseq
    %v4963 = vshrl.u32 %v4962, 7
    %v4964 = vsub.s32 5, %v4963
    %v4965 = vrot.slane %v4791, %v4964
    %s4967 = sor.u32 256, 3
    %4968 = vbcast.lane.b32.xlu0 %v4965, %s4967
    %v4969 = vpop.permute.xlu0 %4968
    %v4970 = vlaneseq
    %v4971 = vshrl.u32 %v4970, 7
    %v4972 = vsub.s32 6, %v4971
    %v4973 = vrot.slane %v4791, %v4972
    %s4975 = sor.u32 256, 3
    %4976 = vbcast.lane.b32.xlu0 %v4973, %s4975
    %v4977 = vpop.permute.xlu0 %4976
    %v4978 = vlaneseq
    %v4979 = vshrl.u32 %v4978, 7
    %v4980 = vsub.s32 7, %v4979
    %v4981 = vrot.slane %v4791, %v4980
    %s4983 = sor.u32 256, 3
    %4984 = vbcast.lane.b32.xlu0 %v4981, %s4983
    %v4985 = vpop.permute.xlu0 %4984
    %v4986 = vlaneseq
    %v4987 = vshrl.u32 %v4986, 7
    %v4988 = vsub.s32 0, %v4987
    %v4989 = vrot.slane %v4793, %v4988
    %s4991 = sor.u32 256, 3
    %4992 = vbcast.lane.b32.xlu0 %v4989, %s4991
    %v4993 = vpop.permute.xlu0 %4992
    %v4994 = vlaneseq
    %v4995 = vshrl.u32 %v4994, 7
    %v4996 = vsub.s32 1, %v4995
    %v4997 = vrot.slane %v4793, %v4996
    %s4999 = sor.u32 256, 3
    %5000 = vbcast.lane.b32.xlu0 %v4997, %s4999
    %v5001 = vpop.permute.xlu0 %5000
    %v5002 = vlaneseq
    %v5003 = vshrl.u32 %v5002, 7
    %v5004 = vsub.s32 2, %v5003
    %v5005 = vrot.slane %v4793, %v5004
    %s5007 = sor.u32 256, 3
    %5008 = vbcast.lane.b32.xlu0 %v5005, %s5007
    %v5009 = vpop.permute.xlu0 %5008
    %v5010 = vlaneseq
    %v5011 = vshrl.u32 %v5010, 7
    %v5012 = vsub.s32 3, %v5011
    %v5013 = vrot.slane %v4793, %v5012
    %s5015 = sor.u32 256, 3
    %5016 = vbcast.lane.b32.xlu0 %v5013, %s5015
    %v5017 = vpop.permute.xlu0 %5016
    %v5018 = vlaneseq
    %v5019 = vshrl.u32 %v5018, 7
    %v5020 = vsub.s32 4, %v5019
    %v5021 = vrot.slane %v4793, %v5020
    %s5023 = sor.u32 256, 3
    %5024 = vbcast.lane.b32.xlu0 %v5021, %s5023
    %v5025 = vpop.permute.xlu0 %5024
    %v5026 = vlaneseq
    %v5027 = vshrl.u32 %v5026, 7
    %v5028 = vsub.s32 5, %v5027
    %v5029 = vrot.slane %v4793, %v5028
    %s5031 = sor.u32 256, 3
    %5032 = vbcast.lane.b32.xlu0 %v5029, %s5031
    %v5033 = vpop.permute.xlu0 %5032
    %v5034 = vlaneseq
    %v5035 = vshrl.u32 %v5034, 7
    %v5036 = vsub.s32 6, %v5035
    %v5037 = vrot.slane %v4793, %v5036
    %s5039 = sor.u32 256, 3
    %5040 = vbcast.lane.b32.xlu0 %v5037, %s5039
    %v5041 = vpop.permute.xlu0 %5040
    %v5042 = vlaneseq
    %v5043 = vshrl.u32 %v5042, 7
    %v5044 = vsub.s32 7, %v5043
    %v5045 = vrot.slane %v4793, %v5044
    %s5047 = sor.u32 256, 3
    %5048 = vbcast.lane.b32.xlu0 %v5045, %s5047
    %v5049 = vpop.permute.xlu0 %5048
    %s5051 = sor.u32 256, 4
    %5052 = vbcast.lane.b32.xlu0 %v4797, %s5051
    %v5053 = vpop.permute.xlu0 %5052
    %s5055 = sor.u32 256, 4
    %5056 = vbcast.lane.b32.xlu0 %v4805, %s5055
    %v5057 = vpop.permute.xlu0 %5056
    %s5059 = sor.u32 256, 4
    %5060 = vbcast.lane.b32.xlu0 %v4813, %s5059
    %v5061 = vpop.permute.xlu0 %5060
    %s5063 = sor.u32 256, 4
    %5064 = vbcast.lane.b32.xlu0 %v4821, %s5063
    %v5065 = vpop.permute.xlu0 %5064
    %s5067 = sor.u32 256, 4
    %5068 = vbcast.lane.b32.xlu0 %v4829, %s5067
    %v5069 = vpop.permute.xlu0 %5068
    %s5071 = sor.u32 256, 4
    %5072 = vbcast.lane.b32.xlu0 %v4837, %s5071
    %v5073 = vpop.permute.xlu0 %5072
    %s5075 = sor.u32 256, 4
    %5076 = vbcast.lane.b32.xlu0 %v4845, %s5075
    %v5077 = vpop.permute.xlu0 %5076
    %s5079 = sor.u32 256, 4
    %5080 = vbcast.lane.b32.xlu0 %v4853, %s5079
    %v5081 = vpop.permute.xlu0 %5080
    %s5083 = sor.u32 256, 4
    %5084 = vbcast.lane.b32.xlu0 %v4861, %s5083
    %v5085 = vpop.permute.xlu0 %5084
    %s5087 = sor.u32 256, 4
    %5088 = vbcast.lane.b32.xlu0 %v4869, %s5087
    %v5089 = vpop.permute.xlu0 %5088
    %s5091 = sor.u32 256, 4
    %5092 = vbcast.lane.b32.xlu0 %v4877, %s5091
    %v5093 = vpop.permute.xlu0 %5092
    %s5095 = sor.u32 256, 4
    %5096 = vbcast.lane.b32.xlu0 %v4885, %s5095
    %v5097 = vpop.permute.xlu0 %5096
    %s5099 = sor.u32 256, 4
    %5100 = vbcast.lane.b32.xlu0 %v4893, %s5099
    %v5101 = vpop.permute.xlu0 %5100
    %s5103 = sor.u32 256, 4
    %5104 = vbcast.lane.b32.xlu0 %v4901, %s5103
    %v5105 = vpop.permute.xlu0 %5104
    %s5107 = sor.u32 256, 4
    %5108 = vbcast.lane.b32.xlu0 %v4909, %s5107
    %v5109 = vpop.permute.xlu0 %5108
    %s5111 = sor.u32 256, 4
    %5112 = vbcast.lane.b32.xlu0 %v4917, %s5111
    %v5113 = vpop.permute.xlu0 %5112
    %s5115 = sor.u32 256, 4
    %5116 = vbcast.lane.b32.xlu0 %v4925, %s5115
    %v5117 = vpop.permute.xlu0 %5116
    %s5119 = sor.u32 256, 4
    %5120 = vbcast.lane.b32.xlu0 %v4933, %s5119
    %v5121 = vpop.permute.xlu0 %5120
    %s5123 = sor.u32 256, 4
    %5124 = vbcast.lane.b32.xlu0 %v4941, %s5123
    %v5125 = vpop.permute.xlu0 %5124
    %s5127 = sor.u32 256, 4
    %5128 = vbcast.lane.b32.xlu0 %v4949, %s5127
    %v5129 = vpop.permute.xlu0 %5128
    %s5131 = sor.u32 256, 4
    %5132 = vbcast.lane.b32.xlu0 %v4957, %s5131
    %v5133 = vpop.permute.xlu0 %5132
    %s5135 = sor.u32 256, 4
    %5136 = vbcast.lane.b32.xlu0 %v4965, %s5135
    %v5137 = vpop.permute.xlu0 %5136
    %s5139 = sor.u32 256, 4
    %5140 = vbcast.lane.b32.xlu0 %v4973, %s5139
    %v5141 = vpop.permute.xlu0 %5140
    %s5143 = sor.u32 256, 4
    %5144 = vbcast.lane.b32.xlu0 %v4981, %s5143
    %v5145 = vpop.permute.xlu0 %5144
    %s5147 = sor.u32 256, 4
    %5148 = vbcast.lane.b32.xlu0 %v4989, %s5147
    %v5149 = vpop.permute.xlu0 %5148
    %s5151 = sor.u32 256, 4
    %5152 = vbcast.lane.b32.xlu0 %v4997, %s5151
    %v5153 = vpop.permute.xlu0 %5152
    %s5155 = sor.u32 256, 4
    %5156 = vbcast.lane.b32.xlu0 %v5005, %s5155
    %v5157 = vpop.permute.xlu0 %5156
    %s5159 = sor.u32 256, 4
    %5160 = vbcast.lane.b32.xlu0 %v5013, %s5159
    %v5161 = vpop.permute.xlu0 %5160
    %s5163 = sor.u32 256, 4
    %5164 = vbcast.lane.b32.xlu0 %v5021, %s5163
    %v5165 = vpop.permute.xlu0 %5164
    %s5167 = sor.u32 256, 4
    %5168 = vbcast.lane.b32.xlu0 %v5029, %s5167
    %v5169 = vpop.permute.xlu0 %5168
    %s5171 = sor.u32 256, 4
    %5172 = vbcast.lane.b32.xlu0 %v5037, %s5171
    %v5173 = vpop.permute.xlu0 %5172
    %s5175 = sor.u32 256, 4
    %5176 = vbcast.lane.b32.xlu0 %v5045, %s5175
    %v5177 = vpop.permute.xlu0 %5176
    %v5178 = vmul.f32 %v1989, %v4801
    %v5179 = vmul.f32 %v1991, %v4809
    %v5180 = vmul.f32 %v1993, %v4817
    %v5181 = vmul.f32 %v1995, %v4825
    %v5182 = vmul.f32 %v1997, %v4833
    %v5183 = vmul.f32 %v1999, %v4841
    %v5184 = vmul.f32 %v2001, %v4849
    %v5185 = vmul.f32 %v2003, %v4857
    %v5186 = vmul.f32 %v2005, %v4865
    %v5187 = vmul.f32 %v2007, %v4873
    %v5188 = vmul.f32 %v2009, %v4881
    %v5189 = vmul.f32 %v2011, %v4889
    %v5190 = vmul.f32 %v2013, %v4897
    %v5191 = vmul.f32 %v2015, %v4905
    %v5192 = vmul.f32 %v2017, %v4913
    %v5193 = vmul.f32 %v2019, %v4921
    %v5194 = vmul.f32 %v2021, %v4929
    %v5195 = vmul.f32 %v2023, %v4937
    %v5196 = vmul.f32 %v2025, %v4945
    %v5197 = vmul.f32 %v2027, %v4953
    %v5198 = vmul.f32 %v2029, %v4961
    %v5199 = vmul.f32 %v2031, %v4969
    %v5200 = vmul.f32 %v2033, %v4977
    %v5201 = vmul.f32 %v2035, %v4985
    %v5202 = vmul.f32 %v2037, %v4993
    %v5203 = vmul.f32 %v2039, %v5001
    %v5204 = vmul.f32 %v2041, %v5009
    %v5205 = vmul.f32 %v2043, %v5017
    %v5206 = vmul.f32 %v2045, %v5025
    %v5207 = vmul.f32 %v2047, %v5033
    %v5208 = vmul.f32 %v2049, %v5041
    %v5209 = vmul.f32 %v2051, %v5049
    %v5242 = vrot.slane %v5053, 4
    %v5243 = vrot.slane %v5057, 4
    %v5244 = vrot.slane %v5061, 4
    %v5245 = vrot.slane %v5065, 4
    %v5246 = vrot.slane %v5069, 4
    %v5247 = vrot.slane %v5073, 4
    %v5248 = vrot.slane %v5077, 4
    %v5249 = vrot.slane %v5081, 4
    %v5250 = vrot.slane %v5085, 4
    %v5251 = vrot.slane %v5089, 4
    %v5252 = vrot.slane %v5093, 4
    %v5253 = vrot.slane %v5097, 4
    %v5254 = vrot.slane %v5101, 4
    %v5255 = vrot.slane %v5105, 4
    %v5256 = vrot.slane %v5109, 4
    %v5257 = vrot.slane %v5113, 4
    %v5258 = vrot.slane %v5117, 4
    %v5259 = vrot.slane %v5121, 4
    %v5260 = vrot.slane %v5125, 4
    %v5261 = vrot.slane %v5129, 4
    %v5262 = vrot.slane %v5133, 4
    %v5263 = vrot.slane %v5137, 4
    %v5264 = vrot.slane %v5141, 4
    %v5265 = vrot.slane %v5145, 4
    %v5266 = vrot.slane %v5149, 4
    %v5267 = vrot.slane %v5153, 4
    %v5268 = vrot.slane %v5157, 4
    %v5269 = vrot.slane %v5161, 4
    %v5270 = vrot.slane %v5165, 4
    %v5271 = vrot.slane %v5169, 4
    %v5272 = vrot.slane %v5173, 4
    %v5273 = vrot.slane %v5177, 4
    %v5306 = vmul.f32 %v2117, %v5242
    %v5307 = vmul.f32 %v2118, %v5242
    %v5308 = vmul.f32 %v2119, %v5243
    %v5309 = vmul.f32 %v2120, %v5243
    %v5310 = vmul.f32 %v2121, %v5244
    %v5311 = vmul.f32 %v2122, %v5244
    %v5312 = vmul.f32 %v2123, %v5245
    %v5313 = vmul.f32 %v2124, %v5245
    %v5314 = vmul.f32 %v2125, %v5246
    %v5315 = vmul.f32 %v2126, %v5246
    %v5316 = vmul.f32 %v2127, %v5247
    %v5317 = vmul.f32 %v2128, %v5247
    %v5318 = vmul.f32 %v2129, %v5248
    %v5319 = vmul.f32 %v2130, %v5248
    %v5320 = vmul.f32 %v2131, %v5249
    %v5321 = vmul.f32 %v2132, %v5249
    %v5322 = vmul.f32 %v2133, %v5250
    %v5323 = vmul.f32 %v2134, %v5250
    %v5324 = vmul.f32 %v2135, %v5251
    %v5325 = vmul.f32 %v2136, %v5251
    %v5326 = vmul.f32 %v2137, %v5252
    %v5327 = vmul.f32 %v2138, %v5252
    %v5328 = vmul.f32 %v2139, %v5253
    %v5329 = vmul.f32 %v2140, %v5253
    %v5330 = vmul.f32 %v2141, %v5254
    %v5331 = vmul.f32 %v2142, %v5254
    %v5332 = vmul.f32 %v2143, %v5255
    %v5333 = vmul.f32 %v2144, %v5255
    %v5334 = vmul.f32 %v2145, %v5256
    %v5335 = vmul.f32 %v2146, %v5256
    %v5336 = vmul.f32 %v2147, %v5257
    %v5337 = vmul.f32 %v2148, %v5257
    %v5338 = vmul.f32 %v2149, %v5258
    %v5339 = vmul.f32 %v2150, %v5258
    %v5340 = vmul.f32 %v2151, %v5259
    %v5341 = vmul.f32 %v2152, %v5259
    %v5342 = vmul.f32 %v2153, %v5260
    %v5343 = vmul.f32 %v2154, %v5260
    %v5344 = vmul.f32 %v2155, %v5261
    %v5345 = vmul.f32 %v2156, %v5261
    %v5346 = vmul.f32 %v2157, %v5262
    %v5347 = vmul.f32 %v2158, %v5262
    %v5348 = vmul.f32 %v2159, %v5263
    %v5349 = vmul.f32 %v2160, %v5263
    %v5350 = vmul.f32 %v2161, %v5264
    %v5351 = vmul.f32 %v2162, %v5264
    %v5352 = vmul.f32 %v2163, %v5265
    %v5353 = vmul.f32 %v2164, %v5265
    %v5354 = vmul.f32 %v2165, %v5266
    %v5355 = vmul.f32 %v2166, %v5266
    %v5356 = vmul.f32 %v2167, %v5267
    %v5357 = vmul.f32 %v2168, %v5267
    %v5358 = vmul.f32 %v2169, %v5268
    %v5359 = vmul.f32 %v2170, %v5268
    %v5360 = vmul.f32 %v2171, %v5269
    %v5361 = vmul.f32 %v2172, %v5269
    %v5362 = vmul.f32 %v2173, %v5270
    %v5363 = vmul.f32 %v2174, %v5270
    %v5364 = vmul.f32 %v2175, %v5271
    %v5365 = vmul.f32 %v2176, %v5271
    %v5366 = vmul.f32 %v2177, %v5272
    %v5367 = vmul.f32 %v2178, %v5272
    %v5368 = vmul.f32 %v2179, %v5273
    %v5369 = vmul.f32 %v2180, %v5273
    %v5370 = vmul.f32 %v5178, %v4706
    %v5371 = vmul.f32 %v5179, %v4708
    %v5372 = vmul.f32 %v5180, %v4710
    %v5373 = vmul.f32 %v5181, %v4712
    %v5374 = vmul.f32 %v5182, %v4714
    %v5375 = vmul.f32 %v5183, %v4716
    %v5376 = vmul.f32 %v5184, %v4718
    %v5377 = vmul.f32 %v5185, %v4720
    %v5378 = vmul.f32 %v5186, %v4722
    %v5379 = vmul.f32 %v5187, %v4724
    %v5380 = vmul.f32 %v5188, %v4726
    %v5381 = vmul.f32 %v5189, %v4728
    %v5382 = vmul.f32 %v5190, %v4730
    %v5383 = vmul.f32 %v5191, %v4732
    %v5384 = vmul.f32 %v5192, %v4734
    %v5385 = vmul.f32 %v5193, %v4736
    %v5386 = vmul.f32 %v5194, %v4738
    %v5387 = vmul.f32 %v5195, %v4740
    %v5388 = vmul.f32 %v5196, %v4742
    %v5389 = vmul.f32 %v5197, %v4744
    %v5390 = vmul.f32 %v5198, %v4746
    %v5391 = vmul.f32 %v5199, %v4748
    %v5392 = vmul.f32 %v5200, %v4750
    %v5393 = vmul.f32 %v5201, %v4752
    %v5394 = vmul.f32 %v5202, %v4754
    %v5395 = vmul.f32 %v5203, %v4756
    %v5396 = vmul.f32 %v5204, %v4758
    %v5397 = vmul.f32 %v5205, %v4760
    %v5398 = vmul.f32 %v5206, %v4762
    %v5399 = vmul.f32 %v5207, %v4764
    %v5400 = vmul.f32 %v5208, %v4766
    %v5401 = vmul.f32 %v5209, %v4768
    %v5466 = vrot.slane %v4706, 5
    %v5467 = vrot.slane %v4707, 5
    %v5468 = vsel %vm3904, %v5466, %v5467
    %v5469 = vrot.slane %v4708, 5
    %v5470 = vrot.slane %v4709, 5
    %v5471 = vsel %vm3904, %v5469, %v5470
    %v5472 = vrot.slane %v4710, 5
    %v5473 = vrot.slane %v4711, 5
    %v5474 = vsel %vm3904, %v5472, %v5473
    %v5475 = vrot.slane %v4712, 5
    %v5476 = vrot.slane %v4713, 5
    %v5477 = vsel %vm3904, %v5475, %v5476
    %v5478 = vrot.slane %v4714, 5
    %v5479 = vrot.slane %v4715, 5
    %v5480 = vsel %vm3904, %v5478, %v5479
    %v5481 = vrot.slane %v4716, 5
    %v5482 = vrot.slane %v4717, 5
    %v5483 = vsel %vm3904, %v5481, %v5482
    %v5484 = vrot.slane %v4718, 5
    %v5485 = vrot.slane %v4719, 5
    %v5486 = vsel %vm3904, %v5484, %v5485
    %v5487 = vrot.slane %v4720, 5
    %v5488 = vrot.slane %v4721, 5
    %v5489 = vsel %vm3904, %v5487, %v5488
    %v5490 = vrot.slane %v4722, 5
    %v5491 = vrot.slane %v4723, 5
    %v5492 = vsel %vm3904, %v5490, %v5491
    %v5493 = vrot.slane %v4724, 5
    %v5494 = vrot.slane %v4725, 5
    %v5495 = vsel %vm3904, %v5493, %v5494
    %v5496 = vrot.slane %v4726, 5
    %v5497 = vrot.slane %v4727, 5
    %v5498 = vsel %vm3904, %v5496, %v5497
    %v5499 = vrot.slane %v4728, 5
    %v5500 = vrot.slane %v4729, 5
    %v5501 = vsel %vm3904, %v5499, %v5500
    %v5502 = vrot.slane %v4730, 5
    %v5503 = vrot.slane %v4731, 5
    %v5504 = vsel %vm3904, %v5502, %v5503
    %v5505 = vrot.slane %v4732, 5
    %v5506 = vrot.slane %v4733, 5
    %v5507 = vsel %vm3904, %v5505, %v5506
    %v5508 = vrot.slane %v4734, 5
    %v5509 = vrot.slane %v4735, 5
    %v5510 = vsel %vm3904, %v5508, %v5509
    %v5511 = vrot.slane %v4736, 5
    %v5512 = vrot.slane %v4737, 5
    %v5513 = vsel %vm3904, %v5511, %v5512
    %v5514 = vrot.slane %v4738, 5
    %v5515 = vrot.slane %v4739, 5
    %v5516 = vsel %vm3904, %v5514, %v5515
    %v5517 = vrot.slane %v4740, 5
    %v5518 = vrot.slane %v4741, 5
    %v5519 = vsel %vm3904, %v5517, %v5518
    %v5520 = vrot.slane %v4742, 5
    %v5521 = vrot.slane %v4743, 5
    %v5522 = vsel %vm3904, %v5520, %v5521
    %v5523 = vrot.slane %v4744, 5
    %v5524 = vrot.slane %v4745, 5
    %v5525 = vsel %vm3904, %v5523, %v5524
    %v5526 = vrot.slane %v4746, 5
    %v5527 = vrot.slane %v4747, 5
    %v5528 = vsel %vm3904, %v5526, %v5527
    %v5529 = vrot.slane %v4748, 5
    %v5530 = vrot.slane %v4749, 5
    %v5531 = vsel %vm3904, %v5529, %v5530
    %v5532 = vrot.slane %v4750, 5
    %v5533 = vrot.slane %v4751, 5
    %v5534 = vsel %vm3904, %v5532, %v5533
    %v5535 = vrot.slane %v4752, 5
    %v5536 = vrot.slane %v4753, 5
    %v5537 = vsel %vm3904, %v5535, %v5536
    %v5538 = vrot.slane %v4754, 5
    %v5539 = vrot.slane %v4755, 5
    %v5540 = vsel %vm3904, %v5538, %v5539
    %v5541 = vrot.slane %v4756, 5
    %v5542 = vrot.slane %v4757, 5
    %v5543 = vsel %vm3904, %v5541, %v5542
    %v5544 = vrot.slane %v4758, 5
    %v5545 = vrot.slane %v4759, 5
    %v5546 = vsel %vm3904, %v5544, %v5545
    %v5547 = vrot.slane %v4760, 5
    %v5548 = vrot.slane %v4761, 5
    %v5549 = vsel %vm3904, %v5547, %v5548
    %v5550 = vrot.slane %v4762, 5
    %v5551 = vrot.slane %v4763, 5
    %v5552 = vsel %vm3904, %v5550, %v5551
    %v5553 = vrot.slane %v4764, 5
    %v5554 = vrot.slane %v4765, 5
    %v5555 = vsel %vm3904, %v5553, %v5554
    %v5556 = vrot.slane %v4766, 5
    %v5557 = vrot.slane %v4767, 5
    %v5558 = vsel %vm3904, %v5556, %v5557
    %v5559 = vrot.slane %v4768, 5
    %v5560 = vrot.slane %v4769, 5
    %v5561 = vsel %vm3904, %v5559, %v5560
    %v5626 = vmul.f32 %v5306, %v5466
    %v5627 = vmul.f32 %v5307, %v5468
    %v5628 = vmul.f32 %v5308, %v5469
    %v5629 = vmul.f32 %v5309, %v5471
    %v5630 = vmul.f32 %v5310, %v5472
    %v5631 = vmul.f32 %v5311, %v5474
    %v5632 = vmul.f32 %v5312, %v5475
    %v5633 = vmul.f32 %v5313, %v5477
    %v5634 = vmul.f32 %v5314, %v5478
    %v5635 = vmul.f32 %v5315, %v5480
    %v5636 = vmul.f32 %v5316, %v5481
    %v5637 = vmul.f32 %v5317, %v5483
    %v5638 = vmul.f32 %v5318, %v5484
    %v5639 = vmul.f32 %v5319, %v5486
    %v5640 = vmul.f32 %v5320, %v5487
    %v5641 = vmul.f32 %v5321, %v5489
    %v5642 = vmul.f32 %v5322, %v5490
    %v5643 = vmul.f32 %v5323, %v5492
    %v5644 = vmul.f32 %v5324, %v5493
    %v5645 = vmul.f32 %v5325, %v5495
    %v5646 = vmul.f32 %v5326, %v5496
    %v5647 = vmul.f32 %v5327, %v5498
    %v5648 = vmul.f32 %v5328, %v5499
    %v5649 = vmul.f32 %v5329, %v5501
    %v5650 = vmul.f32 %v5330, %v5502
    %v5651 = vmul.f32 %v5331, %v5504
    %v5652 = vmul.f32 %v5332, %v5505
    %v5653 = vmul.f32 %v5333, %v5507
    %v5654 = vmul.f32 %v5334, %v5508
    %v5655 = vmul.f32 %v5335, %v5510
    %v5656 = vmul.f32 %v5336, %v5511
    %v5657 = vmul.f32 %v5337, %v5513
    %v5658 = vmul.f32 %v5338, %v5514
    %v5659 = vmul.f32 %v5339, %v5516
    %v5660 = vmul.f32 %v5340, %v5517
    %v5661 = vmul.f32 %v5341, %v5519
    %v5662 = vmul.f32 %v5342, %v5520
    %v5663 = vmul.f32 %v5343, %v5522
    %v5664 = vmul.f32 %v5344, %v5523
    %v5665 = vmul.f32 %v5345, %v5525
    %v5666 = vmul.f32 %v5346, %v5526
    %v5667 = vmul.f32 %v5347, %v5528
    %v5668 = vmul.f32 %v5348, %v5529
    %v5669 = vmul.f32 %v5349, %v5531
    %v5670 = vmul.f32 %v5350, %v5532
    %v5671 = vmul.f32 %v5351, %v5534
    %v5672 = vmul.f32 %v5352, %v5535
    %v5673 = vmul.f32 %v5353, %v5537
    %v5674 = vmul.f32 %v5354, %v5538
    %v5675 = vmul.f32 %v5355, %v5540
    %v5676 = vmul.f32 %v5356, %v5541
    %v5677 = vmul.f32 %v5357, %v5543
    %v5678 = vmul.f32 %v5358, %v5544
    %v5679 = vmul.f32 %v5359, %v5546
    %v5680 = vmul.f32 %v5360, %v5547
    %v5681 = vmul.f32 %v5361, %v5549
    %v5682 = vmul.f32 %v5362, %v5550
    %v5683 = vmul.f32 %v5363, %v5552
    %v5684 = vmul.f32 %v5364, %v5553
    %v5685 = vmul.f32 %v5365, %v5555
    %v5686 = vmul.f32 %v5366, %v5556
    %v5687 = vmul.f32 %v5367, %v5558
    %v5688 = vmul.f32 %v5368, %v5559
    %v5689 = vmul.f32 %v5369, %v5561
    %vm5754 = vcmask 1043456
    %v5755 = vrot.slane %v5626, 4
    %v5756 = vrot.slane %v5627, 4
    %v5757 = vsel %vm5754, %v5755, %v5756
    %v5758 = vrot.slane %v5628, 4
    %v5759 = vrot.slane %v5629, 4
    %v5760 = vsel %vm5754, %v5758, %v5759
    %v5761 = vrot.slane %v5630, 4
    %v5762 = vrot.slane %v5631, 4
    %v5763 = vsel %vm5754, %v5761, %v5762
    %v5764 = vrot.slane %v5632, 4
    %v5765 = vrot.slane %v5633, 4
    %v5766 = vsel %vm5754, %v5764, %v5765
    %v5767 = vrot.slane %v5634, 4
    %v5768 = vrot.slane %v5635, 4
    %v5769 = vsel %vm5754, %v5767, %v5768
    %v5770 = vrot.slane %v5636, 4
    %v5771 = vrot.slane %v5637, 4
    %v5772 = vsel %vm5754, %v5770, %v5771
    %v5773 = vrot.slane %v5638, 4
    %v5774 = vrot.slane %v5639, 4
    %v5775 = vsel %vm5754, %v5773, %v5774
    %v5776 = vrot.slane %v5640, 4
    %v5777 = vrot.slane %v5641, 4
    %v5778 = vsel %vm5754, %v5776, %v5777
    %v5779 = vrot.slane %v5642, 4
    %v5780 = vrot.slane %v5643, 4
    %v5781 = vsel %vm5754, %v5779, %v5780
    %v5782 = vrot.slane %v5644, 4
    %v5783 = vrot.slane %v5645, 4
    %v5784 = vsel %vm5754, %v5782, %v5783
    %v5785 = vrot.slane %v5646, 4
    %v5786 = vrot.slane %v5647, 4
    %v5787 = vsel %vm5754, %v5785, %v5786
    %v5788 = vrot.slane %v5648, 4
    %v5789 = vrot.slane %v5649, 4
    %v5790 = vsel %vm5754, %v5788, %v5789
    %v5791 = vrot.slane %v5650, 4
    %v5792 = vrot.slane %v5651, 4
    %v5793 = vsel %vm5754, %v5791, %v5792
    %v5794 = vrot.slane %v5652, 4
    %v5795 = vrot.slane %v5653, 4
    %v5796 = vsel %vm5754, %v5794, %v5795
    %v5797 = vrot.slane %v5654, 4
    %v5798 = vrot.slane %v5655, 4
    %v5799 = vsel %vm5754, %v5797, %v5798
    %v5800 = vrot.slane %v5656, 4
    %v5801 = vrot.slane %v5657, 4
    %v5802 = vsel %vm5754, %v5800, %v5801
    %v5803 = vrot.slane %v5658, 4
    %v5804 = vrot.slane %v5659, 4
    %v5805 = vsel %vm5754, %v5803, %v5804
    %v5806 = vrot.slane %v5660, 4
    %v5807 = vrot.slane %v5661, 4
    %v5808 = vsel %vm5754, %v5806, %v5807
    %v5809 = vrot.slane %v5662, 4
    %v5810 = vrot.slane %v5663, 4
    %v5811 = vsel %vm5754, %v5809, %v5810
    %v5812 = vrot.slane %v5664, 4
    %v5813 = vrot.slane %v5665, 4
    %v5814 = vsel %vm5754, %v5812, %v5813
    %v5815 = vrot.slane %v5666, 4
    %v5816 = vrot.slane %v5667, 4
    %v5817 = vsel %vm5754, %v5815, %v5816
    %v5818 = vrot.slane %v5668, 4
    %v5819 = vrot.slane %v5669, 4
    %v5820 = vsel %vm5754, %v5818, %v5819
    %v5821 = vrot.slane %v5670, 4
    %v5822 = vrot.slane %v5671, 4
    %v5823 = vsel %vm5754, %v5821, %v5822
    %v5824 = vrot.slane %v5672, 4
    %v5825 = vrot.slane %v5673, 4
    %v5826 = vsel %vm5754, %v5824, %v5825
    %v5827 = vrot.slane %v5674, 4
    %v5828 = vrot.slane %v5675, 4
    %v5829 = vsel %vm5754, %v5827, %v5828
    %v5830 = vrot.slane %v5676, 4
    %v5831 = vrot.slane %v5677, 4
    %v5832 = vsel %vm5754, %v5830, %v5831
    %v5833 = vrot.slane %v5678, 4
    %v5834 = vrot.slane %v5679, 4
    %v5835 = vsel %vm5754, %v5833, %v5834
    %v5836 = vrot.slane %v5680, 4
    %v5837 = vrot.slane %v5681, 4
    %v5838 = vsel %vm5754, %v5836, %v5837
    %v5839 = vrot.slane %v5682, 4
    %v5840 = vrot.slane %v5683, 4
    %v5841 = vsel %vm5754, %v5839, %v5840
    %v5842 = vrot.slane %v5684, 4
    %v5843 = vrot.slane %v5685, 4
    %v5844 = vsel %vm5754, %v5842, %v5843
    %v5845 = vrot.slane %v5686, 4
    %v5846 = vrot.slane %v5687, 4
    %v5847 = vsel %vm5754, %v5845, %v5846
    %v5848 = vrot.slane %v5688, 4
    %v5849 = vrot.slane %v5689, 4
    %v5850 = vsel %vm5754, %v5848, %v5849
    %v5883 = vadd.f32 %v5370, %v5757
    %v5884 = vadd.f32 %v5371, %v5760
    %v5885 = vadd.f32 %v5372, %v5763
    %v5886 = vadd.f32 %v5373, %v5766
    %v5887 = vadd.f32 %v5374, %v5769
    %v5888 = vadd.f32 %v5375, %v5772
    %v5889 = vadd.f32 %v5376, %v5775
    %v5890 = vadd.f32 %v5377, %v5778
    %v5891 = vadd.f32 %v5378, %v5781
    %v5892 = vadd.f32 %v5379, %v5784
    %v5893 = vadd.f32 %v5380, %v5787
    %v5894 = vadd.f32 %v5381, %v5790
    %v5895 = vadd.f32 %v5382, %v5793
    %v5896 = vadd.f32 %v5383, %v5796
    %v5897 = vadd.f32 %v5384, %v5799
    %v5898 = vadd.f32 %v5385, %v5802
    %v5899 = vadd.f32 %v5386, %v5805
    %v5900 = vadd.f32 %v5387, %v5808
    %v5901 = vadd.f32 %v5388, %v5811
    %v5902 = vadd.f32 %v5389, %v5814
    %v5903 = vadd.f32 %v5390, %v5817
    %v5904 = vadd.f32 %v5391, %v5820
    %v5905 = vadd.f32 %v5392, %v5823
    %v5906 = vadd.f32 %v5393, %v5826
    %v5907 = vadd.f32 %v5394, %v5829
    %v5908 = vadd.f32 %v5395, %v5832
    %v5909 = vadd.f32 %v5396, %v5835
    %v5910 = vadd.f32 %v5397, %v5838
    %v5911 = vadd.f32 %v5398, %v5841
    %v5912 = vadd.f32 %v5399, %v5844
    %v5913 = vadd.f32 %v5400, %v5847
    %v5914 = vadd.f32 %v5401, %v5850
    %v5915 = vld [vmem:[%s3] sm:$0xff]
    %v5916 = vld [vmem:[%s3 + $0x8] sm:$0xff]
    %v5917 = vld [vmem:[%s3 + $0x10] sm:$0xff]
    %v5918 = vld [vmem:[%s3 + $0x18] sm:$0xff]
    %v5919 = vld [vmem:[%s3 + $0x20] sm:$0xff]
    %v5920 = vld [vmem:[%s3 + $0x28] sm:$0xff]
    %v5921 = vld [vmem:[%s3 + $0x30] sm:$0xff]
    %v5922 = vld [vmem:[%s3 + $0x38] sm:$0xff]
    %v5923 = vld [vmem:[%s3 + $0x40] sm:$0xff]
    %v5924 = vld [vmem:[%s3 + $0x48] sm:$0xff]
    %v5925 = vld [vmem:[%s3 + $0x50] sm:$0xff]
    %v5926 = vld [vmem:[%s3 + $0x58] sm:$0xff]
    %v5927 = vld [vmem:[%s3 + $0x60] sm:$0xff]
    %v5928 = vld [vmem:[%s3 + $0x68] sm:$0xff]
    %v5929 = vld [vmem:[%s3 + $0x70] sm:$0xff]
    %v5930 = vld [vmem:[%s3 + $0x78] sm:$0xff]
    %5931 = vmatprep.subr.mxu0 0.0
    %5932 = vmatpush1.msra.mxu0 %v5898
    %5933 = vmatprep.subr.mxu0 0.0
    %5934 = vmatpush1.msra.mxu0 %v5897
    %5935 = vmatprep.subr.mxu0 0.0
    %5936 = vmatpush1.msra.mxu0 %v5896
    %5937 = vmatprep.subr.mxu0 0.0
    %5938 = vmatpush1.msra.mxu0 %v5895
    %5939 = vmatprep.subr.mxu0 0.0
    %5940 = vmatpush1.msra.mxu0 %v5894
    %5941 = vmatprep.subr.mxu0 0.0
    %5942 = vmatpush1.msra.mxu0 %v5893
    %5943 = vmatprep.subr.mxu0 0.0
    %5944 = vmatpush1.msra.mxu0 %v5892
    %5945 = vmatprep.subr.mxu0 0.0
    %5946 = vmatpush1.msra.mxu0 %v5891
    %5947 = vmatprep.subr.mxu0 0.0
    %5948 = vmatpush1.msra.mxu0 %v5890
    %5949 = vmatprep.subr.mxu0 0.0
    %5950 = vmatpush1.msra.mxu0 %v5889
    %5951 = vmatprep.subr.mxu0 0.0
    %5952 = vmatpush1.msra.mxu0 %v5888
    %5953 = vmatprep.subr.mxu0 0.0
    %5954 = vmatpush1.msra.mxu0 %v5887
    %5955 = vmatprep.subr.mxu0 0.0
    %5956 = vmatpush1.msra.mxu0 %v5886
    %5957 = vmatprep.subr.mxu0 0.0
    %5958 = vmatpush1.msra.mxu0 %v5885
    %5959 = vmatprep.subr.mxu0 0.0
    %5960 = vmatpush1.msra.mxu0 %v5884
    %5961 = vmatprep.subr.mxu0 0.0
    %5962 = vmatpush1.msra.mxu0 %v5883
    %5963 = vmatprep.subr.mxu0 0.0
    %5964 = vmatpush2.msra.mxu0 %v5914
    %5965 = vmatprep.subr.mxu0 0.0
    %5966 = vmatpush2.msra.mxu0 %v5913
    %5967 = vmatprep.subr.mxu0 0.0
    %5968 = vmatpush2.msra.mxu0 %v5912
    %5969 = vmatprep.subr.mxu0 0.0
    %5970 = vmatpush2.msra.mxu0 %v5911
    %5971 = vmatprep.subr.mxu0 0.0
    %5972 = vmatpush2.msra.mxu0 %v5910
    %5973 = vmatprep.subr.mxu0 0.0
    %5974 = vmatpush2.msra.mxu0 %v5909
    %5975 = vmatprep.subr.mxu0 0.0
    %5976 = vmatpush2.msra.mxu0 %v5908
    %5977 = vmatprep.subr.mxu0 0.0
    %5978 = vmatpush2.msra.mxu0 %v5907
    %5979 = vmatprep.subr.mxu0 0.0
    %5980 = vmatpush2.msra.mxu0 %v5906
    %5981 = vmatprep.subr.mxu0 0.0
    %5982 = vmatpush2.msra.mxu0 %v5905
    %5983 = vmatprep.subr.mxu0 0.0
    %5984 = vmatpush2.msra.mxu0 %v5904
    %5985 = vmatprep.subr.mxu0 0.0
    %5986 = vmatpush2.msra.mxu0 %v5903
    %5987 = vmatprep.subr.mxu0 0.0
    %5988 = vmatpush2.msra.mxu0 %v5902
    %5989 = vmatprep.subr.mxu0 0.0
    %5990 = vmatpush2.msra.mxu0 %v5901
    %5991 = vmatprep.subr.mxu0 0.0
    %5992 = vmatpush2.msra.mxu0 %v5900
    %5993 = vmatprep.subr.mxu0 0.0
    %5994 = vmatpush2.msra.mxu0 %v5899
    %5995 = vmatprep.mubr.f32.mxu0 %v5916
    %5996 = vmatmul.mubr.f32.gmra.mxu0 %v5915
    %v5997 = vpop.f32.mrf.mxu0
    %v5998 = vadd.f32 0.0, %v5997
    %v5999 = vpop.f32.mrf.mxu0
    %6000 = vmatprep.mubr.f32.mxu0 %v5918
    %6001 = vmatmul.mubr.f32.gmra.mxu0 %v5917
    %v6002 = vpop.f32.mrf.mxu0
    %v6003 = vadd.f32 0.0, %v6002
    %v6004 = vpop.f32.mrf.mxu0
    %6005 = vmatprep.mubr.f32.mxu0 %v5920
    %6006 = vmatmul.mubr.f32.gmra.mxu0 %v5919
    %v6007 = vpop.f32.mrf.mxu0
    %v6008 = vadd.f32 0.0, %v6007
    %v6009 = vpop.f32.mrf.mxu0
    %6010 = vmatprep.mubr.f32.mxu0 %v5922
    %6011 = vmatmul.mubr.f32.gmra.mxu0 %v5921
    %v6012 = vpop.f32.mrf.mxu0
    %v6013 = vadd.f32 0.0, %v6012
    %v6014 = vpop.f32.mrf.mxu0
    %6015 = vmatprep.mubr.f32.mxu0 %v5924
    %6016 = vmatmul.mubr.f32.gmra.mxu0 %v5923
    %v6017 = vpop.f32.mrf.mxu0
    %v6018 = vadd.f32 0.0, %v6017
    %v6019 = vpop.f32.mrf.mxu0
    %6020 = vmatprep.mubr.f32.mxu0 %v5926
    %6021 = vmatmul.mubr.f32.gmra.mxu0 %v5925
    %v6022 = vpop.f32.mrf.mxu0
    %v6023 = vadd.f32 0.0, %v6022
    %v6024 = vpop.f32.mrf.mxu0
    %6025 = vmatprep.mubr.f32.mxu0 %v5928
    %6026 = vmatmul.mubr.f32.gmra.mxu0 %v5927
    %v6027 = vpop.f32.mrf.mxu0
    %v6028 = vadd.f32 0.0, %v6027
    %v6029 = vpop.f32.mrf.mxu0
    %6030 = vmatprep.mubr.f32.mxu0 %v5930
    %6031 = vmatmul.mubr.f32.gmra.mxu0 %v5929
    %v6032 = vpop.f32.mrf.mxu0
    %v6033 = vadd.f32 0.0, %v6032
    %v6034 = vpop.f32.mrf.mxu0
    %6035 = vdwg.mxu0
    %vm6036 = vcmask 261120
    %v6038 = vsel %vm6036, %v56, 0
    %v6041 = vsel %vm6036, %v57, 0
    %v6044 = vsel %vm6036, %v58, 0
    %v6047 = vsel %vm6036, %v59, 0
    %v6050 = vsel %vm6036, %v60, 0
    %v6053 = vsel %vm6036, %v61, 0
    %v6056 = vsel %vm6036, %v62, 0
    %v6059 = vsel %vm6036, %v63, 0
    %6061 = vmatprep.subr.mxu0 0.0
    %6062 = vmatpush1.msra.mxu0 0.0
    %6063 = vmatprep.subr.mxu0 0.0
    %6064 = vmatpush1.msra.mxu0 0.0
    %6065 = vmatprep.subr.mxu0 0.0
    %6066 = vmatpush1.msra.mxu0 0.0
    %6067 = vmatprep.subr.mxu0 0.0
    %6068 = vmatpush1.msra.mxu0 0.0
    %6069 = vmatprep.subr.mxu0 0.0
    %6070 = vmatpush1.msra.mxu0 0.0
    %6071 = vmatprep.subr.mxu0 0.0
    %6072 = vmatpush1.msra.mxu0 0.0
    %6073 = vmatprep.subr.mxu0 0.0
    %6074 = vmatpush1.msra.mxu0 0.0
    %6075 = vmatprep.subr.mxu0 0.0
    %6076 = vmatpush1.msra.mxu0 0.0
    %6077 = vmatprep.subr.mxu0 0.0
    %6078 = vmatpush1.msra.mxu0 0.0
    %6079 = vmatprep.subr.mxu0 0.0
    %6080 = vmatpush1.msra.mxu0 0.0
    %6081 = vmatprep.subr.mxu0 0.0
    %6082 = vmatpush1.msra.mxu0 0.0
    %6083 = vmatprep.subr.mxu0 0.0
    %6084 = vmatpush1.msra.mxu0 0.0
    %6085 = vmatprep.subr.mxu0 0.0
    %6086 = vmatpush1.msra.mxu0 %v55
    %6087 = vmatprep.subr.mxu0 0.0
    %6088 = vmatpush1.msra.mxu0 %v54
    %6089 = vmatprep.subr.mxu0 0.0
    %6090 = vmatpush1.msra.mxu0 %v53
    %6091 = vmatprep.subr.mxu0 0.0
    %6092 = vmatpush1.msra.mxu0 %v52
    %6093 = vmatprep.subr.mxu0 0.0
    %6094 = vmatpush2.msra.mxu0 0.0
    %6095 = vmatprep.subr.mxu0 0.0
    %6096 = vmatpush2.msra.mxu0 0.0
    %6097 = vmatprep.subr.mxu0 0.0
    %6098 = vmatpush2.msra.mxu0 0.0
    %6099 = vmatprep.subr.mxu0 0.0
    %6100 = vmatpush2.msra.mxu0 0.0
    %6101 = vmatprep.subr.mxu0 0.0
    %6102 = vmatpush2.msra.mxu0 0.0
    %6103 = vmatprep.subr.mxu0 0.0
    %6104 = vmatpush2.msra.mxu0 0.0
    %6105 = vmatprep.subr.mxu0 0.0
    %6106 = vmatpush2.msra.mxu0 0.0
    %6107 = vmatprep.subr.mxu0 0.0
    %6108 = vmatpush2.msra.mxu0 0.0
    %6109 = vmatprep.subr.mxu0 0.0
    %6110 = vmatpush2.msra.mxu0 0.0
    %6111 = vmatprep.subr.mxu0 0.0
    %6112 = vmatpush2.msra.mxu0 0.0
    %6113 = vmatprep.subr.mxu0 0.0
    %6114 = vmatpush2.msra.mxu0 0.0
    %6115 = vmatprep.subr.mxu0 0.0
    %6116 = vmatpush2.msra.mxu0 0.0
    %6117 = vmatprep.subr.mxu0 0.0
    %6118 = vmatpush2.msra.mxu0 0.0
    %6119 = vmatprep.subr.mxu0 0.0
    %6120 = vmatpush2.msra.mxu0 0.0
    %6121 = vmatprep.subr.mxu0 0.0
    %6122 = vmatpush2.msra.mxu0 0.0
    %6123 = vmatprep.subr.mxu0 0.0
    %6124 = vmatpush2.msra.mxu0 0.0
    %6125 = vmatprep.mubr.f32.mxu0 0.0
    %6126 = vmatmul.mubr.f32.gmra.mxu0 %v6038
    %v6127 = vpop.f32.mrf.mxu0
    %v6128 = vadd.f32 %v5998, %v6127
    %v6129 = vpop.f32.mrf.mxu0
    %6130 = vmatprep.mubr.f32.mxu0 0.0
    %6131 = vmatmul.mubr.f32.gmra.mxu0 %v6041
    %v6132 = vpop.f32.mrf.mxu0
    %v6133 = vadd.f32 %v6003, %v6132
    %v6134 = vpop.f32.mrf.mxu0
    %6135 = vmatprep.mubr.f32.mxu0 0.0
    %6136 = vmatmul.mubr.f32.gmra.mxu0 %v6044
    %v6137 = vpop.f32.mrf.mxu0
    %v6138 = vadd.f32 %v6008, %v6137
    %v6139 = vpop.f32.mrf.mxu0
    %6140 = vmatprep.mubr.f32.mxu0 0.0
    %6141 = vmatmul.mubr.f32.gmra.mxu0 %v6047
    %v6142 = vpop.f32.mrf.mxu0
    %v6143 = vadd.f32 %v6013, %v6142
    %v6144 = vpop.f32.mrf.mxu0
    %6145 = vmatprep.mubr.f32.mxu0 0.0
    %6146 = vmatmul.mubr.f32.gmra.mxu0 %v6050
    %v6147 = vpop.f32.mrf.mxu0
    %v6148 = vadd.f32 %v6018, %v6147
    %v6149 = vpop.f32.mrf.mxu0
    %6150 = vmatprep.mubr.f32.mxu0 0.0
    %6151 = vmatmul.mubr.f32.gmra.mxu0 %v6053
    %v6152 = vpop.f32.mrf.mxu0
    %v6153 = vadd.f32 %v6023, %v6152
    %v6154 = vpop.f32.mrf.mxu0
    %6155 = vmatprep.mubr.f32.mxu0 0.0
    %6156 = vmatmul.mubr.f32.gmra.mxu0 %v6056
    %v6157 = vpop.f32.mrf.mxu0
    %v6158 = vadd.f32 %v6028, %v6157
    %v6159 = vpop.f32.mrf.mxu0
    %6160 = vmatprep.mubr.f32.mxu0 0.0
    %6161 = vmatmul.mubr.f32.gmra.mxu0 %v6059
    %v6162 = vpop.f32.mrf.mxu0
    %v6163 = vadd.f32 %v6033, %v6162
    %v6164 = vpop.f32.mrf.mxu0
    %6165 = vdwg.mxu0
    %6166 = vst [vmem:[#allocation5] sm:$0xff] %v6128
    %6167 = vst [vmem:[#allocation5 + $0x8] sm:$0xff] %v6133
    %6168 = vst [vmem:[#allocation5 + $0x10] sm:$0xff] %v6138
    %6169 = vst [vmem:[#allocation5 + $0x18] sm:$0xff] %v6143
    %6170 = vst [vmem:[#allocation5 + $0x20] sm:$0xff] %v6148
    %6171 = vst [vmem:[#allocation5 + $0x28] sm:$0xff] %v6153
    %6172 = vst [vmem:[#allocation5 + $0x30] sm:$0xff] %v6158
    %6173 = vst [vmem:[#allocation5 + $0x38] sm:$0xff] %v6163
    // Predicated region
    $region22: #{tpu_custom_call.1} parent=1 // pred_check
      _
    $region23: #{tpu_custom_call.1} parent=1 // pred_check_branch
      %6175 = sbr.rel (0) target = $region25
    $region24: #{tpu_custom_call.1} parent=1 // pred_region
      %s6177 = ssub.s32 1024, 1024
      %6178 = vsyncadd [#allocation4], %s6177
      %s6179 = sshll.u32 [#allocation5], 4
      %s6180 = int_to_ptr.vmem [resolvable:$true] %s6179
      %6185 = dma.vmem_to_hbm [thread:$0]  %s6180, 1024, %s4, [#allocation4], 128, 128, 8
    $region25: #{tpu_custom_call.1} parent=1 // pred_fallthru
      _
    // Predicated region
    $region26: #{tpu_custom_call.1} parent=1 // pred_check
      _
    $region27: #{tpu_custom_call.1} parent=1 // pred_check_branch
      %6187 = sbr.rel (0) target = $region29
    $region28: #{tpu_custom_call.1} parent=1 // pred_region
      %6188 = dma.done [#allocation4], 1024
    $region29: #{tpu_custom_call.1} parent=1 // pred_fallthru
      _
    %6189 = vsyncpa [#allocation3], 1
    %6190 = vsyncpa [#allocation4], 1

</llo_original>
